<compile_context>
chip_gen: v6e
topology: v6e:2x2x1
jax: 0.10.0
libtpu: 0.0.40
codegen_flags: <defaults>
</compile_context>

<pallas_src>
import functools

import jax
import jax.numpy as jnp
from jax.experimental import pallas as pl
from jax.experimental.pallas import tpu as pltpu


def mlp_kernel(x_ref, w1_ref, b1_ref, w2_ref, b2_ref, o_ref):
    # One lane-dense packed tile:
    #   (TBp, PACK*10) @ blockdiag(W1) -> +b1, ReLU -> @ blockdiag(W2) -> +b2
    # MXU operands in the weights' dtype (bf16 by default), f32 accumulation,
    # biases added in f32.
    x = x_ref[...].astype(w1_ref.dtype)
    h = jnp.dot(x, w1_ref[...], preferred_element_type=jnp.float32)
    h = jnp.maximum(h + b1_ref[...], 0.0)
    y = jnp.dot(h.astype(w2_ref.dtype), w2_ref[...],
                preferred_element_type=jnp.float32)
    o_ref[...] = (y + b2_ref[...]).astype(o_ref.dtype)


@functools.partial(jax.jit, static_argnames=("pack", "block_rows", "matmul_dtype"))
def student_model_forward(x, w1, b1, w2, b2, *, pack=128, block_rows=256,
                          matmul_dtype=jnp.bfloat16):
    """x: (B, 10) f32. w1: (10, 5), b1: (5,), w2: (5, 10), b2: (10,). Returns (B, 10) f32."""
    B, in_f = x.shape
    hid = w1.shape[1]
    out_f = w2.shape[1]

    # ---- lane-dense repacking (done once, outside the kernel) ---------------
    # Pad batch to a multiple of `pack`; (Bp, 10) -> (Bp/pack, pack*10) is a
    # free row-major reshape (padded rows are discarded at the end).
    Bp = pl.cdiv(B, pack) * pack
    xp = x if Bp == B else jnp.pad(x, ((0, Bp - B), (0, 0)))
    n_rows = Bp // pack
    xp = xp.reshape(n_rows, pack * in_f)

    eye = jnp.eye(pack, dtype=jnp.float32)
    w1_big = jnp.kron(eye, w1.astype(jnp.float32)).astype(matmul_dtype)  # (pack*10, pack*5)
    w2_big = jnp.kron(eye, w2.astype(jnp.float32)).astype(matmul_dtype)  # (pack*5, pack*10)
    b1_big = jnp.tile(b1.reshape(-1).astype(jnp.float32), pack).reshape(1, pack * hid)
    b2_big = jnp.tile(b2.reshape(-1).astype(jnp.float32), pack).reshape(1, pack * out_f)

    kin, khid, kout = pack * in_f, pack * hid, pack * out_f  # 1280, 640, 1280

    # Batch tile in packed rows: multiple of 8 (sublane rule) unless the whole
    # packed batch fits in one full-extent block (always legal).
    tb = n_rows if n_rows <= block_rows else max(8, (block_rows // 8) * 8)
    grid = (pl.cdiv(n_rows, tb),)

    flops = 2 * Bp * (in_f * hid + hid * out_f)
    bytes_accessed = (
        (xp.size + n_rows * kout) * 4                       # x in + y out (f32)
        + (w1_big.size + w2_big.size) * w1_big.dtype.itemsize
        + (b1_big.size + b2_big.size) * 4)

    yp = pl.pallas_call(
        mlp_kernel,
        out_shape=jax.ShapeDtypeStruct((n_rows, kout), jnp.float32),
        grid=grid,
        in_specs=[
            # x: tiled over packed-batch rows, double-buffered by Pallas.
            pl.BlockSpec((tb, kin), lambda i: (i, 0)),
            # Parameters: constant index_map -> resident in VMEM across steps.
            pl.BlockSpec((kin, khid), lambda i: (0, 0)),
            pl.BlockSpec((1, khid), lambda i: (0, 0)),
            pl.BlockSpec((khid, kout), lambda i: (0, 0)),
            pl.BlockSpec((1, kout), lambda i: (0, 0)),
        ],
        out_specs=pl.BlockSpec((tb, kout), lambda i: (i, 0)),
        compiler_params=pltpu.CompilerParams(
            dimension_semantics=("parallel",),
            vmem_limit_bytes=32 * 1024 * 1024,
        ),
        cost_estimate=pl.CostEstimate(
            flops=int(flops), transcendentals=0, bytes_accessed=int(bytes_accessed)),
    )(xp, w1_big, b1_big, w2_big, b2_big)

    # Free row-major reshape back to (Bp, 10), drop the batch padding.
    return yp.reshape(Bp, out_f)[:B]


def init_params(key):
    # Deterministic init mimicking nn.Linear's uniform(-1/sqrt(fan_in), 1/sqrt(fan_in)).
    k1, k2, k3, k4 = jax.random.split(key, 4)
    bound1 = 1.0 / jnp.sqrt(10.0)
    bound2 = 1.0 / jnp.sqrt(5.0)
    w1 = jax.random.uniform(k1, (10, 5), jnp.float32, -bound1, bound1)
    b1 = jax.random.uniform(k2, (5,), jnp.float32, -bound1, bound1)
    w2 = jax.random.uniform(k3, (5, 10), jnp.float32, -bound2, bound2)
    b2 = jax.random.uniform(k4, (10,), jnp.float32, -bound2, bound2)
    return w1, b1, w2, b2


def _ref_forward(x, w1, b1, w2, b2):
    return jnp.maximum(x @ w1 + b1, 0.0) @ w2 + b2


if __name__ == "__main__":
    key = jax.random.PRNGKey(0)
    k_x, k_x2, k_p = jax.random.split(key, 3)
    w1, b1, w2, b2 = init_params(k_p)

    # Small, module-consistent shape: (batch=8, in_features=10).
    x = jax.random.normal(k_x, (8, 10), jnp.float32)
    ref = _ref_forward(x, w1, b1, w2, b2)

    # Exact-parity mode (f32 MXU operands) against the f32 reference.
    out_f32 = jax.block_until_ready(
        student_model_forward(x, w1, b1, w2, b2, matmul_dtype=jnp.float32))
    assert out_f32.shape == (8, 10)
    assert jnp.allclose(out_f32, ref, atol=1e-5, rtol=1e-5)

    # Default fast mode (bf16 MXU operands, f32 accumulation): looser parity.
    out_bf16 = jax.block_until_ready(student_model_forward(x, w1, b1, w2, b2))
    assert out_bf16.shape == (8, 10)
    assert jnp.allclose(out_bf16, ref, atol=1e-1, rtol=1e-1)

    # Multi-step grid, partial last packed tile, and batch-padding path.
    x2 = jax.random.normal(k_x2, (2100, 10), jnp.float32)
    ref2 = _ref_forward(x2, w1, b1, w2, b2)
    out2 = jax.block_until_ready(
        student_model_forward(x2, w1, b1, w2, b2, block_rows=8))
    assert out2.shape == (2100, 10)
    assert jnp.allclose(out2, ref2, atol=1e-1, rtol=1e-1)
    out2_f32 = jax.block_until_ready(
        student_model_forward(x2, w1, b1, w2, b2, block_rows=8,
                              matmul_dtype=jnp.float32))
    assert jnp.allclose(out2_f32, ref2, atol=1e-5, rtol=1e-5)

    print("KERNEL_OK")
</pallas_src>

<mosaic_0001>
module attributes {stable_mosaic.version = 11 : i64} {
  func.func @mlp_kernel(%arg0: i32, %arg1: memref<1x1280xf32, #tpu.memory_space<vmem>>, %arg2: memref<1280x640xf32, #tpu.memory_space<vmem>>, %arg3: memref<1x640xf32, #tpu.memory_space<vmem>>, %arg4: memref<640x1280xf32, #tpu.memory_space<vmem>>, %arg5: memref<1x1280xf32, #tpu.memory_space<vmem>>, %arg6: memref<1x1280xf32, #tpu.memory_space<vmem>>) attributes {dimension_semantics = [#tpu.dimension_semantics<parallel>], iteration_bounds = array<i64: 1>, scalar_prefetch = 0 : i64, scratch_operands = 0 : i64, tpu.core_type = #tpu.core_type<tc>, window_params = [{transform_indices = @transform_0, window_bounds = array<i64: 1, 1280>}, {pipeline_mode = #tpu.pipeline_mode<synchronous>, transform_indices = @transform_1, window_bounds = array<i64: 1280, 640>}, {pipeline_mode = #tpu.pipeline_mode<synchronous>, transform_indices = @transform_2, window_bounds = array<i64: 1, 640>}, {pipeline_mode = #tpu.pipeline_mode<synchronous>, transform_indices = @transform_3, window_bounds = array<i64: 640, 1280>}, {pipeline_mode = #tpu.pipeline_mode<synchronous>, transform_indices = @transform_4, window_bounds = array<i64: 1, 1280>}, {transform_indices = @transform_5, window_bounds = array<i64: 1, 1280>}]} {
    %c0 = arith.constant 0 : index
    %c0_0 = arith.constant 0 : index
    %0 = vector.load %arg1[%c0, %c0_0] : memref<1x1280xf32, #tpu.memory_space<vmem>>, vector<1x1280xf32>
    %c0_1 = arith.constant 0 : index
    %c0_2 = arith.constant 0 : index
    %1 = vector.load %arg2[%c0_1, %c0_2] : memref<1280x640xf32, #tpu.memory_space<vmem>>, vector<1280x640xf32>
    %cst = arith.constant dense<0.000000e+00> : vector<1x640xf32>
    %2 = tpu.matmul %0, %1, %cst {dimension_numbers = #tpu.dot_dimension_numbers<[1], [0], [0], [1], [0, 0, 1, 1], [], []>} : vector<1x1280xf32>, vector<1280x640xf32>, vector<1x640xf32> -> vector<1x640xf32>
    %c0_3 = arith.constant 0 : index
    %c0_4 = arith.constant 0 : index
    %3 = vector.load %arg3[%c0_3, %c0_4] : memref<1x640xf32, #tpu.memory_space<vmem>>, vector<1x640xf32>
    %4 = arith.addf %2, %3 : vector<1x640xf32>
    %cst_5 = arith.constant 0.000000e+00 : f32
    %5 = vector.broadcast %cst_5 : f32 to vector<1x640xf32>
    %6 = arith.maximumf %4, %5 : vector<1x640xf32>
    %c0_6 = arith.constant 0 : index
    %c0_7 = arith.constant 0 : index
    %7 = vector.load %arg4[%c0_6, %c0_7] : memref<640x1280xf32, #tpu.memory_space<vmem>>, vector<640x1280xf32>
    %cst_8 = arith.constant dense<0.000000e+00> : vector<1x1280xf32>
    %8 = tpu.matmul %6, %7, %cst_8 {dimension_numbers = #tpu.dot_dimension_numbers<[1], [0], [0], [1], [0, 0, 1, 1], [], []>} : vector<1x640xf32>, vector<640x1280xf32>, vector<1x1280xf32> -> vector<1x1280xf32>
    %c0_9 = arith.constant 0 : index
    %c0_10 = arith.constant 0 : index
    %9 = vector.load %arg5[%c0_9, %c0_10] : memref<1x1280xf32, #tpu.memory_space<vmem>>, vector<1x1280xf32>
    %10 = arith.addf %8, %9 : vector<1x1280xf32>
    %c0_11 = arith.constant 0 : index
    %c0_12 = arith.constant 0 : index
    %11 = vector.load %arg6[%c0_11, %c0_12] : memref<1x1280xf32, #tpu.memory_space<vmem>>, vector<1x1280xf32>
    tpu.vector_store %arg6[%c0_11, %c0_12], %10 {strides = array<i32>} : memref<1x1280xf32, #tpu.memory_space<vmem>>, vector<1x1280xf32>,
    return
  }
  func.func @transform_0(%arg0: i32) -> (i32, i32) {
    %c0_i32 = arith.constant 0 : i32
    %c0_i32_0 = arith.constant 0 : i32
    return %arg0, %c0_i32 : i32, i32
  }
  func.func @transform_1(%arg0: i32) -> (i32, i32) {
    %c0_i32 = arith.constant 0 : i32
    %c0_i32_0 = arith.constant 0 : i32
    %c0_i32_1 = arith.constant 0 : i32
    return %c0_i32, %c0_i32_0 : i32, i32
  }
  func.func @transform_2(%arg0: i32) -> (i32, i32) {
    %c0_i32 = arith.constant 0 : i32
    %c0_i32_0 = arith.constant 0 : i32
    %c0_i32_1 = arith.constant 0 : i32
    return %c0_i32, %c0_i32_0 : i32, i32
  }
  func.func @transform_3(%arg0: i32) -> (i32, i32) {
    %c0_i32 = arith.constant 0 : i32
    %c0_i32_0 = arith.constant 0 : i32
    %c0_i32_1 = arith.constant 0 : i32
    return %c0_i32, %c0_i32_0 : i32, i32
  }
  func.func @transform_4(%arg0: i32) -> (i32, i32) {
    %c0_i32 = arith.constant 0 : i32
    %c0_i32_0 = arith.constant 0 : i32
    %c0_i32_1 = arith.constant 0 : i32
    return %c0_i32, %c0_i32_0 : i32, i32
  }
  func.func @transform_5(%arg0: i32) -> (i32, i32) {
    %c0_i32 = arith.constant 0 : i32
    %c0_i32_0 = arith.constant 0 : i32
    return %arg0, %c0_i32 : i32, i32
  }
}

</mosaic_0001>

<llo_original>
// kernel: tile.18
$region0: #{tile.18}
  #allocation0 [shape = 's32[1]{0}', space=sflag, size = 0x4, scoped, tag = 'scoped memory for tile.18']
  %s0 = inlined_call_operand.vmem [shape: f32[10], index: 0, kind: input, shape index: {}]
  %s1 = inlined_call_operand.vmem [shape: f32[128,10], index: 1, kind: output, shape index: {}]
  // Predicated region
  $region2: #{tile.18} parent=0 // pred_check
    _
  $region3: #{tile.18} parent=0 // pred_check_branch
    %3 = sbr.rel (0) target = $region5
  $region4: #{tile.18} parent=0 // pred_region
    _
  $region5: #{tile.18} parent=0 // pred_fallthru
    _
  %v4 = vld [vmem:[%s0] ss:$0 sm:$0xff]
  %5 = vst [vmem:[%s1] sm:$0xff] %v4
  %s6 = scalar_lea.vmem %s1, 8
  %7 = vst [vmem:[%s6] sm:$0xff] %v4
  %s8 = scalar_lea.vmem %s1, 16
  %9 = vst [vmem:[%s8] sm:$0xff] %v4
  %s10 = scalar_lea.vmem %s1, 24
  %11 = vst [vmem:[%s10] sm:$0xff] %v4
  %s12 = scalar_lea.vmem %s1, 32
  %13 = vst [vmem:[%s12] sm:$0xff] %v4
  %s14 = scalar_lea.vmem %s1, 40
  %15 = vst [vmem:[%s14] sm:$0xff] %v4
  %s16 = scalar_lea.vmem %s1, 48
  %17 = vst [vmem:[%s16] sm:$0xff] %v4
  %s18 = scalar_lea.vmem %s1, 56
  %19 = vst [vmem:[%s18] sm:$0xff] %v4
  %s20 = scalar_lea.vmem %s1, 64
  %21 = vst [vmem:[%s20] sm:$0xff] %v4
  %s22 = scalar_lea.vmem %s1, 72
  %23 = vst [vmem:[%s22] sm:$0xff] %v4
  %s24 = scalar_lea.vmem %s1, 80
  %25 = vst [vmem:[%s24] sm:$0xff] %v4
  %s26 = scalar_lea.vmem %s1, 88
  %27 = vst [vmem:[%s26] sm:$0xff] %v4
  %s28 = scalar_lea.vmem %s1, 96
  %29 = vst [vmem:[%s28] sm:$0xff] %v4
  %s30 = scalar_lea.vmem %s1, 104
  %31 = vst [vmem:[%s30] sm:$0xff] %v4
  %s32 = scalar_lea.vmem %s1, 112
  %33 = vst [vmem:[%s32] sm:$0xff] %v4
  %s34 = scalar_lea.vmem %s1, 120
  %35 = vst [vmem:[%s34] sm:$0xff] %v4

// kernel: tile.13
$region0: #{tile.13}
  #allocation0 [shape = 's32[1]{0}', space=sflag, size = 0x4, scoped, tag = 'scoped memory for tile.13']
  %s0 = inlined_call_operand.vmem [shape: f32[5], index: 0, kind: input, shape index: {}]
  %s1 = inlined_call_operand.vmem [shape: f32[128,5], index: 1, kind: output, shape index: {}]
  // Predicated region
  $region2: #{tile.13} parent=0 // pred_check
    _
  $region3: #{tile.13} parent=0 // pred_check_branch
    %3 = sbr.rel (0) target = $region5
  $region4: #{tile.13} parent=0 // pred_region
    _
  $region5: #{tile.13} parent=0 // pred_fallthru
    _
  %v4 = vld [vmem:[%s0] ss:$0 sm:$0xff]
  %5 = vst [vmem:[%s1] sm:$0xff] %v4
  %s6 = scalar_lea.vmem %s1, 8
  %7 = vst [vmem:[%s6] sm:$0xff] %v4
  %s8 = scalar_lea.vmem %s1, 16
  %9 = vst [vmem:[%s8] sm:$0xff] %v4
  %s10 = scalar_lea.vmem %s1, 24
  %11 = vst [vmem:[%s10] sm:$0xff] %v4
  %s12 = scalar_lea.vmem %s1, 32
  %13 = vst [vmem:[%s12] sm:$0xff] %v4
  %s14 = scalar_lea.vmem %s1, 40
  %15 = vst [vmem:[%s14] sm:$0xff] %v4
  %s16 = scalar_lea.vmem %s1, 48
  %17 = vst [vmem:[%s16] sm:$0xff] %v4
  %s18 = scalar_lea.vmem %s1, 56
  %19 = vst [vmem:[%s18] sm:$0xff] %v4
  %s20 = scalar_lea.vmem %s1, 64
  %21 = vst [vmem:[%s20] sm:$0xff] %v4
  %s22 = scalar_lea.vmem %s1, 72
  %23 = vst [vmem:[%s22] sm:$0xff] %v4
  %s24 = scalar_lea.vmem %s1, 80
  %25 = vst [vmem:[%s24] sm:$0xff] %v4
  %s26 = scalar_lea.vmem %s1, 88
  %27 = vst [vmem:[%s26] sm:$0xff] %v4
  %s28 = scalar_lea.vmem %s1, 96
  %29 = vst [vmem:[%s28] sm:$0xff] %v4
  %s30 = scalar_lea.vmem %s1, 104
  %31 = vst [vmem:[%s30] sm:$0xff] %v4
  %s32 = scalar_lea.vmem %s1, 112
  %33 = vst [vmem:[%s32] sm:$0xff] %v4
  %s34 = scalar_lea.vmem %s1, 120
  %35 = vst [vmem:[%s34] sm:$0xff] %v4

// kernel: tile.14
$region0: #{tile.14}
  %s0 = inlined_call_operand.vmem [shape: f32[128,5], index: 0, kind: input, shape index: {}]
  %s1 = inlined_call_operand.vmem [shape: f32[1,640], index: 1, kind: output, shape index: {}]
  $region1: #{tile.14} parent=0
    #allocation0 [shape = 'u8[20480]{0}', space=vmem, size = 0x5000, scoped, tag = 'scoped mem for output reshape']
    %v2 = vld [vmem:[%s0] sm:$0x1]
    %vm3 = vcmask 39936
    %4 = vst.msk [vmem:[#allocation0] sm:$0x1] %vm3, %v2
    %s5 = scalar_lea.vmem %s0, 51
    %v6 = vld [vmem:[%s5] sm:$0x1]
    %s7 = scalar_lea.vmem %s0, 51
    %v8 = vld [vmem:[%s7] sm:$0x1]
    %vm9 = vcmask 7168
    %v10 = vsel %vm9, %v8, %v6
    %11 = vrot.lane.b32.xlu0 %v10, 127
    %v12 = vpop.permute.xlu0 %11
    %vm13 = vcmask 31744
    %s14 = scalar_lea.vmem [#allocation0], 16
    %15 = vst.msk [vmem:[%s14] sm:$0x1] %vm13, %v12
    %vm16 = vcmask 1048568
    %s17 = scalar_lea.vmem [#allocation0], 8
    %18 = vst.msk [vmem:[%s17] sm:$0x1] %vm16, %v12
    %s19 = scalar_lea.vmem %s0, 102
    %v20 = vld [vmem:[%s19] sm:$0x1]
    %s21 = scalar_lea.vmem %s0, 102
    %v22 = vld [vmem:[%s21] sm:$0x1]
    %vm23 = vcmask 15360
    %v24 = vsel %vm23, %v22, %v20
    %25 = vrot.lane.b32.xlu0 %v24, 126
    %v26 = vpop.permute.xlu0 %25
    %vm27 = vcmask 23552
    %s28 = scalar_lea.vmem [#allocation0], 32
    %29 = vst.msk [vmem:[%s28] sm:$0x1] %vm27, %v26
    %vm30 = vcmask 1048560
    %s31 = scalar_lea.vmem [#allocation0], 24
    %32 = vst.msk [vmem:[%s31] sm:$0x1] %vm30, %v26
    %s33 = scalar_lea.vmem %s0, 25
    %v34 = vld [vmem:[%s33] sm:$0x1]
    %s35 = scalar_lea.vmem %s0, 25
    %v36 = vld [vmem:[%s35] sm:$0x1]
    %vm37 = vcmask 23552
    %v38 = vsel %vm37, %v36, %v34
    %39 = vrot.lane.b32.xlu0 %v38, 125
    %v40 = vpop.permute.xlu0 %39
    %vm41 = vcmask 15360
    %s42 = scalar_lea.vmem [#allocation0], 8
    %43 = vst.msk [vmem:[%s42] sm:$0x1] %vm41, %v40
    %vm44 = vcmask 1048552
    %45 = vst.msk [vmem:[#allocation0] sm:$0x1] %vm44, %v40
    %s46 = scalar_lea.vmem %s0, 76
    %v47 = vld [vmem:[%s46] sm:$0x1]
    %s48 = scalar_lea.vmem %s0, 76
    %v49 = vld [vmem:[%s48] sm:$0x1]
    %vm50 = vcmask 31744
    %v51 = vsel %vm50, %v49, %v47
    %52 = vrot.lane.b32.xlu0 %v51, 124
    %v53 = vpop.permute.xlu0 %52
    %vm54 = vcmask 7168
    %s55 = scalar_lea.vmem [#allocation0], 24
    %56 = vst.msk [vmem:[%s55] sm:$0x1] %vm54, %v53
    %vm57 = vcmask 1048544
    %s58 = scalar_lea.vmem [#allocation0], 16
    %59 = vst.msk [vmem:[%s58] sm:$0x1] %vm57, %v53
    %s60 = scalar_lea.vmem %s0, 127
    %v61 = vld [vmem:[%s60] sm:$0x1]
    %62 = vrot.lane.b32.xlu0 %v61, 123
    %v63 = vpop.permute.xlu0 %62
    %vm64 = vcmask 1048536
    %s65 = scalar_lea.vmem [#allocation0], 32
    %66 = vst.msk [vmem:[%s65] sm:$0x1] %vm64, %v63
    %s67 = scalar_lea.vmem %s0, 50
    %v68 = vld [vmem:[%s67] sm:$0x1]
    %69 = vrot.lane.b32.xlu0 %v68, 122
    %v70 = vpop.permute.xlu0 %69
    %vm71 = vcmask 1040336
    %s72 = scalar_lea.vmem [#allocation0], 8
    %73 = vst.msk [vmem:[%s72] sm:$0x1] %vm71, %v70
    %s74 = scalar_lea.vmem %s0, 101
    %v75 = vld [vmem:[%s74] sm:$0x1]
    %76 = vrot.lane.b32.xlu0 %v75, 121
    %v77 = vpop.permute.xlu0 %76
    %vm78 = vcmask 1032136
    %s79 = scalar_lea.vmem [#allocation0], 24
    %80 = vst.msk [vmem:[%s79] sm:$0x1] %vm78, %v77
    %s81 = scalar_lea.vmem %s0, 24
    %v82 = vld [vmem:[%s81] sm:$0x1]
    %83 = vrot.lane.b32.xlu0 %v82, 120
    %v84 = vpop.permute.xlu0 %83
    %vm85 = vcmask 1023936
    %86 = vst.msk [vmem:[#allocation0] sm:$0x1] %vm85, %v84
    %s87 = scalar_lea.vmem %s0, 75
    %v88 = vld [vmem:[%s87] sm:$0x1]
    %89 = vrot.lane.b32.xlu0 %v88, 119
    %v90 = vpop.permute.xlu0 %89
    %vm91 = vcmask 1015736
    %s92 = scalar_lea.vmem [#allocation0], 16
    %93 = vst.msk [vmem:[%s92] sm:$0x1] %vm91, %v90
    %s94 = scalar_lea.vmem %s0, 126
    %v95 = vld [vmem:[%s94] sm:$0x1]
    %96 = vrot.lane.b32.xlu0 %v95, 118
    %v97 = vpop.permute.xlu0 %96
    %vm98 = vcmask 1007536
    %s99 = scalar_lea.vmem [#allocation0], 32
    %100 = vst.msk [vmem:[%s99] sm:$0x1] %vm98, %v97
    %s101 = scalar_lea.vmem %s0, 49
    %v102 = vld [vmem:[%s101] sm:$0x1]
    %103 = vrot.lane.b32.xlu0 %v102, 117
    %v104 = vpop.permute.xlu0 %103
    %vm105 = vcmask 999336
    %s106 = scalar_lea.vmem [#allocation0], 8
    %107 = vst.msk [vmem:[%s106] sm:$0x1] %vm105, %v104
    %s108 = scalar_lea.vmem %s0, 100
    %v109 = vld [vmem:[%s108] sm:$0x1]
    %110 = vrot.lane.b32.xlu0 %v109, 116
    %v111 = vpop.permute.xlu0 %110
    %vm112 = vcmask 991136
    %s113 = scalar_lea.vmem [#allocation0], 24
    %114 = vst.msk [vmem:[%s113] sm:$0x1] %vm112, %v111
    %s115 = scalar_lea.vmem %s0, 23
    %v116 = vld [vmem:[%s115] sm:$0x1]
    %117 = vrot.lane.b32.xlu0 %v116, 115
    %v118 = vpop.permute.xlu0 %117
    %vm119 = vcmask 982936
    %120 = vst.msk [vmem:[#allocation0] sm:$0x1] %vm119, %v118
    %s121 = scalar_lea.vmem %s0, 74
    %v122 = vld [vmem:[%s121] sm:$0x1]
    %123 = vrot.lane.b32.xlu0 %v122, 114
    %v124 = vpop.permute.xlu0 %123
    %vm125 = vcmask 974736
    %s126 = scalar_lea.vmem [#allocation0], 16
    %127 = vst.msk [vmem:[%s126] sm:$0x1] %vm125, %v124
    %s128 = scalar_lea.vmem %s0, 125
    %v129 = vld [vmem:[%s128] sm:$0x1]
    %130 = vrot.lane.b32.xlu0 %v129, 113
    %v131 = vpop.permute.xlu0 %130
    %vm132 = vcmask 966536
    %s133 = scalar_lea.vmem [#allocation0], 32
    %134 = vst.msk [vmem:[%s133] sm:$0x1] %vm132, %v131
    %s135 = scalar_lea.vmem %s0, 48
    %v136 = vld [vmem:[%s135] sm:$0x1]
    %137 = vrot.lane.b32.xlu0 %v136, 112
    %v138 = vpop.permute.xlu0 %137
    %vm139 = vcmask 958336
    %s140 = scalar_lea.vmem [#allocation0], 8
    %141 = vst.msk [vmem:[%s140] sm:$0x1] %vm139, %v138
    %s142 = scalar_lea.vmem %s0, 99
    %v143 = vld [vmem:[%s142] sm:$0x1]
    %144 = vrot.lane.b32.xlu0 %v143, 111
    %v145 = vpop.permute.xlu0 %144
    %vm146 = vcmask 950136
    %s147 = scalar_lea.vmem [#allocation0], 24
    %148 = vst.msk [vmem:[%s147] sm:$0x1] %vm146, %v145
    %s149 = scalar_lea.vmem %s0, 22
    %v150 = vld [vmem:[%s149] sm:$0x1]
    %151 = vrot.lane.b32.xlu0 %v150, 110
    %v152 = vpop.permute.xlu0 %151
    %vm153 = vcmask 941936
    %154 = vst.msk [vmem:[#allocation0] sm:$0x1] %vm153, %v152
    %s155 = scalar_lea.vmem %s0, 73
    %v156 = vld [vmem:[%s155] sm:$0x1]
    %157 = vrot.lane.b32.xlu0 %v156, 109
    %v158 = vpop.permute.xlu0 %157
    %vm159 = vcmask 933736
    %s160 = scalar_lea.vmem [#allocation0], 16
    %161 = vst.msk [vmem:[%s160] sm:$0x1] %vm159, %v158
    %s162 = scalar_lea.vmem %s0, 124
    %v163 = vld [vmem:[%s162] sm:$0x1]
    %164 = vrot.lane.b32.xlu0 %v163, 108
    %v165 = vpop.permute.xlu0 %164
    %vm166 = vcmask 925536
    %s167 = scalar_lea.vmem [#allocation0], 32
    %168 = vst.msk [vmem:[%s167] sm:$0x1] %vm166, %v165
    %s169 = scalar_lea.vmem %s0, 47
    %v170 = vld [vmem:[%s169] sm:$0x1]
    %171 = vrot.lane.b32.xlu0 %v170, 107
    %v172 = vpop.permute.xlu0 %171
    %vm173 = vcmask 917336
    %s174 = scalar_lea.vmem [#allocation0], 8
    %175 = vst.msk [vmem:[%s174] sm:$0x1] %vm173, %v172
    %s176 = scalar_lea.vmem %s0, 98
    %v177 = vld [vmem:[%s176] sm:$0x1]
    %178 = vrot.lane.b32.xlu0 %v177, 106
    %v179 = vpop.permute.xlu0 %178
    %vm180 = vcmask 909136
    %s181 = scalar_lea.vmem [#allocation0], 24
    %182 = vst.msk [vmem:[%s181] sm:$0x1] %vm180, %v179
    %s183 = scalar_lea.vmem %s0, 21
    %v184 = vld [vmem:[%s183] sm:$0x1]
    %185 = vrot.lane.b32.xlu0 %v184, 105
    %v186 = vpop.permute.xlu0 %185
    %vm187 = vcmask 900936
    %188 = vst.msk [vmem:[#allocation0] sm:$0x1] %vm187, %v186
    %s189 = scalar_lea.vmem %s0, 72
    %v190 = vld [vmem:[%s189] sm:$0x1]
    %191 = vrot.lane.b32.xlu0 %v190, 104
    %v192 = vpop.permute.xlu0 %191
    %vm193 = vcmask 892736
    %s194 = scalar_lea.vmem [#allocation0], 16
    %195 = vst.msk [vmem:[%s194] sm:$0x1] %vm193, %v192
    %s196 = scalar_lea.vmem %s0, 123
    %v197 = vld [vmem:[%s196] sm:$0x1]
    %198 = vrot.lane.b32.xlu0 %v197, 103
    %v199 = vpop.permute.xlu0 %198
    %vm200 = vcmask 884536
    %s201 = scalar_lea.vmem [#allocation0], 32
    %202 = vst.msk [vmem:[%s201] sm:$0x1] %vm200, %v199
    %s203 = scalar_lea.vmem %s0, 46
    %v204 = vld [vmem:[%s203] sm:$0x1]
    %205 = vrot.lane.b32.xlu0 %v204, 102
    %v206 = vpop.permute.xlu0 %205
    %vm207 = vcmask 876336
    %s208 = scalar_lea.vmem [#allocation0], 8
    %209 = vst.msk [vmem:[%s208] sm:$0x1] %vm207, %v206
    %s210 = scalar_lea.vmem %s0, 97
    %v211 = vld [vmem:[%s210] sm:$0x1]
    %212 = vrot.lane.b32.xlu0 %v211, 101
    %v213 = vpop.permute.xlu0 %212
    %vm214 = vcmask 868136
    %s215 = scalar_lea.vmem [#allocation0], 24
    %216 = vst.msk [vmem:[%s215] sm:$0x1] %vm214, %v213
    %s217 = scalar_lea.vmem %s0, 20
    %v218 = vld [vmem:[%s217] sm:$0x1]
    %219 = vrot.lane.b32.xlu0 %v218, 100
    %v220 = vpop.permute.xlu0 %219
    %vm221 = vcmask 859936
    %222 = vst.msk [vmem:[#allocation0] sm:$0x1] %vm221, %v220
    %s223 = scalar_lea.vmem %s0, 71
    %v224 = vld [vmem:[%s223] sm:$0x1]
    %225 = vrot.lane.b32.xlu0 %v224, 99
    %v226 = vpop.permute.xlu0 %225
    %vm227 = vcmask 851736
    %s228 = scalar_lea.vmem [#allocation0], 16
    %229 = vst.msk [vmem:[%s228] sm:$0x1] %vm227, %v226
    %s230 = scalar_lea.vmem %s0, 122
    %v231 = vld [vmem:[%s230] sm:$0x1]
    %232 = vrot.lane.b32.xlu0 %v231, 98
    %v233 = vpop.permute.xlu0 %232
    %vm234 = vcmask 843536
    %s235 = scalar_lea.vmem [#allocation0], 32
    %236 = vst.msk [vmem:[%s235] sm:$0x1] %vm234, %v233
    %s237 = scalar_lea.vmem %s0, 45
    %v238 = vld [vmem:[%s237] sm:$0x1]
    %239 = vrot.lane.b32.xlu0 %v238, 97
    %v240 = vpop.permute.xlu0 %239
    %vm241 = vcmask 835336
    %s242 = scalar_lea.vmem [#allocation0], 8
    %243 = vst.msk [vmem:[%s242] sm:$0x1] %vm241, %v240
    %s244 = scalar_lea.vmem %s0, 96
    %v245 = vld [vmem:[%s244] sm:$0x1]
    %246 = vrot.lane.b32.xlu0 %v245, 96
    %v247 = vpop.permute.xlu0 %246
    %vm248 = vcmask 827136
    %s249 = scalar_lea.vmem [#allocation0], 24
    %250 = vst.msk [vmem:[%s249] sm:$0x1] %vm248, %v247
    %s251 = scalar_lea.vmem %s0, 19
    %v252 = vld [vmem:[%s251] sm:$0x1]
    %253 = vrot.lane.b32.xlu0 %v252, 95
    %v254 = vpop.permute.xlu0 %253
    %vm255 = vcmask 818936
    %256 = vst.msk [vmem:[#allocation0] sm:$0x1] %vm255, %v254
    %s257 = scalar_lea.vmem %s0, 70
    %v258 = vld [vmem:[%s257] sm:$0x1]
    %259 = vrot.lane.b32.xlu0 %v258, 94
    %v260 = vpop.permute.xlu0 %259
    %vm261 = vcmask 810736
    %s262 = scalar_lea.vmem [#allocation0], 16
    %263 = vst.msk [vmem:[%s262] sm:$0x1] %vm261, %v260
    %s264 = scalar_lea.vmem %s0, 121
    %v265 = vld [vmem:[%s264] sm:$0x1]
    %266 = vrot.lane.b32.xlu0 %v265, 93
    %v267 = vpop.permute.xlu0 %266
    %vm268 = vcmask 802536
    %s269 = scalar_lea.vmem [#allocation0], 32
    %270 = vst.msk [vmem:[%s269] sm:$0x1] %vm268, %v267
    %s271 = scalar_lea.vmem %s0, 44
    %v272 = vld [vmem:[%s271] sm:$0x1]
    %273 = vrot.lane.b32.xlu0 %v272, 92
    %v274 = vpop.permute.xlu0 %273
    %vm275 = vcmask 794336
    %s276 = scalar_lea.vmem [#allocation0], 8
    %277 = vst.msk [vmem:[%s276] sm:$0x1] %vm275, %v274
    %s278 = scalar_lea.vmem %s0, 95
    %v279 = vld [vmem:[%s278] sm:$0x1]
    %280 = vrot.lane.b32.xlu0 %v279, 91
    %v281 = vpop.permute.xlu0 %280
    %vm282 = vcmask 786136
    %s283 = scalar_lea.vmem [#allocation0], 24
    %284 = vst.msk [vmem:[%s283] sm:$0x1] %vm282, %v281
    %s285 = scalar_lea.vmem %s0, 18
    %v286 = vld [vmem:[%s285] sm:$0x1]
    %287 = vrot.lane.b32.xlu0 %v286, 90
    %v288 = vpop.permute.xlu0 %287
    %vm289 = vcmask 777936
    %290 = vst.msk [vmem:[#allocation0] sm:$0x1] %vm289, %v288
    %s291 = scalar_lea.vmem %s0, 69
    %v292 = vld [vmem:[%s291] sm:$0x1]
    %293 = vrot.lane.b32.xlu0 %v292, 89
    %v294 = vpop.permute.xlu0 %293
    %vm295 = vcmask 769736
    %s296 = scalar_lea.vmem [#allocation0], 16
    %297 = vst.msk [vmem:[%s296] sm:$0x1] %vm295, %v294
    %s298 = scalar_lea.vmem %s0, 120
    %v299 = vld [vmem:[%s298] sm:$0x1]
    %300 = vrot.lane.b32.xlu0 %v299, 88
    %v301 = vpop.permute.xlu0 %300
    %vm302 = vcmask 761536
    %s303 = scalar_lea.vmem [#allocation0], 32
    %304 = vst.msk [vmem:[%s303] sm:$0x1] %vm302, %v301
    %s305 = scalar_lea.vmem %s0, 43
    %v306 = vld [vmem:[%s305] sm:$0x1]
    %307 = vrot.lane.b32.xlu0 %v306, 87
    %v308 = vpop.permute.xlu0 %307
    %vm309 = vcmask 753336
    %s310 = scalar_lea.vmem [#allocation0], 8
    %311 = vst.msk [vmem:[%s310] sm:$0x1] %vm309, %v308
    %s312 = scalar_lea.vmem %s0, 94
    %v313 = vld [vmem:[%s312] sm:$0x1]
    %314 = vrot.lane.b32.xlu0 %v313, 86
    %v315 = vpop.permute.xlu0 %314
    %vm316 = vcmask 745136
    %s317 = scalar_lea.vmem [#allocation0], 24
    %318 = vst.msk [vmem:[%s317] sm:$0x1] %vm316, %v315
    %s319 = scalar_lea.vmem %s0, 17
    %v320 = vld [vmem:[%s319] sm:$0x1]
    %321 = vrot.lane.b32.xlu0 %v320, 85
    %v322 = vpop.permute.xlu0 %321
    %vm323 = vcmask 736936
    %324 = vst.msk [vmem:[#allocation0] sm:$0x1] %vm323, %v322
    %s325 = scalar_lea.vmem %s0, 68
    %v326 = vld [vmem:[%s325] sm:$0x1]
    %327 = vrot.lane.b32.xlu0 %v326, 84
    %v328 = vpop.permute.xlu0 %327
    %vm329 = vcmask 728736
    %s330 = scalar_lea.vmem [#allocation0], 16
    %331 = vst.msk [vmem:[%s330] sm:$0x1] %vm329, %v328
    %s332 = scalar_lea.vmem %s0, 119
    %v333 = vld [vmem:[%s332] sm:$0x1]
    %334 = vrot.lane.b32.xlu0 %v333, 83
    %v335 = vpop.permute.xlu0 %334
    %vm336 = vcmask 720536
    %s337 = scalar_lea.vmem [#allocation0], 32
    %338 = vst.msk [vmem:[%s337] sm:$0x1] %vm336, %v335
    %s339 = scalar_lea.vmem %s0, 42
    %v340 = vld [vmem:[%s339] sm:$0x1]
    %341 = vrot.lane.b32.xlu0 %v340, 82
    %v342 = vpop.permute.xlu0 %341
    %vm343 = vcmask 712336
    %s344 = scalar_lea.vmem [#allocation0], 8
    %345 = vst.msk [vmem:[%s344] sm:$0x1] %vm343, %v342
    %s346 = scalar_lea.vmem %s0, 93
    %v347 = vld [vmem:[%s346] sm:$0x1]
    %348 = vrot.lane.b32.xlu0 %v347, 81
    %v349 = vpop.permute.xlu0 %348
    %vm350 = vcmask 704136
    %s351 = scalar_lea.vmem [#allocation0], 24
    %352 = vst.msk [vmem:[%s351] sm:$0x1] %vm350, %v349
    %s353 = scalar_lea.vmem %s0, 16
    %v354 = vld [vmem:[%s353] sm:$0x1]
    %355 = vrot.lane.b32.xlu0 %v354, 80
    %v356 = vpop.permute.xlu0 %355
    %vm357 = vcmask 695936
    %358 = vst.msk [vmem:[#allocation0] sm:$0x1] %vm357, %v356
    %s359 = scalar_lea.vmem %s0, 67
    %v360 = vld [vmem:[%s359] sm:$0x1]
    %361 = vrot.lane.b32.xlu0 %v360, 79
    %v362 = vpop.permute.xlu0 %361
    %vm363 = vcmask 687736
    %s364 = scalar_lea.vmem [#allocation0], 16
    %365 = vst.msk [vmem:[%s364] sm:$0x1] %vm363, %v362
    %s366 = scalar_lea.vmem %s0, 118
    %v367 = vld [vmem:[%s366] sm:$0x1]
    %368 = vrot.lane.b32.xlu0 %v367, 78
    %v369 = vpop.permute.xlu0 %368
    %vm370 = vcmask 679536
    %s371 = scalar_lea.vmem [#allocation0], 32
    %372 = vst.msk [vmem:[%s371] sm:$0x1] %vm370, %v369
    %s373 = scalar_lea.vmem %s0, 41
    %v374 = vld [vmem:[%s373] sm:$0x1]
    %375 = vrot.lane.b32.xlu0 %v374, 77
    %v376 = vpop.permute.xlu0 %375
    %vm377 = vcmask 671336
    %s378 = scalar_lea.vmem [#allocation0], 8
    %379 = vst.msk [vmem:[%s378] sm:$0x1] %vm377, %v376
    %s380 = scalar_lea.vmem %s0, 92
    %v381 = vld [vmem:[%s380] sm:$0x1]
    %382 = vrot.lane.b32.xlu0 %v381, 76
    %v383 = vpop.permute.xlu0 %382
    %vm384 = vcmask 663136
    %s385 = scalar_lea.vmem [#allocation0], 24
    %386 = vst.msk [vmem:[%s385] sm:$0x1] %vm384, %v383
    %s387 = scalar_lea.vmem %s0, 15
    %v388 = vld [vmem:[%s387] sm:$0x1]
    %389 = vrot.lane.b32.xlu0 %v388, 75
    %v390 = vpop.permute.xlu0 %389
    %vm391 = vcmask 654936
    %392 = vst.msk [vmem:[#allocation0] sm:$0x1] %vm391, %v390
    %s393 = scalar_lea.vmem %s0, 66
    %v394 = vld [vmem:[%s393] sm:$0x1]
    %395 = vrot.lane.b32.xlu0 %v394, 74
    %v396 = vpop.permute.xlu0 %395
    %vm397 = vcmask 646736
    %s398 = scalar_lea.vmem [#allocation0], 16
    %399 = vst.msk [vmem:[%s398] sm:$0x1] %vm397, %v396
    %s400 = scalar_lea.vmem %s0, 117
    %v401 = vld [vmem:[%s400] sm:$0x1]
    %402 = vrot.lane.b32.xlu0 %v401, 73
    %v403 = vpop.permute.xlu0 %402
    %vm404 = vcmask 638536
    %s405 = scalar_lea.vmem [#allocation0], 32
    %406 = vst.msk [vmem:[%s405] sm:$0x1] %vm404, %v403
    %s407 = scalar_lea.vmem %s0, 40
    %v408 = vld [vmem:[%s407] sm:$0x1]
    %409 = vrot.lane.b32.xlu0 %v408, 72
    %v410 = vpop.permute.xlu0 %409
    %vm411 = vcmask 630336
    %s412 = scalar_lea.vmem [#allocation0], 8
    %413 = vst.msk [vmem:[%s412] sm:$0x1] %vm411, %v410
    %s414 = scalar_lea.vmem %s0, 91
    %v415 = vld [vmem:[%s414] sm:$0x1]
    %416 = vrot.lane.b32.xlu0 %v415, 71
    %v417 = vpop.permute.xlu0 %416
    %vm418 = vcmask 622136
    %s419 = scalar_lea.vmem [#allocation0], 24
    %420 = vst.msk [vmem:[%s419] sm:$0x1] %vm418, %v417
    %s421 = scalar_lea.vmem %s0, 14
    %v422 = vld [vmem:[%s421] sm:$0x1]
    %423 = vrot.lane.b32.xlu0 %v422, 70
    %v424 = vpop.permute.xlu0 %423
    %vm425 = vcmask 613936
    %426 = vst.msk [vmem:[#allocation0] sm:$0x1] %vm425, %v424
    %s427 = scalar_lea.vmem %s0, 65
    %v428 = vld [vmem:[%s427] sm:$0x1]
    %429 = vrot.lane.b32.xlu0 %v428, 69
    %v430 = vpop.permute.xlu0 %429
    %vm431 = vcmask 605736
    %s432 = scalar_lea.vmem [#allocation0], 16
    %433 = vst.msk [vmem:[%s432] sm:$0x1] %vm431, %v430
    %s434 = scalar_lea.vmem %s0, 116
    %v435 = vld [vmem:[%s434] sm:$0x1]
    %436 = vrot.lane.b32.xlu0 %v435, 68
    %v437 = vpop.permute.xlu0 %436
    %vm438 = vcmask 597536
    %s439 = scalar_lea.vmem [#allocation0], 32
    %440 = vst.msk [vmem:[%s439] sm:$0x1] %vm438, %v437
    %s441 = scalar_lea.vmem %s0, 39
    %v442 = vld [vmem:[%s441] sm:$0x1]
    %443 = vrot.lane.b32.xlu0 %v442, 67
    %v444 = vpop.permute.xlu0 %443
    %vm445 = vcmask 589336
    %s446 = scalar_lea.vmem [#allocation0], 8
    %447 = vst.msk [vmem:[%s446] sm:$0x1] %vm445, %v444
    %s448 = scalar_lea.vmem %s0, 90
    %v449 = vld [vmem:[%s448] sm:$0x1]
    %450 = vrot.lane.b32.xlu0 %v449, 66
    %v451 = vpop.permute.xlu0 %450
    %vm452 = vcmask 581136
    %s453 = scalar_lea.vmem [#allocation0], 24
    %454 = vst.msk [vmem:[%s453] sm:$0x1] %vm452, %v451
    %s455 = scalar_lea.vmem %s0, 13
    %v456 = vld [vmem:[%s455] sm:$0x1]
    %457 = vrot.lane.b32.xlu0 %v456, 65
    %v458 = vpop.permute.xlu0 %457
    %vm459 = vcmask 572936
    %460 = vst.msk [vmem:[#allocation0] sm:$0x1] %vm459, %v458
    %s461 = scalar_lea.vmem %s0, 64
    %v462 = vld [vmem:[%s461] sm:$0x1]
    %463 = vrot.lane.b32.xlu0 %v462, 64
    %v464 = vpop.permute.xlu0 %463
    %vm465 = vcmask 564736
    %s466 = scalar_lea.vmem [#allocation0], 16
    %467 = vst.msk [vmem:[%s466] sm:$0x1] %vm465, %v464
    %s468 = scalar_lea.vmem %s0, 115
    %v469 = vld [vmem:[%s468] sm:$0x1]
    %470 = vrot.lane.b32.xlu0 %v469, 63
    %v471 = vpop.permute.xlu0 %470
    %vm472 = vcmask 556536
    %s473 = scalar_lea.vmem [#allocation0], 32
    %474 = vst.msk [vmem:[%s473] sm:$0x1] %vm472, %v471
    %s475 = scalar_lea.vmem %s0, 38
    %v476 = vld [vmem:[%s475] sm:$0x1]
    %477 = vrot.lane.b32.xlu0 %v476, 62
    %v478 = vpop.permute.xlu0 %477
    %vm479 = vcmask 548336
    %s480 = scalar_lea.vmem [#allocation0], 8
    %481 = vst.msk [vmem:[%s480] sm:$0x1] %vm479, %v478
    %s482 = scalar_lea.vmem %s0, 89
    %v483 = vld [vmem:[%s482] sm:$0x1]
    %484 = vrot.lane.b32.xlu0 %v483, 61
    %v485 = vpop.permute.xlu0 %484
    %vm486 = vcmask 540136
    %s487 = scalar_lea.vmem [#allocation0], 24
    %488 = vst.msk [vmem:[%s487] sm:$0x1] %vm486, %v485
    %s489 = scalar_lea.vmem %s0, 12
    %v490 = vld [vmem:[%s489] sm:$0x1]
    %491 = vrot.lane.b32.xlu0 %v490, 60
    %v492 = vpop.permute.xlu0 %491
    %vm493 = vcmask 531936
    %494 = vst.msk [vmem:[#allocation0] sm:$0x1] %vm493, %v492
    %s495 = scalar_lea.vmem %s0, 63
    %v496 = vld [vmem:[%s495] sm:$0x1]
    %497 = vrot.lane.b32.xlu0 %v496, 59
    %v498 = vpop.permute.xlu0 %497
    %vm499 = vcmask 523736
    %s500 = scalar_lea.vmem [#allocation0], 16
    %501 = vst.msk [vmem:[%s500] sm:$0x1] %vm499, %v498
    %s502 = scalar_lea.vmem %s0, 114
    %v503 = vld [vmem:[%s502] sm:$0x1]
    %504 = vrot.lane.b32.xlu0 %v503, 58
    %v505 = vpop.permute.xlu0 %504
    %vm506 = vcmask 515536
    %s507 = scalar_lea.vmem [#allocation0], 32
    %508 = vst.msk [vmem:[%s507] sm:$0x1] %vm506, %v505
    %s509 = scalar_lea.vmem %s0, 37
    %v510 = vld [vmem:[%s509] sm:$0x1]
    %511 = vrot.lane.b32.xlu0 %v510, 57
    %v512 = vpop.permute.xlu0 %511
    %vm513 = vcmask 507336
    %s514 = scalar_lea.vmem [#allocation0], 8
    %515 = vst.msk [vmem:[%s514] sm:$0x1] %vm513, %v512
    %s516 = scalar_lea.vmem %s0, 88
    %v517 = vld [vmem:[%s516] sm:$0x1]
    %518 = vrot.lane.b32.xlu0 %v517, 56
    %v519 = vpop.permute.xlu0 %518
    %vm520 = vcmask 499136
    %s521 = scalar_lea.vmem [#allocation0], 24
    %522 = vst.msk [vmem:[%s521] sm:$0x1] %vm520, %v519
    %s523 = scalar_lea.vmem %s0, 11
    %v524 = vld [vmem:[%s523] sm:$0x1]
    %525 = vrot.lane.b32.xlu0 %v524, 55
    %v526 = vpop.permute.xlu0 %525
    %vm527 = vcmask 490936
    %528 = vst.msk [vmem:[#allocation0] sm:$0x1] %vm527, %v526
    %s529 = scalar_lea.vmem %s0, 62
    %v530 = vld [vmem:[%s529] sm:$0x1]
    %531 = vrot.lane.b32.xlu0 %v530, 54
    %v532 = vpop.permute.xlu0 %531
    %vm533 = vcmask 482736
    %s534 = scalar_lea.vmem [#allocation0], 16
    %535 = vst.msk [vmem:[%s534] sm:$0x1] %vm533, %v532
    %s536 = scalar_lea.vmem %s0, 113
    %v537 = vld [vmem:[%s536] sm:$0x1]
    %538 = vrot.lane.b32.xlu0 %v537, 53
    %v539 = vpop.permute.xlu0 %538
    %vm540 = vcmask 474536
    %s541 = scalar_lea.vmem [#allocation0], 32
    %542 = vst.msk [vmem:[%s541] sm:$0x1] %vm540, %v539
    %s543 = scalar_lea.vmem %s0, 36
    %v544 = vld [vmem:[%s543] sm:$0x1]
    %545 = vrot.lane.b32.xlu0 %v544, 52
    %v546 = vpop.permute.xlu0 %545
    %vm547 = vcmask 466336
    %s548 = scalar_lea.vmem [#allocation0], 8
    %549 = vst.msk [vmem:[%s548] sm:$0x1] %vm547, %v546
    %s550 = scalar_lea.vmem %s0, 87
    %v551 = vld [vmem:[%s550] sm:$0x1]
    %552 = vrot.lane.b32.xlu0 %v551, 51
    %v553 = vpop.permute.xlu0 %552
    %vm554 = vcmask 458136
    %s555 = scalar_lea.vmem [#allocation0], 24
    %556 = vst.msk [vmem:[%s555] sm:$0x1] %vm554, %v553
    %s557 = scalar_lea.vmem %s0, 10
    %v558 = vld [vmem:[%s557] sm:$0x1]
    %559 = vrot.lane.b32.xlu0 %v558, 50
    %v560 = vpop.permute.xlu0 %559
    %vm561 = vcmask 449936
    %562 = vst.msk [vmem:[#allocation0] sm:$0x1] %vm561, %v560
    %s563 = scalar_lea.vmem %s0, 61
    %v564 = vld [vmem:[%s563] sm:$0x1]
    %565 = vrot.lane.b32.xlu0 %v564, 49
    %v566 = vpop.permute.xlu0 %565
    %vm567 = vcmask 441736
    %s568 = scalar_lea.vmem [#allocation0], 16
    %569 = vst.msk [vmem:[%s568] sm:$0x1] %vm567, %v566
    %s570 = scalar_lea.vmem %s0, 112
    %v571 = vld [vmem:[%s570] sm:$0x1]
    %572 = vrot.lane.b32.xlu0 %v571, 48
    %v573 = vpop.permute.xlu0 %572
    %vm574 = vcmask 433536
    %s575 = scalar_lea.vmem [#allocation0], 32
    %576 = vst.msk [vmem:[%s575] sm:$0x1] %vm574, %v573
    %s577 = scalar_lea.vmem %s0, 35
    %v578 = vld [vmem:[%s577] sm:$0x1]
    %579 = vrot.lane.b32.xlu0 %v578, 47
    %v580 = vpop.permute.xlu0 %579
    %vm581 = vcmask 425336
    %s582 = scalar_lea.vmem [#allocation0], 8
    %583 = vst.msk [vmem:[%s582] sm:$0x1] %vm581, %v580
    %s584 = scalar_lea.vmem %s0, 86
    %v585 = vld [vmem:[%s584] sm:$0x1]
    %586 = vrot.lane.b32.xlu0 %v585, 46
    %v587 = vpop.permute.xlu0 %586
    %vm588 = vcmask 417136
    %s589 = scalar_lea.vmem [#allocation0], 24
    %590 = vst.msk [vmem:[%s589] sm:$0x1] %vm588, %v587
    %s591 = scalar_lea.vmem %s0, 9
    %v592 = vld [vmem:[%s591] sm:$0x1]
    %593 = vrot.lane.b32.xlu0 %v592, 45
    %v594 = vpop.permute.xlu0 %593
    %vm595 = vcmask 408936
    %596 = vst.msk [vmem:[#allocation0] sm:$0x1] %vm595, %v594
    %s597 = scalar_lea.vmem %s0, 60
    %v598 = vld [vmem:[%s597] sm:$0x1]
    %599 = vrot.lane.b32.xlu0 %v598, 44
    %v600 = vpop.permute.xlu0 %599
    %vm601 = vcmask 400736
    %s602 = scalar_lea.vmem [#allocation0], 16
    %603 = vst.msk [vmem:[%s602] sm:$0x1] %vm601, %v600
    %s604 = scalar_lea.vmem %s0, 111
    %v605 = vld [vmem:[%s604] sm:$0x1]
    %606 = vrot.lane.b32.xlu0 %v605, 43
    %v607 = vpop.permute.xlu0 %606
    %vm608 = vcmask 392536
    %s609 = scalar_lea.vmem [#allocation0], 32
    %610 = vst.msk [vmem:[%s609] sm:$0x1] %vm608, %v607
    %s611 = scalar_lea.vmem %s0, 34
    %v612 = vld [vmem:[%s611] sm:$0x1]
    %613 = vrot.lane.b32.xlu0 %v612, 42
    %v614 = vpop.permute.xlu0 %613
    %vm615 = vcmask 384336
    %s616 = scalar_lea.vmem [#allocation0], 8
    %617 = vst.msk [vmem:[%s616] sm:$0x1] %vm615, %v614
    %s618 = scalar_lea.vmem %s0, 85
    %v619 = vld [vmem:[%s618] sm:$0x1]
    %620 = vrot.lane.b32.xlu0 %v619, 41
    %v621 = vpop.permute.xlu0 %620
    %vm622 = vcmask 376136
    %s623 = scalar_lea.vmem [#allocation0], 24
    %624 = vst.msk [vmem:[%s623] sm:$0x1] %vm622, %v621
    %s625 = scalar_lea.vmem %s0, 8
    %v626 = vld [vmem:[%s625] sm:$0x1]
    %627 = vrot.lane.b32.xlu0 %v626, 40
    %v628 = vpop.permute.xlu0 %627
    %vm629 = vcmask 367936
    %630 = vst.msk [vmem:[#allocation0] sm:$0x1] %vm629, %v628
    %s631 = scalar_lea.vmem %s0, 59
    %v632 = vld [vmem:[%s631] sm:$0x1]
    %633 = vrot.lane.b32.xlu0 %v632, 39
    %v634 = vpop.permute.xlu0 %633
    %vm635 = vcmask 359736
    %s636 = scalar_lea.vmem [#allocation0], 16
    %637 = vst.msk [vmem:[%s636] sm:$0x1] %vm635, %v634
    %s638 = scalar_lea.vmem %s0, 110
    %v639 = vld [vmem:[%s638] sm:$0x1]
    %640 = vrot.lane.b32.xlu0 %v639, 38
    %v641 = vpop.permute.xlu0 %640
    %vm642 = vcmask 351536
    %s643 = scalar_lea.vmem [#allocation0], 32
    %644 = vst.msk [vmem:[%s643] sm:$0x1] %vm642, %v641
    %s645 = scalar_lea.vmem %s0, 33
    %v646 = vld [vmem:[%s645] sm:$0x1]
    %647 = vrot.lane.b32.xlu0 %v646, 37
    %v648 = vpop.permute.xlu0 %647
    %vm649 = vcmask 343336
    %s650 = scalar_lea.vmem [#allocation0], 8
    %651 = vst.msk [vmem:[%s650] sm:$0x1] %vm649, %v648
    %s652 = scalar_lea.vmem %s0, 84
    %v653 = vld [vmem:[%s652] sm:$0x1]
    %654 = vrot.lane.b32.xlu0 %v653, 36
    %v655 = vpop.permute.xlu0 %654
    %vm656 = vcmask 335136
    %s657 = scalar_lea.vmem [#allocation0], 24
    %658 = vst.msk [vmem:[%s657] sm:$0x1] %vm656, %v655
    %s659 = scalar_lea.vmem %s0, 7
    %v660 = vld [vmem:[%s659] sm:$0x1]
    %661 = vrot.lane.b32.xlu0 %v660, 35
    %v662 = vpop.permute.xlu0 %661
    %vm663 = vcmask 326936
    %664 = vst.msk [vmem:[#allocation0] sm:$0x1] %vm663, %v662
    %s665 = scalar_lea.vmem %s0, 58
    %v666 = vld [vmem:[%s665] sm:$0x1]
    %667 = vrot.lane.b32.xlu0 %v666, 34
    %v668 = vpop.permute.xlu0 %667
    %vm669 = vcmask 318736
    %s670 = scalar_lea.vmem [#allocation0], 16
    %671 = vst.msk [vmem:[%s670] sm:$0x1] %vm669, %v668
    %s672 = scalar_lea.vmem %s0, 109
    %v673 = vld [vmem:[%s672] sm:$0x1]
    %674 = vrot.lane.b32.xlu0 %v673, 33
    %v675 = vpop.permute.xlu0 %674
    %vm676 = vcmask 310536
    %s677 = scalar_lea.vmem [#allocation0], 32
    %678 = vst.msk [vmem:[%s677] sm:$0x1] %vm676, %v675
    %s679 = scalar_lea.vmem %s0, 32
    %v680 = vld [vmem:[%s679] sm:$0x1]
    %681 = vrot.lane.b32.xlu0 %v680, 32
    %v682 = vpop.permute.xlu0 %681
    %vm683 = vcmask 302336
    %s684 = scalar_lea.vmem [#allocation0], 8
    %685 = vst.msk [vmem:[%s684] sm:$0x1] %vm683, %v682
    %s686 = scalar_lea.vmem %s0, 83
    %v687 = vld [vmem:[%s686] sm:$0x1]
    %688 = vrot.lane.b32.xlu0 %v687, 31
    %v689 = vpop.permute.xlu0 %688
    %vm690 = vcmask 294136
    %s691 = scalar_lea.vmem [#allocation0], 24
    %692 = vst.msk [vmem:[%s691] sm:$0x1] %vm690, %v689
    %s693 = scalar_lea.vmem %s0, 6
    %v694 = vld [vmem:[%s693] sm:$0x1]
    %695 = vrot.lane.b32.xlu0 %v694, 30
    %v696 = vpop.permute.xlu0 %695
    %vm697 = vcmask 285936
    %698 = vst.msk [vmem:[#allocation0] sm:$0x1] %vm697, %v696
    %s699 = scalar_lea.vmem %s0, 57
    %v700 = vld [vmem:[%s699] sm:$0x1]
    %701 = vrot.lane.b32.xlu0 %v700, 29
    %v702 = vpop.permute.xlu0 %701
    %vm703 = vcmask 277736
    %s704 = scalar_lea.vmem [#allocation0], 16
    %705 = vst.msk [vmem:[%s704] sm:$0x1] %vm703, %v702
    %s706 = scalar_lea.vmem %s0, 108
    %v707 = vld [vmem:[%s706] sm:$0x1]
    %708 = vrot.lane.b32.xlu0 %v707, 28
    %v709 = vpop.permute.xlu0 %708
    %vm710 = vcmask 269536
    %s711 = scalar_lea.vmem [#allocation0], 32
    %712 = vst.msk [vmem:[%s711] sm:$0x1] %vm710, %v709
    %s713 = scalar_lea.vmem %s0, 31
    %v714 = vld [vmem:[%s713] sm:$0x1]
    %715 = vrot.lane.b32.xlu0 %v714, 27
    %v716 = vpop.permute.xlu0 %715
    %vm717 = vcmask 261336
    %s718 = scalar_lea.vmem [#allocation0], 8
    %719 = vst.msk [vmem:[%s718] sm:$0x1] %vm717, %v716
    %s720 = scalar_lea.vmem %s0, 82
    %v721 = vld [vmem:[%s720] sm:$0x1]
    %722 = vrot.lane.b32.xlu0 %v721, 26
    %v723 = vpop.permute.xlu0 %722
    %vm724 = vcmask 253136
    %s725 = scalar_lea.vmem [#allocation0], 24
    %726 = vst.msk [vmem:[%s725] sm:$0x1] %vm724, %v723
    %s727 = scalar_lea.vmem %s0, 5
    %v728 = vld [vmem:[%s727] sm:$0x1]
    %729 = vrot.lane.b32.xlu0 %v728, 25
    %v730 = vpop.permute.xlu0 %729
    %vm731 = vcmask 244936
    %732 = vst.msk [vmem:[#allocation0] sm:$0x1] %vm731, %v730
    %s733 = scalar_lea.vmem %s0, 56
    %v734 = vld [vmem:[%s733] sm:$0x1]
    %735 = vrot.lane.b32.xlu0 %v734, 24
    %v736 = vpop.permute.xlu0 %735
    %vm737 = vcmask 236736
    %s738 = scalar_lea.vmem [#allocation0], 16
    %739 = vst.msk [vmem:[%s738] sm:$0x1] %vm737, %v736
    %s740 = scalar_lea.vmem %s0, 107
    %v741 = vld [vmem:[%s740] sm:$0x1]
    %742 = vrot.lane.b32.xlu0 %v741, 23
    %v743 = vpop.permute.xlu0 %742
    %vm744 = vcmask 228536
    %s745 = scalar_lea.vmem [#allocation0], 32
    %746 = vst.msk [vmem:[%s745] sm:$0x1] %vm744, %v743
    %s747 = scalar_lea.vmem %s0, 30
    %v748 = vld [vmem:[%s747] sm:$0x1]
    %749 = vrot.lane.b32.xlu0 %v748, 22
    %v750 = vpop.permute.xlu0 %749
    %vm751 = vcmask 220336
    %s752 = scalar_lea.vmem [#allocation0], 8
    %753 = vst.msk [vmem:[%s752] sm:$0x1] %vm751, %v750
    %s754 = scalar_lea.vmem %s0, 81
    %v755 = vld [vmem:[%s754] sm:$0x1]
    %756 = vrot.lane.b32.xlu0 %v755, 21
    %v757 = vpop.permute.xlu0 %756
    %vm758 = vcmask 212136
    %s759 = scalar_lea.vmem [#allocation0], 24
    %760 = vst.msk [vmem:[%s759] sm:$0x1] %vm758, %v757
    %s761 = scalar_lea.vmem %s0, 4
    %v762 = vld [vmem:[%s761] sm:$0x1]
    %763 = vrot.lane.b32.xlu0 %v762, 20
    %v764 = vpop.permute.xlu0 %763
    %vm765 = vcmask 203936
    %766 = vst.msk [vmem:[#allocation0] sm:$0x1] %vm765, %v764
    %s767 = scalar_lea.vmem %s0, 55
    %v768 = vld [vmem:[%s767] sm:$0x1]
    %769 = vrot.lane.b32.xlu0 %v768, 19
    %v770 = vpop.permute.xlu0 %769
    %vm771 = vcmask 195736
    %s772 = scalar_lea.vmem [#allocation0], 16
    %773 = vst.msk [vmem:[%s772] sm:$0x1] %vm771, %v770
    %s774 = scalar_lea.vmem %s0, 106
    %v775 = vld [vmem:[%s774] sm:$0x1]
    %776 = vrot.lane.b32.xlu0 %v775, 18
    %v777 = vpop.permute.xlu0 %776
    %vm778 = vcmask 187536
    %s779 = scalar_lea.vmem [#allocation0], 32
    %780 = vst.msk [vmem:[%s779] sm:$0x1] %vm778, %v777
    %s781 = scalar_lea.vmem %s0, 29
    %v782 = vld [vmem:[%s781] sm:$0x1]
    %783 = vrot.lane.b32.xlu0 %v782, 17
    %v784 = vpop.permute.xlu0 %783
    %vm785 = vcmask 179336
    %s786 = scalar_lea.vmem [#allocation0], 8
    %787 = vst.msk [vmem:[%s786] sm:$0x1] %vm785, %v784
    %s788 = scalar_lea.vmem %s0, 80
    %v789 = vld [vmem:[%s788] sm:$0x1]
    %790 = vrot.lane.b32.xlu0 %v789, 16
    %v791 = vpop.permute.xlu0 %790
    %vm792 = vcmask 171136
    %s793 = scalar_lea.vmem [#allocation0], 24
    %794 = vst.msk [vmem:[%s793] sm:$0x1] %vm792, %v791
    %s795 = scalar_lea.vmem %s0, 3
    %v796 = vld [vmem:[%s795] sm:$0x1]
    %797 = vrot.lane.b32.xlu0 %v796, 15
    %v798 = vpop.permute.xlu0 %797
    %vm799 = vcmask 162936
    %800 = vst.msk [vmem:[#allocation0] sm:$0x1] %vm799, %v798
    %s801 = scalar_lea.vmem %s0, 54
    %v802 = vld [vmem:[%s801] sm:$0x1]
    %803 = vrot.lane.b32.xlu0 %v802, 14
    %v804 = vpop.permute.xlu0 %803
    %vm805 = vcmask 154736
    %s806 = scalar_lea.vmem [#allocation0], 16
    %807 = vst.msk [vmem:[%s806] sm:$0x1] %vm805, %v804
    %s808 = scalar_lea.vmem %s0, 105
    %v809 = vld [vmem:[%s808] sm:$0x1]
    %810 = vrot.lane.b32.xlu0 %v809, 13
    %v811 = vpop.permute.xlu0 %810
    %vm812 = vcmask 146536
    %s813 = scalar_lea.vmem [#allocation0], 32
    %814 = vst.msk [vmem:[%s813] sm:$0x1] %vm812, %v811
    %s815 = scalar_lea.vmem %s0, 28
    %v816 = vld [vmem:[%s815] sm:$0x1]
    %817 = vrot.lane.b32.xlu0 %v816, 12
    %v818 = vpop.permute.xlu0 %817
    %vm819 = vcmask 138336
    %s820 = scalar_lea.vmem [#allocation0], 8
    %821 = vst.msk [vmem:[%s820] sm:$0x1] %vm819, %v818
    %s822 = scalar_lea.vmem %s0, 79
    %v823 = vld [vmem:[%s822] sm:$0x1]
    %824 = vrot.lane.b32.xlu0 %v823, 11
    %v825 = vpop.permute.xlu0 %824
    %vm826 = vcmask 130136
    %s827 = scalar_lea.vmem [#allocation0], 24
    %828 = vst.msk [vmem:[%s827] sm:$0x1] %vm826, %v825
    %s829 = scalar_lea.vmem %s0, 2
    %v830 = vld [vmem:[%s829] sm:$0x1]
    %831 = vrot.lane.b32.xlu0 %v830, 10
    %v832 = vpop.permute.xlu0 %831
    %vm833 = vcmask 121936
    %834 = vst.msk [vmem:[#allocation0] sm:$0x1] %vm833, %v832
    %s835 = scalar_lea.vmem %s0, 53
    %v836 = vld [vmem:[%s835] sm:$0x1]
    %837 = vrot.lane.b32.xlu0 %v836, 9
    %v838 = vpop.permute.xlu0 %837
    %vm839 = vcmask 113736
    %s840 = scalar_lea.vmem [#allocation0], 16
    %841 = vst.msk [vmem:[%s840] sm:$0x1] %vm839, %v838
    %s842 = scalar_lea.vmem %s0, 104
    %v843 = vld [vmem:[%s842] sm:$0x1]
    %844 = vrot.lane.b32.xlu0 %v843, 8
    %v845 = vpop.permute.xlu0 %844
    %vm846 = vcmask 105536
    %s847 = scalar_lea.vmem [#allocation0], 32
    %848 = vst.msk [vmem:[%s847] sm:$0x1] %vm846, %v845
    %s849 = scalar_lea.vmem %s0, 27
    %v850 = vld [vmem:[%s849] sm:$0x1]
    %851 = vrot.lane.b32.xlu0 %v850, 7
    %v852 = vpop.permute.xlu0 %851
    %vm853 = vcmask 97336
    %s854 = scalar_lea.vmem [#allocation0], 8
    %855 = vst.msk [vmem:[%s854] sm:$0x1] %vm853, %v852
    %s856 = scalar_lea.vmem %s0, 78
    %v857 = vld [vmem:[%s856] sm:$0x1]
    %858 = vrot.lane.b32.xlu0 %v857, 6
    %v859 = vpop.permute.xlu0 %858
    %vm860 = vcmask 89136
    %s861 = scalar_lea.vmem [#allocation0], 24
    %862 = vst.msk [vmem:[%s861] sm:$0x1] %vm860, %v859
    %s863 = scalar_lea.vmem %s0, 1
    %v864 = vld [vmem:[%s863] sm:$0x1]
    %865 = vrot.lane.b32.xlu0 %v864, 5
    %v866 = vpop.permute.xlu0 %865
    %vm867 = vcmask 80936
    %868 = vst.msk [vmem:[#allocation0] sm:$0x1] %vm867, %v866
    %s869 = scalar_lea.vmem %s0, 52
    %v870 = vld [vmem:[%s869] sm:$0x1]
    %871 = vrot.lane.b32.xlu0 %v870, 4
    %v872 = vpop.permute.xlu0 %871
    %vm873 = vcmask 72736
    %s874 = scalar_lea.vmem [#allocation0], 16
    %875 = vst.msk [vmem:[%s874] sm:$0x1] %vm873, %v872
    %s876 = scalar_lea.vmem %s0, 103
    %v877 = vld [vmem:[%s876] sm:$0x1]
    %878 = vrot.lane.b32.xlu0 %v877, 3
    %v879 = vpop.permute.xlu0 %878
    %vm880 = vcmask 64536
    %s881 = scalar_lea.vmem [#allocation0], 32
    %882 = vst.msk [vmem:[%s881] sm:$0x1] %vm880, %v879
    %s883 = scalar_lea.vmem %s0, 26
    %v884 = vld [vmem:[%s883] sm:$0x1]
    %885 = vrot.lane.b32.xlu0 %v884, 2
    %v886 = vpop.permute.xlu0 %885
    %vm887 = vcmask 56336
    %s888 = scalar_lea.vmem [#allocation0], 8
    %889 = vst.msk [vmem:[%s888] sm:$0x1] %vm887, %v886
    %s890 = scalar_lea.vmem %s0, 77
    %v891 = vld [vmem:[%s890] sm:$0x1]
    %892 = vrot.lane.b32.xlu0 %v891, 1
    %v893 = vpop.permute.xlu0 %892
    %vm894 = vcmask 48136
    %s895 = scalar_lea.vmem [#allocation0], 24
    %896 = vst.msk [vmem:[%s895] sm:$0x1] %vm894, %v893
    %s898 = sshll.u32 1, 1
    %s899 = ssub.s32 %s898, 1
    %v901 = vld [vmem:[#allocation0] sm:%s899]
    %s902 = sshll.u32 1, 1
    %s903 = ssub.s32 %s902, 1
    %904 = vst [vmem:[%s1] sm:%s903] %v901
    %s905 = scalar_lea.vmem [#allocation0], 8
    %v906 = vld [vmem:[%s905] sm:%s899]
    %s907 = sshll.u32 1, 1
    %s908 = ssub.s32 %s907, 1
    %s909 = scalar_lea.vmem %s1, 1
    %910 = vst [vmem:[%s909] sm:%s908] %v906
    %s911 = scalar_lea.vmem [#allocation0], 16
    %v912 = vld [vmem:[%s911] sm:%s899]
    %s913 = sshll.u32 1, 1
    %s914 = ssub.s32 %s913, 1
    %s915 = smul.addr 1, 2
    %s916 = scalar_lea.vmem %s1, %s915
    %917 = vst [vmem:[%s916] sm:%s914] %v912
    %s918 = scalar_lea.vmem [#allocation0], 24
    %v919 = vld [vmem:[%s918] sm:%s899]
    %s920 = sshll.u32 1, 1
    %s921 = ssub.s32 %s920, 1
    %s922 = smul.addr 1, 3
    %s923 = scalar_lea.vmem %s1, %s922
    %924 = vst [vmem:[%s923] sm:%s921] %v919
    %s925 = scalar_lea.vmem [#allocation0], 32
    %v926 = vld [vmem:[%s925] sm:%s899]
    %s927 = sshll.u32 1, 1
    %s928 = ssub.s32 %s927, 1
    %s929 = smul.addr 1, 4
    %s930 = scalar_lea.vmem %s1, %s929
    %931 = vst [vmem:[%s930] sm:%s928] %v926

// kernel: student_model_forward.1
$region0: #{student_model_forward.1}
  #allocation0 [shape = 'u32[]', space=smem, size = 0x4, offset = 0x4, fixed_abs, tag = 'smem constant byte address 0x4 - core index']
  #allocation1 [shape = 'u32[144,128]{1,0:T(1,128)}', space=vmem, size = 0x12000, scoped, tag = 'internal scratch']
  %s0 = inlined_call_operand.vmem [shape: f32[1,1280], index: 0, kind: input, shape index: {}]
  %s1 = inlined_call_operand.vmem [shape: f32[1280,640], index: 1, kind: input, shape index: {}]
  %s2 = inlined_call_operand.vmem [shape: f32[1,640], index: 2, kind: input, shape index: {}]
  %s3 = inlined_call_operand.vmem [shape: f32[640,1280], index: 3, kind: input, shape index: {}]
  %s4 = inlined_call_operand.vmem [shape: f32[1,1280], index: 4, kind: input, shape index: {}]
  %s5 = inlined_call_operand.vmem [shape: f32[1,1280], index: 5, kind: output, shape index: {}]
  %s6 = sld [smem:[#allocation0]]
  $region30: #{student_model_forward.1} parent=0
    _
  %s8 = ssub.s32 1, %s6
  %s9 = scalar_select 0, %s8, %s6
  // Predicated region
  $region2: #{student_model_forward.1} parent=0 // pred_check
    _
  $region3: #{student_model_forward.1} parent=0 // pred_check_branch
    %11 = sbr.rel (0) target = $region5
  $region4: #{student_model_forward.1} parent=0 // pred_region
    _
  $region5: #{student_model_forward.1} parent=0 // pred_fallthru
    _
  // Predicated region
  $region6: #{student_model_forward.1} parent=0 // pred_check
    _
  $region7: #{student_model_forward.1} parent=0 // pred_check_branch
    %13 = sbr.rel (0) target = $region9
  $region8: #{student_model_forward.1} parent=0 // pred_region
    _
  $region9: #{student_model_forward.1} parent=0 // pred_fallthru
    _
  // Predicated region
  $region10: #{student_model_forward.1} parent=0 // pred_check
    _
  $region11: #{student_model_forward.1} parent=0 // pred_check_branch
    %15 = sbr.rel (0) target = $region13
  $region12: #{student_model_forward.1} parent=0 // pred_region
    _
  $region13: #{student_model_forward.1} parent=0 // pred_fallthru
    _
  // Predicated region
  $region14: #{student_model_forward.1} parent=0 // pred_check
    _
  $region15: #{student_model_forward.1} parent=0 // pred_check_branch
    %17 = sbr.rel (0) target = $region17
  $region16: #{student_model_forward.1} parent=0 // pred_region
    _
  $region17: #{student_model_forward.1} parent=0 // pred_fallthru
    _
  // Predicated region
  $region18: #{student_model_forward.1} parent=0 // pred_check
    _
  $region19: #{student_model_forward.1} parent=0 // pred_check_branch
    %19 = sbr.rel (0) target = $region21
  $region20: #{student_model_forward.1} parent=0 // pred_region
    _
  $region21: #{student_model_forward.1} parent=0 // pred_fallthru
    _
  %v20 = vld [vmem:[%s0] sm:$0xff]
  %v21 = vld [vmem:[%s0 + $0x8] sm:$0x3]
  %v22 = vld [vmem:[%s1] sm:$0xff]
  %v23 = vld [vmem:[%s1 + $0x8] sm:$0xff]
  %v24 = vld [vmem:[%s1 + $0x10] sm:$0xff]
  %v25 = vld [vmem:[%s1 + $0x18] sm:$0xff]
  %v26 = vld [vmem:[%s1 + $0x20] sm:$0xff]
  %v27 = vld [vmem:[%s1 + $0x28] sm:$0xff]
  %v28 = vld [vmem:[%s1 + $0x30] sm:$0xff]
  %v29 = vld [vmem:[%s1 + $0x38] sm:$0xff]
  %v30 = vld [vmem:[%s1 + $0x40] sm:$0xff]
  %v31 = vld [vmem:[%s1 + $0x48] sm:$0xff]
  %v32 = vld [vmem:[%s1 + $0x50] sm:$0xff]
  %v33 = vld [vmem:[%s1 + $0x58] sm:$0xff]
  %v34 = vld [vmem:[%s1 + $0x60] sm:$0xff]
  %v35 = vld [vmem:[%s1 + $0x68] sm:$0xff]
  %v36 = vld [vmem:[%s1 + $0x70] sm:$0xff]
  %v37 = vld [vmem:[%s1 + $0x78] sm:$0xff]
  %v38 = vld [vmem:[%s1 + $0x80] sm:$0xff]
  %v39 = vld [vmem:[%s1 + $0x88] sm:$0xff]
  %v40 = vld [vmem:[%s1 + $0x90] sm:$0xff]
  %v41 = vld [vmem:[%s1 + $0x98] sm:$0xff]
  %v42 = vld [vmem:[%s1 + $0xa0] sm:$0xff]
  %v43 = vld [vmem:[%s1 + $0xa8] sm:$0xff]
  %v44 = vld [vmem:[%s1 + $0xb0] sm:$0xff]
  %v45 = vld [vmem:[%s1 + $0xb8] sm:$0xff]
  %v46 = vld [vmem:[%s1 + $0xc0] sm:$0xff]
  %v47 = vld [vmem:[%s1 + $0xc8] sm:$0xff]
  %v48 = vld [vmem:[%s1 + $0xd0] sm:$0xff]
  %v49 = vld [vmem:[%s1 + $0xd8] sm:$0xff]
  %v50 = vld [vmem:[%s1 + $0xe0] sm:$0xff]
  %v51 = vld [vmem:[%s1 + $0xe8] sm:$0xff]
  %v52 = vld [vmem:[%s1 + $0xf0] sm:$0xff]
  %v53 = vld [vmem:[%s1 + $0xf8] sm:$0xff]
  %v54 = vld [vmem:[%s1 + $0x100] sm:$0xff]
  %v55 = vld [vmem:[%s1 + $0x108] sm:$0xff]
  %v56 = vld [vmem:[%s1 + $0x110] sm:$0xff]
  %v57 = vld [vmem:[%s1 + $0x118] sm:$0xff]
  %v58 = vld [vmem:[%s1 + $0x120] sm:$0xff]
  %v59 = vld [vmem:[%s1 + $0x128] sm:$0xff]
  %v60 = vld [vmem:[%s1 + $0x130] sm:$0xff]
  %v61 = vld [vmem:[%s1 + $0x138] sm:$0xff]
  %v62 = vld [vmem:[%s1 + $0x140] sm:$0xff]
  %v63 = vld [vmem:[%s1 + $0x148] sm:$0xff]
  %v64 = vld [vmem:[%s1 + $0x150] sm:$0xff]
  %v65 = vld [vmem:[%s1 + $0x158] sm:$0xff]
  %v66 = vld [vmem:[%s1 + $0x160] sm:$0xff]
  %v67 = vld [vmem:[%s1 + $0x168] sm:$0xff]
  %v68 = vld [vmem:[%s1 + $0x170] sm:$0xff]
  %v69 = vld [vmem:[%s1 + $0x178] sm:$0xff]
  %v70 = vld [vmem:[%s1 + $0x180] sm:$0xff]
  %v71 = vld [vmem:[%s1 + $0x188] sm:$0xff]
  %v72 = vld [vmem:[%s1 + $0x190] sm:$0xff]
  %v73 = vld [vmem:[%s1 + $0x198] sm:$0xff]
  %v74 = vld [vmem:[%s1 + $0x1a0] sm:$0xff]
  %v75 = vld [vmem:[%s1 + $0x1a8] sm:$0xff]
  %v76 = vld [vmem:[%s1 + $0x1b0] sm:$0xff]
  %v77 = vld [vmem:[%s1 + $0x1b8] sm:$0xff]
  %v78 = vld [vmem:[%s1 + $0x1c0] sm:$0xff]
  %v79 = vld [vmem:[%s1 + $0x1c8] sm:$0xff]
  %v80 = vld [vmem:[%s1 + $0x1d0] sm:$0xff]
  %v81 = vld [vmem:[%s1 + $0x1d8] sm:$0xff]
  %v82 = vld [vmem:[%s1 + $0x1e0] sm:$0xff]
  %v83 = vld [vmem:[%s1 + $0x1e8] sm:$0xff]
  %v84 = vld [vmem:[%s1 + $0x1f0] sm:$0xff]
  %v85 = vld [vmem:[%s1 + $0x1f8] sm:$0xff]
  %v86 = vld [vmem:[%s1 + $0x200] sm:$0xff]
  %v87 = vld [vmem:[%s1 + $0x208] sm:$0xff]
  %v88 = vld [vmem:[%s1 + $0x210] sm:$0xff]
  %v89 = vld [vmem:[%s1 + $0x218] sm:$0xff]
  %v90 = vld [vmem:[%s1 + $0x220] sm:$0xff]
  %v91 = vld [vmem:[%s1 + $0x228] sm:$0xff]
  %v92 = vld [vmem:[%s1 + $0x230] sm:$0xff]
  %v93 = vld [vmem:[%s1 + $0x238] sm:$0xff]
  %v94 = vld [vmem:[%s1 + $0x240] sm:$0xff]
  %v95 = vld [vmem:[%s1 + $0x248] sm:$0xff]
  %v96 = vld [vmem:[%s1 + $0x250] sm:$0xff]
  %v97 = vld [vmem:[%s1 + $0x258] sm:$0xff]
  %v98 = vld [vmem:[%s1 + $0x260] sm:$0xff]
  %v99 = vld [vmem:[%s1 + $0x268] sm:$0xff]
  %v100 = vld [vmem:[%s1 + $0x270] sm:$0xff]
  %v101 = vld [vmem:[%s1 + $0x278] sm:$0xff]
  %v102 = vld [vmem:[%s1 + $0x280] sm:$0xff]
  %v103 = vld [vmem:[%s1 + $0x288] sm:$0xff]
  %v104 = vld [vmem:[%s1 + $0x290] sm:$0xff]
  %v105 = vld [vmem:[%s1 + $0x298] sm:$0xff]
  %v106 = vld [vmem:[%s1 + $0x2a0] sm:$0xff]
  %v107 = vld [vmem:[%s1 + $0x2a8] sm:$0xff]
  %v108 = vld [vmem:[%s1 + $0x2b0] sm:$0xff]
  %v109 = vld [vmem:[%s1 + $0x2b8] sm:$0xff]
  %v110 = vld [vmem:[%s1 + $0x2c0] sm:$0xff]
  %v111 = vld [vmem:[%s1 + $0x2c8] sm:$0xff]
  %v112 = vld [vmem:[%s1 + $0x2d0] sm:$0xff]
  %v113 = vld [vmem:[%s1 + $0x2d8] sm:$0xff]
  %v114 = vld [vmem:[%s1 + $0x2e0] sm:$0xff]
  %v115 = vld [vmem:[%s1 + $0x2e8] sm:$0xff]
  %v116 = vld [vmem:[%s1 + $0x2f0] sm:$0xff]
  %v117 = vld [vmem:[%s1 + $0x2f8] sm:$0xff]
  %v118 = vld [vmem:[%s1 + $0x300] sm:$0xff]
  %v119 = vld [vmem:[%s1 + $0x308] sm:$0xff]
  %v120 = vld [vmem:[%s1 + $0x310] sm:$0xff]
  %v121 = vld [vmem:[%s1 + $0x318] sm:$0xff]
  %v122 = vld [vmem:[%s1 + $0x320] sm:$0xff]
  %v123 = vld [vmem:[%s1 + $0x328] sm:$0xff]
  %v124 = vld [vmem:[%s1 + $0x330] sm:$0xff]
  %v125 = vld [vmem:[%s1 + $0x338] sm:$0xff]
  %v126 = vld [vmem:[%s1 + $0x340] sm:$0xff]
  %v127 = vld [vmem:[%s1 + $0x348] sm:$0xff]
  %v128 = vld [vmem:[%s1 + $0x350] sm:$0xff]
  %v129 = vld [vmem:[%s1 + $0x358] sm:$0xff]
  %v130 = vld [vmem:[%s1 + $0x360] sm:$0xff]
  %v131 = vld [vmem:[%s1 + $0x368] sm:$0xff]
  %v132 = vld [vmem:[%s1 + $0x370] sm:$0xff]
  %v133 = vld [vmem:[%s1 + $0x378] sm:$0xff]
  %v134 = vld [vmem:[%s1 + $0x380] sm:$0xff]
  %v135 = vld [vmem:[%s1 + $0x388] sm:$0xff]
  %v136 = vld [vmem:[%s1 + $0x390] sm:$0xff]
  %v137 = vld [vmem:[%s1 + $0x398] sm:$0xff]
  %v138 = vld [vmem:[%s1 + $0x3a0] sm:$0xff]
  %v139 = vld [vmem:[%s1 + $0x3a8] sm:$0xff]
  %v140 = vld [vmem:[%s1 + $0x3b0] sm:$0xff]
  %v141 = vld [vmem:[%s1 + $0x3b8] sm:$0xff]
  %v142 = vld [vmem:[%s1 + $0x3c0] sm:$0xff]
  %v143 = vld [vmem:[%s1 + $0x3c8] sm:$0xff]
  %v144 = vld [vmem:[%s1 + $0x3d0] sm:$0xff]
  %v145 = vld [vmem:[%s1 + $0x3d8] sm:$0xff]
  %v146 = vld [vmem:[%s1 + $0x3e0] sm:$0xff]
  %v147 = vld [vmem:[%s1 + $0x3e8] sm:$0xff]
  %v148 = vld [vmem:[%s1 + $0x3f0] sm:$0xff]
  %v149 = vld [vmem:[%s1 + $0x3f8] sm:$0xff]
  %v150 = vld [vmem:[%s1 + $0x400] sm:$0xff]
  %v151 = vld [vmem:[%s1 + $0x408] sm:$0xff]
  %v152 = vld [vmem:[%s1 + $0x410] sm:$0xff]
  %v153 = vld [vmem:[%s1 + $0x418] sm:$0xff]
  %v154 = vld [vmem:[%s1 + $0x420] sm:$0xff]
  %v155 = vld [vmem:[%s1 + $0x428] sm:$0xff]
  %v156 = vld [vmem:[%s1 + $0x430] sm:$0xff]
  %v157 = vld [vmem:[%s1 + $0x438] sm:$0xff]
  %v158 = vld [vmem:[%s1 + $0x440] sm:$0xff]
  %v159 = vld [vmem:[%s1 + $0x448] sm:$0xff]
  %v160 = vld [vmem:[%s1 + $0x450] sm:$0xff]
  %v161 = vld [vmem:[%s1 + $0x458] sm:$0xff]
  %v162 = vld [vmem:[%s1 + $0x460] sm:$0xff]
  %v163 = vld [vmem:[%s1 + $0x468] sm:$0xff]
  %v164 = vld [vmem:[%s1 + $0x470] sm:$0xff]
  %v165 = vld [vmem:[%s1 + $0x478] sm:$0xff]
  %v166 = vld [vmem:[%s1 + $0x480] sm:$0xff]
  %v167 = vld [vmem:[%s1 + $0x488] sm:$0xff]
  %v168 = vld [vmem:[%s1 + $0x490] sm:$0xff]
  %v169 = vld [vmem:[%s1 + $0x498] sm:$0xff]
  %v170 = vld [vmem:[%s1 + $0x4a0] sm:$0xff]
  %v171 = vld [vmem:[%s1 + $0x4a8] sm:$0xff]
  %v172 = vld [vmem:[%s1 + $0x4b0] sm:$0xff]
  %v173 = vld [vmem:[%s1 + $0x4b8] sm:$0xff]
  %v174 = vld [vmem:[%s1 + $0x4c0] sm:$0xff]
  %v175 = vld [vmem:[%s1 + $0x4c8] sm:$0xff]
  %v176 = vld [vmem:[%s1 + $0x4d0] sm:$0xff]
  %v177 = vld [vmem:[%s1 + $0x4d8] sm:$0xff]
  %v178 = vld [vmem:[%s1 + $0x4e0] sm:$0xff]
  %v179 = vld [vmem:[%s1 + $0x4e8] sm:$0xff]
  %v180 = vld [vmem:[%s1 + $0x4f0] sm:$0xff]
  %v181 = vld [vmem:[%s1 + $0x4f8] sm:$0xff]
  %v182 = vld [vmem:[%s1 + $0x500] sm:$0xff]
  %v183 = vld [vmem:[%s1 + $0x508] sm:$0xff]
  %v184 = vld [vmem:[%s1 + $0x510] sm:$0xff]
  %v185 = vld [vmem:[%s1 + $0x518] sm:$0xff]
  %v186 = vld [vmem:[%s1 + $0x520] sm:$0xff]
  %v187 = vld [vmem:[%s1 + $0x528] sm:$0xff]
  %v188 = vld [vmem:[%s1 + $0x530] sm:$0xff]
  %v189 = vld [vmem:[%s1 + $0x538] sm:$0xff]
  %v190 = vld [vmem:[%s1 + $0x540] sm:$0xff]
  %v191 = vld [vmem:[%s1 + $0x548] sm:$0xff]
  %v192 = vld [vmem:[%s1 + $0x550] sm:$0xff]
  %v193 = vld [vmem:[%s1 + $0x558] sm:$0xff]
  %v194 = vld [vmem:[%s1 + $0x560] sm:$0xff]
  %v195 = vld [vmem:[%s1 + $0x568] sm:$0xff]
  %v196 = vld [vmem:[%s1 + $0x570] sm:$0xff]
  %v197 = vld [vmem:[%s1 + $0x578] sm:$0xff]
  %v198 = vld [vmem:[%s1 + $0x580] sm:$0xff]
  %v199 = vld [vmem:[%s1 + $0x588] sm:$0xff]
  %v200 = vld [vmem:[%s1 + $0x590] sm:$0xff]
  %v201 = vld [vmem:[%s1 + $0x598] sm:$0xff]
  %v202 = vld [vmem:[%s1 + $0x5a0] sm:$0xff]
  %v203 = vld [vmem:[%s1 + $0x5a8] sm:$0xff]
  %v204 = vld [vmem:[%s1 + $0x5b0] sm:$0xff]
  %v205 = vld [vmem:[%s1 + $0x5b8] sm:$0xff]
  %v206 = vld [vmem:[%s1 + $0x5c0] sm:$0xff]
  %v207 = vld [vmem:[%s1 + $0x5c8] sm:$0xff]
  %v208 = vld [vmem:[%s1 + $0x5d0] sm:$0xff]
  %v209 = vld [vmem:[%s1 + $0x5d8] sm:$0xff]
  %v210 = vld [vmem:[%s1 + $0x5e0] sm:$0xff]
  %v211 = vld [vmem:[%s1 + $0x5e8] sm:$0xff]
  %v212 = vld [vmem:[%s1 + $0x5f0] sm:$0xff]
  %v213 = vld [vmem:[%s1 + $0x5f8] sm:$0xff]
  %v214 = vld [vmem:[%s1 + $0x600] sm:$0xff]
  %v215 = vld [vmem:[%s1 + $0x608] sm:$0xff]
  %v216 = vld [vmem:[%s1 + $0x610] sm:$0xff]
  %v217 = vld [vmem:[%s1 + $0x618] sm:$0xff]
  %v218 = vld [vmem:[%s1 + $0x620] sm:$0xff]
  %v219 = vld [vmem:[%s1 + $0x628] sm:$0xff]
  %v220 = vld [vmem:[%s1 + $0x630] sm:$0xff]
  %v221 = vld [vmem:[%s1 + $0x638] sm:$0xff]
  %v222 = vld [vmem:[%s1 + $0x640] sm:$0xff]
  %v223 = vld [vmem:[%s1 + $0x648] sm:$0xff]
  %v224 = vld [vmem:[%s1 + $0x650] sm:$0xff]
  %v225 = vld [vmem:[%s1 + $0x658] sm:$0xff]
  %v226 = vld [vmem:[%s1 + $0x660] sm:$0xff]
  %v227 = vld [vmem:[%s1 + $0x668] sm:$0xff]
  %v228 = vld [vmem:[%s1 + $0x670] sm:$0xff]
  %v229 = vld [vmem:[%s1 + $0x678] sm:$0xff]
  %v230 = vld [vmem:[%s1 + $0x680] sm:$0xff]
  %v231 = vld [vmem:[%s1 + $0x688] sm:$0xff]
  %v232 = vld [vmem:[%s1 + $0x690] sm:$0xff]
  %v233 = vld [vmem:[%s1 + $0x698] sm:$0xff]
  %v234 = vld [vmem:[%s1 + $0x6a0] sm:$0xff]
  %v235 = vld [vmem:[%s1 + $0x6a8] sm:$0xff]
  %v236 = vld [vmem:[%s1 + $0x6b0] sm:$0xff]
  %v237 = vld [vmem:[%s1 + $0x6b8] sm:$0xff]
  %v238 = vld [vmem:[%s1 + $0x6c0] sm:$0xff]
  %v239 = vld [vmem:[%s1 + $0x6c8] sm:$0xff]
  %v240 = vld [vmem:[%s1 + $0x6d0] sm:$0xff]
  %v241 = vld [vmem:[%s1 + $0x6d8] sm:$0xff]
  %v242 = vld [vmem:[%s1 + $0x6e0] sm:$0xff]
  %v243 = vld [vmem:[%s1 + $0x6e8] sm:$0xff]
  %v244 = vld [vmem:[%s1 + $0x6f0] sm:$0xff]
  %v245 = vld [vmem:[%s1 + $0x6f8] sm:$0xff]
  %v246 = vld [vmem:[%s1 + $0x700] sm:$0xff]
  %v247 = vld [vmem:[%s1 + $0x708] sm:$0xff]
  %v248 = vld [vmem:[%s1 + $0x710] sm:$0xff]
  %v249 = vld [vmem:[%s1 + $0x718] sm:$0xff]
  %v250 = vld [vmem:[%s1 + $0x720] sm:$0xff]
  %v251 = vld [vmem:[%s1 + $0x728] sm:$0xff]
  %v252 = vld [vmem:[%s1 + $0x730] sm:$0xff]
  %v253 = vld [vmem:[%s1 + $0x738] sm:$0xff]
  %v254 = vld [vmem:[%s1 + $0x740] sm:$0xff]
  %v255 = vld [vmem:[%s1 + $0x748] sm:$0xff]
  %v256 = vld [vmem:[%s1 + $0x750] sm:$0xff]
  %v257 = vld [vmem:[%s1 + $0x758] sm:$0xff]
  %v258 = vld [vmem:[%s1 + $0x760] sm:$0xff]
  %v259 = vld [vmem:[%s1 + $0x768] sm:$0xff]
  %v260 = vld [vmem:[%s1 + $0x770] sm:$0xff]
  %v261 = vld [vmem:[%s1 + $0x778] sm:$0xff]
  %v262 = vld [vmem:[%s1 + $0x780] sm:$0xff]
  %v263 = vld [vmem:[%s1 + $0x788] sm:$0xff]
  %v264 = vld [vmem:[%s1 + $0x790] sm:$0xff]
  %v265 = vld [vmem:[%s1 + $0x798] sm:$0xff]
  %v266 = vld [vmem:[%s1 + $0x7a0] sm:$0xff]
  %v267 = vld [vmem:[%s1 + $0x7a8] sm:$0xff]
  %v268 = vld [vmem:[%s1 + $0x7b0] sm:$0xff]
  %v269 = vld [vmem:[%s1 + $0x7b8] sm:$0xff]
  %v270 = vld [vmem:[%s1 + $0x7c0] sm:$0xff]
  %v271 = vld [vmem:[%s1 + $0x7c8] sm:$0xff]
  %v272 = vld [vmem:[%s1 + $0x7d0] sm:$0xff]
  %v273 = vld [vmem:[%s1 + $0x7d8] sm:$0xff]
  %v274 = vld [vmem:[%s1 + $0x7e0] sm:$0xff]
  %v275 = vld [vmem:[%s1 + $0x7e8] sm:$0xff]
  %v276 = vld [vmem:[%s1 + $0x7f0] sm:$0xff]
  %v277 = vld [vmem:[%s1 + $0x7f8] sm:$0xff]
  %v278 = vld [vmem:[%s1 + $0x800] sm:$0xff]
  %v279 = vld [vmem:[%s1 + $0x808] sm:$0xff]
  %v280 = vld [vmem:[%s1 + $0x810] sm:$0xff]
  %v281 = vld [vmem:[%s1 + $0x818] sm:$0xff]
  %v282 = vld [vmem:[%s1 + $0x820] sm:$0xff]
  %v283 = vld [vmem:[%s1 + $0x828] sm:$0xff]
  %v284 = vld [vmem:[%s1 + $0x830] sm:$0xff]
  %v285 = vld [vmem:[%s1 + $0x838] sm:$0xff]
  %v286 = vld [vmem:[%s1 + $0x840] sm:$0xff]
  %v287 = vld [vmem:[%s1 + $0x848] sm:$0xff]
  %v288 = vld [vmem:[%s1 + $0x850] sm:$0xff]
  %v289 = vld [vmem:[%s1 + $0x858] sm:$0xff]
  %v290 = vld [vmem:[%s1 + $0x860] sm:$0xff]
  %v291 = vld [vmem:[%s1 + $0x868] sm:$0xff]
  %v292 = vld [vmem:[%s1 + $0x870] sm:$0xff]
  %v293 = vld [vmem:[%s1 + $0x878] sm:$0xff]
  %v294 = vld [vmem:[%s1 + $0x880] sm:$0xff]
  %v295 = vld [vmem:[%s1 + $0x888] sm:$0xff]
  %v296 = vld [vmem:[%s1 + $0x890] sm:$0xff]
  %v297 = vld [vmem:[%s1 + $0x898] sm:$0xff]
  %v298 = vld [vmem:[%s1 + $0x8a0] sm:$0xff]
  %v299 = vld [vmem:[%s1 + $0x8a8] sm:$0xff]
  %v300 = vld [vmem:[%s1 + $0x8b0] sm:$0xff]
  %v301 = vld [vmem:[%s1 + $0x8b8] sm:$0xff]
  %v302 = vld [vmem:[%s1 + $0x8c0] sm:$0xff]
  %v303 = vld [vmem:[%s1 + $0x8c8] sm:$0xff]
  %v304 = vld [vmem:[%s1 + $0x8d0] sm:$0xff]
  %v305 = vld [vmem:[%s1 + $0x8d8] sm:$0xff]
  %v306 = vld [vmem:[%s1 + $0x8e0] sm:$0xff]
  %v307 = vld [vmem:[%s1 + $0x8e8] sm:$0xff]
  %v308 = vld [vmem:[%s1 + $0x8f0] sm:$0xff]
  %v309 = vld [vmem:[%s1 + $0x8f8] sm:$0xff]
  %v310 = vld [vmem:[%s1 + $0x900] sm:$0xff]
  %v311 = vld [vmem:[%s1 + $0x908] sm:$0xff]
  %v312 = vld [vmem:[%s1 + $0x910] sm:$0xff]
  %v313 = vld [vmem:[%s1 + $0x918] sm:$0xff]
  %v314 = vld [vmem:[%s1 + $0x920] sm:$0xff]
  %v315 = vld [vmem:[%s1 + $0x928] sm:$0xff]
  %v316 = vld [vmem:[%s1 + $0x930] sm:$0xff]
  %v317 = vld [vmem:[%s1 + $0x938] sm:$0xff]
  %v318 = vld [vmem:[%s1 + $0x940] sm:$0xff]
  %v319 = vld [vmem:[%s1 + $0x948] sm:$0xff]
  %v320 = vld [vmem:[%s1 + $0x950] sm:$0xff]
  %v321 = vld [vmem:[%s1 + $0x958] sm:$0xff]
  %v322 = vld [vmem:[%s1 + $0x960] sm:$0xff]
  %v323 = vld [vmem:[%s1 + $0x968] sm:$0xff]
  %v324 = vld [vmem:[%s1 + $0x970] sm:$0xff]
  %v325 = vld [vmem:[%s1 + $0x978] sm:$0xff]
  %v326 = vld [vmem:[%s1 + $0x980] sm:$0xff]
  %v327 = vld [vmem:[%s1 + $0x988] sm:$0xff]
  %v328 = vld [vmem:[%s1 + $0x990] sm:$0xff]
  %v329 = vld [vmem:[%s1 + $0x998] sm:$0xff]
  %v330 = vld [vmem:[%s1 + $0x9a0] sm:$0xff]
  %v331 = vld [vmem:[%s1 + $0x9a8] sm:$0xff]
  %v332 = vld [vmem:[%s1 + $0x9b0] sm:$0xff]
  %v333 = vld [vmem:[%s1 + $0x9b8] sm:$0xff]
  %v334 = vld [vmem:[%s1 + $0x9c0] sm:$0xff]
  %v335 = vld [vmem:[%s1 + $0x9c8] sm:$0xff]
  %v336 = vld [vmem:[%s1 + $0x9d0] sm:$0xff]
  %v337 = vld [vmem:[%s1 + $0x9d8] sm:$0xff]
  %v338 = vld [vmem:[%s1 + $0x9e0] sm:$0xff]
  %v339 = vld [vmem:[%s1 + $0x9e8] sm:$0xff]
  %v340 = vld [vmem:[%s1 + $0x9f0] sm:$0xff]
  %v341 = vld [vmem:[%s1 + $0x9f8] sm:$0xff]
  %v342 = vld [vmem:[%s1 + $0xa00] sm:$0xff]
  %v343 = vld [vmem:[%s1 + $0xa08] sm:$0xff]
  %v344 = vld [vmem:[%s1 + $0xa10] sm:$0xff]
  %v345 = vld [vmem:[%s1 + $0xa18] sm:$0xff]
  %v346 = vld [vmem:[%s1 + $0xa20] sm:$0xff]
  %v347 = vld [vmem:[%s1 + $0xa28] sm:$0xff]
  %v348 = vld [vmem:[%s1 + $0xa30] sm:$0xff]
  %v349 = vld [vmem:[%s1 + $0xa38] sm:$0xff]
  %v350 = vld [vmem:[%s1 + $0xa40] sm:$0xff]
  %v351 = vld [vmem:[%s1 + $0xa48] sm:$0xff]
  %v352 = vld [vmem:[%s1 + $0xa50] sm:$0xff]
  %v353 = vld [vmem:[%s1 + $0xa58] sm:$0xff]
  %v354 = vld [vmem:[%s1 + $0xa60] sm:$0xff]
  %v355 = vld [vmem:[%s1 + $0xa68] sm:$0xff]
  %v356 = vld [vmem:[%s1 + $0xa70] sm:$0xff]
  %v357 = vld [vmem:[%s1 + $0xa78] sm:$0xff]
  %v358 = vld [vmem:[%s1 + $0xa80] sm:$0xff]
  %v359 = vld [vmem:[%s1 + $0xa88] sm:$0xff]
  %v360 = vld [vmem:[%s1 + $0xa90] sm:$0xff]
  %v361 = vld [vmem:[%s1 + $0xa98] sm:$0xff]
  %v362 = vld [vmem:[%s1 + $0xaa0] sm:$0xff]
  %v363 = vld [vmem:[%s1 + $0xaa8] sm:$0xff]
  %v364 = vld [vmem:[%s1 + $0xab0] sm:$0xff]
  %v365 = vld [vmem:[%s1 + $0xab8] sm:$0xff]
  %v366 = vld [vmem:[%s1 + $0xac0] sm:$0xff]
  %v367 = vld [vmem:[%s1 + $0xac8] sm:$0xff]
  %v368 = vld [vmem:[%s1 + $0xad0] sm:$0xff]
  %v369 = vld [vmem:[%s1 + $0xad8] sm:$0xff]
  %v370 = vld [vmem:[%s1 + $0xae0] sm:$0xff]
  %v371 = vld [vmem:[%s1 + $0xae8] sm:$0xff]
  %v372 = vld [vmem:[%s1 + $0xaf0] sm:$0xff]
  %v373 = vld [vmem:[%s1 + $0xaf8] sm:$0xff]
  %v374 = vld [vmem:[%s1 + $0xb00] sm:$0xff]
  %v375 = vld [vmem:[%s1 + $0xb08] sm:$0xff]
  %v376 = vld [vmem:[%s1 + $0xb10] sm:$0xff]
  %v377 = vld [vmem:[%s1 + $0xb18] sm:$0xff]
  %v378 = vld [vmem:[%s1 + $0xb20] sm:$0xff]
  %v379 = vld [vmem:[%s1 + $0xb28] sm:$0xff]
  %v380 = vld [vmem:[%s1 + $0xb30] sm:$0xff]
  %v381 = vld [vmem:[%s1 + $0xb38] sm:$0xff]
  %v382 = vld [vmem:[%s1 + $0xb40] sm:$0xff]
  %v383 = vld [vmem:[%s1 + $0xb48] sm:$0xff]
  %v384 = vld [vmem:[%s1 + $0xb50] sm:$0xff]
  %v385 = vld [vmem:[%s1 + $0xb58] sm:$0xff]
  %v386 = vld [vmem:[%s1 + $0xb60] sm:$0xff]
  %v387 = vld [vmem:[%s1 + $0xb68] sm:$0xff]
  %v388 = vld [vmem:[%s1 + $0xb70] sm:$0xff]
  %v389 = vld [vmem:[%s1 + $0xb78] sm:$0xff]
  %v390 = vld [vmem:[%s1 + $0xb80] sm:$0xff]
  %v391 = vld [vmem:[%s1 + $0xb88] sm:$0xff]
  %v392 = vld [vmem:[%s1 + $0xb90] sm:$0xff]
  %v393 = vld [vmem:[%s1 + $0xb98] sm:$0xff]
  %v394 = vld [vmem:[%s1 + $0xba0] sm:$0xff]
  %v395 = vld [vmem:[%s1 + $0xba8] sm:$0xff]
  %v396 = vld [vmem:[%s1 + $0xbb0] sm:$0xff]
  %v397 = vld [vmem:[%s1 + $0xbb8] sm:$0xff]
  %v398 = vld [vmem:[%s1 + $0xbc0] sm:$0xff]
  %v399 = vld [vmem:[%s1 + $0xbc8] sm:$0xff]
  %v400 = vld [vmem:[%s1 + $0xbd0] sm:$0xff]
  %v401 = vld [vmem:[%s1 + $0xbd8] sm:$0xff]
  %v402 = vld [vmem:[%s1 + $0xbe0] sm:$0xff]
  %v403 = vld [vmem:[%s1 + $0xbe8] sm:$0xff]
  %v404 = vld [vmem:[%s1 + $0xbf0] sm:$0xff]
  %v405 = vld [vmem:[%s1 + $0xbf8] sm:$0xff]
  %v406 = vld [vmem:[%s1 + $0xc00] sm:$0xff]
  %v407 = vld [vmem:[%s1 + $0xc08] sm:$0xff]
  %v408 = vld [vmem:[%s1 + $0xc10] sm:$0xff]
  %v409 = vld [vmem:[%s1 + $0xc18] sm:$0xff]
  %v410 = vld [vmem:[%s1 + $0xc20] sm:$0xff]
  %v411 = vld [vmem:[%s1 + $0xc28] sm:$0xff]
  %v412 = vld [vmem:[%s1 + $0xc30] sm:$0xff]
  %v413 = vld [vmem:[%s1 + $0xc38] sm:$0xff]
  %v414 = vld [vmem:[%s1 + $0xc40] sm:$0xff]
  %v415 = vld [vmem:[%s1 + $0xc48] sm:$0xff]
  %v416 = vld [vmem:[%s1 + $0xc50] sm:$0xff]
  %v417 = vld [vmem:[%s1 + $0xc58] sm:$0xff]
  %v418 = vld [vmem:[%s1 + $0xc60] sm:$0xff]
  %v419 = vld [vmem:[%s1 + $0xc68] sm:$0xff]
  %v420 = vld [vmem:[%s1 + $0xc70] sm:$0xff]
  %v421 = vld [vmem:[%s1 + $0xc78] sm:$0xff]
  %v422 = vld [vmem:[%s1 + $0xc80] sm:$0xff]
  %v423 = vld [vmem:[%s1 + $0xc88] sm:$0xff]
  %v424 = vld [vmem:[%s1 + $0xc90] sm:$0xff]
  %v425 = vld [vmem:[%s1 + $0xc98] sm:$0xff]
  %v426 = vld [vmem:[%s1 + $0xca0] sm:$0xff]
  %v427 = vld [vmem:[%s1 + $0xca8] sm:$0xff]
  %v428 = vld [vmem:[%s1 + $0xcb0] sm:$0xff]
  %v429 = vld [vmem:[%s1 + $0xcb8] sm:$0xff]
  %v430 = vld [vmem:[%s1 + $0xcc0] sm:$0xff]
  %v431 = vld [vmem:[%s1 + $0xcc8] sm:$0xff]
  %v432 = vld [vmem:[%s1 + $0xcd0] sm:$0xff]
  %v433 = vld [vmem:[%s1 + $0xcd8] sm:$0xff]
  %v434 = vld [vmem:[%s1 + $0xce0] sm:$0xff]
  %v435 = vld [vmem:[%s1 + $0xce8] sm:$0xff]
  %v436 = vld [vmem:[%s1 + $0xcf0] sm:$0xff]
  %v437 = vld [vmem:[%s1 + $0xcf8] sm:$0xff]
  %v438 = vld [vmem:[%s1 + $0xd00] sm:$0xff]
  %v439 = vld [vmem:[%s1 + $0xd08] sm:$0xff]
  %v440 = vld [vmem:[%s1 + $0xd10] sm:$0xff]
  %v441 = vld [vmem:[%s1 + $0xd18] sm:$0xff]
  %v442 = vld [vmem:[%s1 + $0xd20] sm:$0xff]
  %v443 = vld [vmem:[%s1 + $0xd28] sm:$0xff]
  %v444 = vld [vmem:[%s1 + $0xd30] sm:$0xff]
  %v445 = vld [vmem:[%s1 + $0xd38] sm:$0xff]
  %v446 = vld [vmem:[%s1 + $0xd40] sm:$0xff]
  %v447 = vld [vmem:[%s1 + $0xd48] sm:$0xff]
  %v448 = vld [vmem:[%s1 + $0xd50] sm:$0xff]
  %v449 = vld [vmem:[%s1 + $0xd58] sm:$0xff]
  %v450 = vld [vmem:[%s1 + $0xd60] sm:$0xff]
  %v451 = vld [vmem:[%s1 + $0xd68] sm:$0xff]
  %v452 = vld [vmem:[%s1 + $0xd70] sm:$0xff]
  %v453 = vld [vmem:[%s1 + $0xd78] sm:$0xff]
  %v454 = vld [vmem:[%s1 + $0xd80] sm:$0xff]
  %v455 = vld [vmem:[%s1 + $0xd88] sm:$0xff]
  %v456 = vld [vmem:[%s1 + $0xd90] sm:$0xff]
  %v457 = vld [vmem:[%s1 + $0xd98] sm:$0xff]
  %v458 = vld [vmem:[%s1 + $0xda0] sm:$0xff]
  %v459 = vld [vmem:[%s1 + $0xda8] sm:$0xff]
  %v460 = vld [vmem:[%s1 + $0xdb0] sm:$0xff]
  %v461 = vld [vmem:[%s1 + $0xdb8] sm:$0xff]
  %v462 = vld [vmem:[%s1 + $0xdc0] sm:$0xff]
  %v463 = vld [vmem:[%s1 + $0xdc8] sm:$0xff]
  %v464 = vld [vmem:[%s1 + $0xdd0] sm:$0xff]
  %v465 = vld [vmem:[%s1 + $0xdd8] sm:$0xff]
  %v466 = vld [vmem:[%s1 + $0xde0] sm:$0xff]
  %v467 = vld [vmem:[%s1 + $0xde8] sm:$0xff]
  %v468 = vld [vmem:[%s1 + $0xdf0] sm:$0xff]
  %v469 = vld [vmem:[%s1 + $0xdf8] sm:$0xff]
  %v470 = vld [vmem:[%s1 + $0xe00] sm:$0xff]
  %v471 = vld [vmem:[%s1 + $0xe08] sm:$0xff]
  %v472 = vld [vmem:[%s1 + $0xe10] sm:$0xff]
  %v473 = vld [vmem:[%s1 + $0xe18] sm:$0xff]
  %v474 = vld [vmem:[%s1 + $0xe20] sm:$0xff]
  %v475 = vld [vmem:[%s1 + $0xe28] sm:$0xff]
  %v476 = vld [vmem:[%s1 + $0xe30] sm:$0xff]
  %v477 = vld [vmem:[%s1 + $0xe38] sm:$0xff]
  %v478 = vld [vmem:[%s1 + $0xe40] sm:$0xff]
  %v479 = vld [vmem:[%s1 + $0xe48] sm:$0xff]
  %v480 = vld [vmem:[%s1 + $0xe50] sm:$0xff]
  %v481 = vld [vmem:[%s1 + $0xe58] sm:$0xff]
  %v482 = vld [vmem:[%s1 + $0xe60] sm:$0xff]
  %v483 = vld [vmem:[%s1 + $0xe68] sm:$0xff]
  %v484 = vld [vmem:[%s1 + $0xe70] sm:$0xff]
  %v485 = vld [vmem:[%s1 + $0xe78] sm:$0xff]
  %v486 = vld [vmem:[%s1 + $0xe80] sm:$0xff]
  %v487 = vld [vmem:[%s1 + $0xe88] sm:$0xff]
  %v488 = vld [vmem:[%s1 + $0xe90] sm:$0xff]
  %v489 = vld [vmem:[%s1 + $0xe98] sm:$0xff]
  %v490 = vld [vmem:[%s1 + $0xea0] sm:$0xff]
  %v491 = vld [vmem:[%s1 + $0xea8] sm:$0xff]
  %v492 = vld [vmem:[%s1 + $0xeb0] sm:$0xff]
  %v493 = vld [vmem:[%s1 + $0xeb8] sm:$0xff]
  %v494 = vld [vmem:[%s1 + $0xec0] sm:$0xff]
  %v495 = vld [vmem:[%s1 + $0xec8] sm:$0xff]
  %v496 = vld [vmem:[%s1 + $0xed0] sm:$0xff]
  %v497 = vld [vmem:[%s1 + $0xed8] sm:$0xff]
  %v498 = vld [vmem:[%s1 + $0xee0] sm:$0xff]
  %v499 = vld [vmem:[%s1 + $0xee8] sm:$0xff]
  %v500 = vld [vmem:[%s1 + $0xef0] sm:$0xff]
  %v501 = vld [vmem:[%s1 + $0xef8] sm:$0xff]
  %v502 = vld [vmem:[%s1 + $0xf00] sm:$0xff]
  %v503 = vld [vmem:[%s1 + $0xf08] sm:$0xff]
  %v504 = vld [vmem:[%s1 + $0xf10] sm:$0xff]
  %v505 = vld [vmem:[%s1 + $0xf18] sm:$0xff]
  %v506 = vld [vmem:[%s1 + $0xf20] sm:$0xff]
  %v507 = vld [vmem:[%s1 + $0xf28] sm:$0xff]
  %v508 = vld [vmem:[%s1 + $0xf30] sm:$0xff]
  %v509 = vld [vmem:[%s1 + $0xf38] sm:$0xff]
  %v510 = vld [vmem:[%s1 + $0xf40] sm:$0xff]
  %v511 = vld [vmem:[%s1 + $0xf48] sm:$0xff]
  %v512 = vld [vmem:[%s1 + $0xf50] sm:$0xff]
  %v513 = vld [vmem:[%s1 + $0xf58] sm:$0xff]
  %v514 = vld [vmem:[%s1 + $0xf60] sm:$0xff]
  %v515 = vld [vmem:[%s1 + $0xf68] sm:$0xff]
  %v516 = vld [vmem:[%s1 + $0xf70] sm:$0xff]
  %v517 = vld [vmem:[%s1 + $0xf78] sm:$0xff]
  %v518 = vld [vmem:[%s1 + $0xf80] sm:$0xff]
  %v519 = vld [vmem:[%s1 + $0xf88] sm:$0xff]
  %v520 = vld [vmem:[%s1 + $0xf90] sm:$0xff]
  %v521 = vld [vmem:[%s1 + $0xf98] sm:$0xff]
  %v522 = vld [vmem:[%s1 + $0xfa0] sm:$0xff]
  %v523 = vld [vmem:[%s1 + $0xfa8] sm:$0xff]
  %v524 = vld [vmem:[%s1 + $0xfb0] sm:$0xff]
  %v525 = vld [vmem:[%s1 + $0xfb8] sm:$0xff]
  %v526 = vld [vmem:[%s1 + $0xfc0] sm:$0xff]
  %v527 = vld [vmem:[%s1 + $0xfc8] sm:$0xff]
  %v528 = vld [vmem:[%s1 + $0xfd0] sm:$0xff]
  %v529 = vld [vmem:[%s1 + $0xfd8] sm:$0xff]
  %v530 = vld [vmem:[%s1 + $0xfe0] sm:$0xff]
  %v531 = vld [vmem:[%s1 + $0xfe8] sm:$0xff]
  %v532 = vld [vmem:[%s1 + $0xff0] sm:$0xff]
  %v533 = vld [vmem:[%s1 + $0xff8] sm:$0xff]
  %v534 = vld [vmem:[%s1 + $0x1000] sm:$0xff]
  %v535 = vld [vmem:[%s1 + $0x1008] sm:$0xff]
  %v536 = vld [vmem:[%s1 + $0x1010] sm:$0xff]
  %v537 = vld [vmem:[%s1 + $0x1018] sm:$0xff]
  %v538 = vld [vmem:[%s1 + $0x1020] sm:$0xff]
  %v539 = vld [vmem:[%s1 + $0x1028] sm:$0xff]
  %v540 = vld [vmem:[%s1 + $0x1030] sm:$0xff]
  %v541 = vld [vmem:[%s1 + $0x1038] sm:$0xff]
  %v542 = vld [vmem:[%s1 + $0x1040] sm:$0xff]
  %v543 = vld [vmem:[%s1 + $0x1048] sm:$0xff]
  %v544 = vld [vmem:[%s1 + $0x1050] sm:$0xff]
  %v545 = vld [vmem:[%s1 + $0x1058] sm:$0xff]
  %v546 = vld [vmem:[%s1 + $0x1060] sm:$0xff]
  %v547 = vld [vmem:[%s1 + $0x1068] sm:$0xff]
  %v548 = vld [vmem:[%s1 + $0x1070] sm:$0xff]
  %v549 = vld [vmem:[%s1 + $0x1078] sm:$0xff]
  %v550 = vld [vmem:[%s1 + $0x1080] sm:$0xff]
  %v551 = vld [vmem:[%s1 + $0x1088] sm:$0xff]
  %v552 = vld [vmem:[%s1 + $0x1090] sm:$0xff]
  %v553 = vld [vmem:[%s1 + $0x1098] sm:$0xff]
  %v554 = vld [vmem:[%s1 + $0x10a0] sm:$0xff]
  %v555 = vld [vmem:[%s1 + $0x10a8] sm:$0xff]
  %v556 = vld [vmem:[%s1 + $0x10b0] sm:$0xff]
  %v557 = vld [vmem:[%s1 + $0x10b8] sm:$0xff]
  %v558 = vld [vmem:[%s1 + $0x10c0] sm:$0xff]
  %v559 = vld [vmem:[%s1 + $0x10c8] sm:$0xff]
  %v560 = vld [vmem:[%s1 + $0x10d0] sm:$0xff]
  %v561 = vld [vmem:[%s1 + $0x10d8] sm:$0xff]
  %v562 = vld [vmem:[%s1 + $0x10e0] sm:$0xff]
  %v563 = vld [vmem:[%s1 + $0x10e8] sm:$0xff]
  %v564 = vld [vmem:[%s1 + $0x10f0] sm:$0xff]
  %v565 = vld [vmem:[%s1 + $0x10f8] sm:$0xff]
  %v566 = vld [vmem:[%s1 + $0x1100] sm:$0xff]
  %v567 = vld [vmem:[%s1 + $0x1108] sm:$0xff]
  %v568 = vld [vmem:[%s1 + $0x1110] sm:$0xff]
  %v569 = vld [vmem:[%s1 + $0x1118] sm:$0xff]
  %v570 = vld [vmem:[%s1 + $0x1120] sm:$0xff]
  %v571 = vld [vmem:[%s1 + $0x1128] sm:$0xff]
  %v572 = vld [vmem:[%s1 + $0x1130] sm:$0xff]
  %v573 = vld [vmem:[%s1 + $0x1138] sm:$0xff]
  %v574 = vld [vmem:[%s1 + $0x1140] sm:$0xff]
  %v575 = vld [vmem:[%s1 + $0x1148] sm:$0xff]
  %v576 = vld [vmem:[%s1 + $0x1150] sm:$0xff]
  %v577 = vld [vmem:[%s1 + $0x1158] sm:$0xff]
  %v578 = vld [vmem:[%s1 + $0x1160] sm:$0xff]
  %v579 = vld [vmem:[%s1 + $0x1168] sm:$0xff]
  %v580 = vld [vmem:[%s1 + $0x1170] sm:$0xff]
  %v581 = vld [vmem:[%s1 + $0x1178] sm:$0xff]
  %v582 = vld [vmem:[%s1 + $0x1180] sm:$0xff]
  %v583 = vld [vmem:[%s1 + $0x1188] sm:$0xff]
  %v584 = vld [vmem:[%s1 + $0x1190] sm:$0xff]
  %v585 = vld [vmem:[%s1 + $0x1198] sm:$0xff]
  %v586 = vld [vmem:[%s1 + $0x11a0] sm:$0xff]
  %v587 = vld [vmem:[%s1 + $0x11a8] sm:$0xff]
  %v588 = vld [vmem:[%s1 + $0x11b0] sm:$0xff]
  %v589 = vld [vmem:[%s1 + $0x11b8] sm:$0xff]
  %v590 = vld [vmem:[%s1 + $0x11c0] sm:$0xff]
  %v591 = vld [vmem:[%s1 + $0x11c8] sm:$0xff]
  %v592 = vld [vmem:[%s1 + $0x11d0] sm:$0xff]
  %v593 = vld [vmem:[%s1 + $0x11d8] sm:$0xff]
  %v594 = vld [vmem:[%s1 + $0x11e0] sm:$0xff]
  %v595 = vld [vmem:[%s1 + $0x11e8] sm:$0xff]
  %v596 = vld [vmem:[%s1 + $0x11f0] sm:$0xff]
  %v597 = vld [vmem:[%s1 + $0x11f8] sm:$0xff]
  %v598 = vld [vmem:[%s1 + $0x1200] sm:$0xff]
  %v599 = vld [vmem:[%s1 + $0x1208] sm:$0xff]
  %v600 = vld [vmem:[%s1 + $0x1210] sm:$0xff]
  %v601 = vld [vmem:[%s1 + $0x1218] sm:$0xff]
  %v602 = vld [vmem:[%s1 + $0x1220] sm:$0xff]
  %v603 = vld [vmem:[%s1 + $0x1228] sm:$0xff]
  %v604 = vld [vmem:[%s1 + $0x1230] sm:$0xff]
  %v605 = vld [vmem:[%s1 + $0x1238] sm:$0xff]
  %v606 = vld [vmem:[%s1 + $0x1240] sm:$0xff]
  %v607 = vld [vmem:[%s1 + $0x1248] sm:$0xff]
  %v608 = vld [vmem:[%s1 + $0x1250] sm:$0xff]
  %v609 = vld [vmem:[%s1 + $0x1258] sm:$0xff]
  %v610 = vld [vmem:[%s1 + $0x1260] sm:$0xff]
  %v611 = vld [vmem:[%s1 + $0x1268] sm:$0xff]
  %v612 = vld [vmem:[%s1 + $0x1270] sm:$0xff]
  %v613 = vld [vmem:[%s1 + $0x1278] sm:$0xff]
  %v614 = vld [vmem:[%s1 + $0x1280] sm:$0xff]
  %v615 = vld [vmem:[%s1 + $0x1288] sm:$0xff]
  %v616 = vld [vmem:[%s1 + $0x1290] sm:$0xff]
  %v617 = vld [vmem:[%s1 + $0x1298] sm:$0xff]
  %v618 = vld [vmem:[%s1 + $0x12a0] sm:$0xff]
  %v619 = vld [vmem:[%s1 + $0x12a8] sm:$0xff]
  %v620 = vld [vmem:[%s1 + $0x12b0] sm:$0xff]
  %v621 = vld [vmem:[%s1 + $0x12b8] sm:$0xff]
  %v622 = vld [vmem:[%s1 + $0x12c0] sm:$0xff]
  %v623 = vld [vmem:[%s1 + $0x12c8] sm:$0xff]
  %v624 = vld [vmem:[%s1 + $0x12d0] sm:$0xff]
  %v625 = vld [vmem:[%s1 + $0x12d8] sm:$0xff]
  %v626 = vld [vmem:[%s1 + $0x12e0] sm:$0xff]
  %v627 = vld [vmem:[%s1 + $0x12e8] sm:$0xff]
  %v628 = vld [vmem:[%s1 + $0x12f0] sm:$0xff]
  %v629 = vld [vmem:[%s1 + $0x12f8] sm:$0xff]
  %v630 = vld [vmem:[%s1 + $0x1300] sm:$0xff]
  %v631 = vld [vmem:[%s1 + $0x1308] sm:$0xff]
  %v632 = vld [vmem:[%s1 + $0x1310] sm:$0xff]
  %v633 = vld [vmem:[%s1 + $0x1318] sm:$0xff]
  %v634 = vld [vmem:[%s1 + $0x1320] sm:$0xff]
  %v635 = vld [vmem:[%s1 + $0x1328] sm:$0xff]
  %v636 = vld [vmem:[%s1 + $0x1330] sm:$0xff]
  %v637 = vld [vmem:[%s1 + $0x1338] sm:$0xff]
  %v638 = vld [vmem:[%s1 + $0x1340] sm:$0xff]
  %v639 = vld [vmem:[%s1 + $0x1348] sm:$0xff]
  %v640 = vld [vmem:[%s1 + $0x1350] sm:$0xff]
  %v641 = vld [vmem:[%s1 + $0x1358] sm:$0xff]
  %v642 = vld [vmem:[%s1 + $0x1360] sm:$0xff]
  %v643 = vld [vmem:[%s1 + $0x1368] sm:$0xff]
  %v644 = vld [vmem:[%s1 + $0x1370] sm:$0xff]
  %v645 = vld [vmem:[%s1 + $0x1378] sm:$0xff]
  %v646 = vld [vmem:[%s1 + $0x1380] sm:$0xff]
  %v647 = vld [vmem:[%s1 + $0x1388] sm:$0xff]
  %v648 = vld [vmem:[%s1 + $0x1390] sm:$0xff]
  %v649 = vld [vmem:[%s1 + $0x1398] sm:$0xff]
  %v650 = vld [vmem:[%s1 + $0x13a0] sm:$0xff]
  %v651 = vld [vmem:[%s1 + $0x13a8] sm:$0xff]
  %v652 = vld [vmem:[%s1 + $0x13b0] sm:$0xff]
  %v653 = vld [vmem:[%s1 + $0x13b8] sm:$0xff]
  %v654 = vld [vmem:[%s1 + $0x13c0] sm:$0xff]
  %v655 = vld [vmem:[%s1 + $0x13c8] sm:$0xff]
  %v656 = vld [vmem:[%s1 + $0x13d0] sm:$0xff]
  %v657 = vld [vmem:[%s1 + $0x13d8] sm:$0xff]
  %v658 = vld [vmem:[%s1 + $0x13e0] sm:$0xff]
  %v659 = vld [vmem:[%s1 + $0x13e8] sm:$0xff]
  %v660 = vld [vmem:[%s1 + $0x13f0] sm:$0xff]
  %v661 = vld [vmem:[%s1 + $0x13f8] sm:$0xff]
  %v662 = vld [vmem:[%s1 + $0x1400] sm:$0xff]
  %v663 = vld [vmem:[%s1 + $0x1408] sm:$0xff]
  %v664 = vld [vmem:[%s1 + $0x1410] sm:$0xff]
  %v665 = vld [vmem:[%s1 + $0x1418] sm:$0xff]
  %v666 = vld [vmem:[%s1 + $0x1420] sm:$0xff]
  %v667 = vld [vmem:[%s1 + $0x1428] sm:$0xff]
  %v668 = vld [vmem:[%s1 + $0x1430] sm:$0xff]
  %v669 = vld [vmem:[%s1 + $0x1438] sm:$0xff]
  %v670 = vld [vmem:[%s1 + $0x1440] sm:$0xff]
  %v671 = vld [vmem:[%s1 + $0x1448] sm:$0xff]
  %v672 = vld [vmem:[%s1 + $0x1450] sm:$0xff]
  %v673 = vld [vmem:[%s1 + $0x1458] sm:$0xff]
  %v674 = vld [vmem:[%s1 + $0x1460] sm:$0xff]
  %v675 = vld [vmem:[%s1 + $0x1468] sm:$0xff]
  %v676 = vld [vmem:[%s1 + $0x1470] sm:$0xff]
  %v677 = vld [vmem:[%s1 + $0x1478] sm:$0xff]
  %v678 = vld [vmem:[%s1 + $0x1480] sm:$0xff]
  %v679 = vld [vmem:[%s1 + $0x1488] sm:$0xff]
  %v680 = vld [vmem:[%s1 + $0x1490] sm:$0xff]
  %v681 = vld [vmem:[%s1 + $0x1498] sm:$0xff]
  %v682 = vld [vmem:[%s1 + $0x14a0] sm:$0xff]
  %v683 = vld [vmem:[%s1 + $0x14a8] sm:$0xff]
  %v684 = vld [vmem:[%s1 + $0x14b0] sm:$0xff]
  %v685 = vld [vmem:[%s1 + $0x14b8] sm:$0xff]
  %v686 = vld [vmem:[%s1 + $0x14c0] sm:$0xff]
  %v687 = vld [vmem:[%s1 + $0x14c8] sm:$0xff]
  %v688 = vld [vmem:[%s1 + $0x14d0] sm:$0xff]
  %v689 = vld [vmem:[%s1 + $0x14d8] sm:$0xff]
  %v690 = vld [vmem:[%s1 + $0x14e0] sm:$0xff]
  %v691 = vld [vmem:[%s1 + $0x14e8] sm:$0xff]
  %v692 = vld [vmem:[%s1 + $0x14f0] sm:$0xff]
  %v693 = vld [vmem:[%s1 + $0x14f8] sm:$0xff]
  %v694 = vld [vmem:[%s1 + $0x1500] sm:$0xff]
  %v695 = vld [vmem:[%s1 + $0x1508] sm:$0xff]
  %v696 = vld [vmem:[%s1 + $0x1510] sm:$0xff]
  %v697 = vld [vmem:[%s1 + $0x1518] sm:$0xff]
  %v698 = vld [vmem:[%s1 + $0x1520] sm:$0xff]
  %v699 = vld [vmem:[%s1 + $0x1528] sm:$0xff]
  %v700 = vld [vmem:[%s1 + $0x1530] sm:$0xff]
  %v701 = vld [vmem:[%s1 + $0x1538] sm:$0xff]
  %v702 = vld [vmem:[%s1 + $0x1540] sm:$0xff]
  %v703 = vld [vmem:[%s1 + $0x1548] sm:$0xff]
  %v704 = vld [vmem:[%s1 + $0x1550] sm:$0xff]
  %v705 = vld [vmem:[%s1 + $0x1558] sm:$0xff]
  %v706 = vld [vmem:[%s1 + $0x1560] sm:$0xff]
  %v707 = vld [vmem:[%s1 + $0x1568] sm:$0xff]
  %v708 = vld [vmem:[%s1 + $0x1570] sm:$0xff]
  %v709 = vld [vmem:[%s1 + $0x1578] sm:$0xff]
  %v710 = vld [vmem:[%s1 + $0x1580] sm:$0xff]
  %v711 = vld [vmem:[%s1 + $0x1588] sm:$0xff]
  %v712 = vld [vmem:[%s1 + $0x1590] sm:$0xff]
  %v713 = vld [vmem:[%s1 + $0x1598] sm:$0xff]
  %v714 = vld [vmem:[%s1 + $0x15a0] sm:$0xff]
  %v715 = vld [vmem:[%s1 + $0x15a8] sm:$0xff]
  %v716 = vld [vmem:[%s1 + $0x15b0] sm:$0xff]
  %v717 = vld [vmem:[%s1 + $0x15b8] sm:$0xff]
  %v718 = vld [vmem:[%s1 + $0x15c0] sm:$0xff]
  %v719 = vld [vmem:[%s1 + $0x15c8] sm:$0xff]
  %v720 = vld [vmem:[%s1 + $0x15d0] sm:$0xff]
  %v721 = vld [vmem:[%s1 + $0x15d8] sm:$0xff]
  %v722 = vld [vmem:[%s1 + $0x15e0] sm:$0xff]
  %v723 = vld [vmem:[%s1 + $0x15e8] sm:$0xff]
  %v724 = vld [vmem:[%s1 + $0x15f0] sm:$0xff]
  %v725 = vld [vmem:[%s1 + $0x15f8] sm:$0xff]
  %v726 = vld [vmem:[%s1 + $0x1600] sm:$0xff]
  %v727 = vld [vmem:[%s1 + $0x1608] sm:$0xff]
  %v728 = vld [vmem:[%s1 + $0x1610] sm:$0xff]
  %v729 = vld [vmem:[%s1 + $0x1618] sm:$0xff]
  %v730 = vld [vmem:[%s1 + $0x1620] sm:$0xff]
  %v731 = vld [vmem:[%s1 + $0x1628] sm:$0xff]
  %v732 = vld [vmem:[%s1 + $0x1630] sm:$0xff]
  %v733 = vld [vmem:[%s1 + $0x1638] sm:$0xff]
  %v734 = vld [vmem:[%s1 + $0x1640] sm:$0xff]
  %v735 = vld [vmem:[%s1 + $0x1648] sm:$0xff]
  %v736 = vld [vmem:[%s1 + $0x1650] sm:$0xff]
  %v737 = vld [vmem:[%s1 + $0x1658] sm:$0xff]
  %v738 = vld [vmem:[%s1 + $0x1660] sm:$0xff]
  %v739 = vld [vmem:[%s1 + $0x1668] sm:$0xff]
  %v740 = vld [vmem:[%s1 + $0x1670] sm:$0xff]
  %v741 = vld [vmem:[%s1 + $0x1678] sm:$0xff]
  %v742 = vld [vmem:[%s1 + $0x1680] sm:$0xff]
  %v743 = vld [vmem:[%s1 + $0x1688] sm:$0xff]
  %v744 = vld [vmem:[%s1 + $0x1690] sm:$0xff]
  %v745 = vld [vmem:[%s1 + $0x1698] sm:$0xff]
  %v746 = vld [vmem:[%s1 + $0x16a0] sm:$0xff]
  %v747 = vld [vmem:[%s1 + $0x16a8] sm:$0xff]
  %v748 = vld [vmem:[%s1 + $0x16b0] sm:$0xff]
  %v749 = vld [vmem:[%s1 + $0x16b8] sm:$0xff]
  %v750 = vld [vmem:[%s1 + $0x16c0] sm:$0xff]
  %v751 = vld [vmem:[%s1 + $0x16c8] sm:$0xff]
  %v752 = vld [vmem:[%s1 + $0x16d0] sm:$0xff]
  %v753 = vld [vmem:[%s1 + $0x16d8] sm:$0xff]
  %v754 = vld [vmem:[%s1 + $0x16e0] sm:$0xff]
  %v755 = vld [vmem:[%s1 + $0x16e8] sm:$0xff]
  %v756 = vld [vmem:[%s1 + $0x16f0] sm:$0xff]
  %v757 = vld [vmem:[%s1 + $0x16f8] sm:$0xff]
  %v758 = vld [vmem:[%s1 + $0x1700] sm:$0xff]
  %v759 = vld [vmem:[%s1 + $0x1708] sm:$0xff]
  %v760 = vld [vmem:[%s1 + $0x1710] sm:$0xff]
  %v761 = vld [vmem:[%s1 + $0x1718] sm:$0xff]
  %v762 = vld [vmem:[%s1 + $0x1720] sm:$0xff]
  %v763 = vld [vmem:[%s1 + $0x1728] sm:$0xff]
  %v764 = vld [vmem:[%s1 + $0x1730] sm:$0xff]
  %v765 = vld [vmem:[%s1 + $0x1738] sm:$0xff]
  %v766 = vld [vmem:[%s1 + $0x1740] sm:$0xff]
  %v767 = vld [vmem:[%s1 + $0x1748] sm:$0xff]
  %v768 = vld [vmem:[%s1 + $0x1750] sm:$0xff]
  %v769 = vld [vmem:[%s1 + $0x1758] sm:$0xff]
  %v770 = vld [vmem:[%s1 + $0x1760] sm:$0xff]
  %v771 = vld [vmem:[%s1 + $0x1768] sm:$0xff]
  %v772 = vld [vmem:[%s1 + $0x1770] sm:$0xff]
  %v773 = vld [vmem:[%s1 + $0x1778] sm:$0xff]
  %v774 = vld [vmem:[%s1 + $0x1780] sm:$0xff]
  %v775 = vld [vmem:[%s1 + $0x1788] sm:$0xff]
  %v776 = vld [vmem:[%s1 + $0x1790] sm:$0xff]
  %v777 = vld [vmem:[%s1 + $0x1798] sm:$0xff]
  %v778 = vld [vmem:[%s1 + $0x17a0] sm:$0xff]
  %v779 = vld [vmem:[%s1 + $0x17a8] sm:$0xff]
  %v780 = vld [vmem:[%s1 + $0x17b0] sm:$0xff]
  %v781 = vld [vmem:[%s1 + $0x17b8] sm:$0xff]
  %v782 = vld [vmem:[%s1 + $0x17c0] sm:$0xff]
  %v783 = vld [vmem:[%s1 + $0x17c8] sm:$0xff]
  %v784 = vld [vmem:[%s1 + $0x17d0] sm:$0xff]
  %v785 = vld [vmem:[%s1 + $0x17d8] sm:$0xff]
  %v786 = vld [vmem:[%s1 + $0x17e0] sm:$0xff]
  %v787 = vld [vmem:[%s1 + $0x17e8] sm:$0xff]
  %v788 = vld [vmem:[%s1 + $0x17f0] sm:$0xff]
  %v789 = vld [vmem:[%s1 + $0x17f8] sm:$0xff]
  %v790 = vld [vmem:[%s1 + $0x1800] sm:$0xff]
  %v791 = vld [vmem:[%s1 + $0x1808] sm:$0xff]
  %v792 = vld [vmem:[%s1 + $0x1810] sm:$0xff]
  %v793 = vld [vmem:[%s1 + $0x1818] sm:$0xff]
  %v794 = vld [vmem:[%s1 + $0x1820] sm:$0xff]
  %v795 = vld [vmem:[%s1 + $0x1828] sm:$0xff]
  %v796 = vld [vmem:[%s1 + $0x1830] sm:$0xff]
  %v797 = vld [vmem:[%s1 + $0x1838] sm:$0xff]
  %v798 = vld [vmem:[%s1 + $0x1840] sm:$0xff]
  %v799 = vld [vmem:[%s1 + $0x1848] sm:$0xff]
  %v800 = vld [vmem:[%s1 + $0x1850] sm:$0xff]
  %v801 = vld [vmem:[%s1 + $0x1858] sm:$0xff]
  %v802 = vld [vmem:[%s1 + $0x1860] sm:$0xff]
  %v803 = vld [vmem:[%s1 + $0x1868] sm:$0xff]
  %v804 = vld [vmem:[%s1 + $0x1870] sm:$0xff]
  %v805 = vld [vmem:[%s1 + $0x1878] sm:$0xff]
  %v806 = vld [vmem:[%s1 + $0x1880] sm:$0xff]
  %v807 = vld [vmem:[%s1 + $0x1888] sm:$0xff]
  %v808 = vld [vmem:[%s1 + $0x1890] sm:$0xff]
  %v809 = vld [vmem:[%s1 + $0x1898] sm:$0xff]
  %v810 = vld [vmem:[%s1 + $0x18a0] sm:$0xff]
  %v811 = vld [vmem:[%s1 + $0x18a8] sm:$0xff]
  %v812 = vld [vmem:[%s1 + $0x18b0] sm:$0xff]
  %v813 = vld [vmem:[%s1 + $0x18b8] sm:$0xff]
  %v814 = vld [vmem:[%s1 + $0x18c0] sm:$0xff]
  %v815 = vld [vmem:[%s1 + $0x18c8] sm:$0xff]
  %v816 = vld [vmem:[%s1 + $0x18d0] sm:$0xff]
  %v817 = vld [vmem:[%s1 + $0x18d8] sm:$0xff]
  %v818 = vld [vmem:[%s1 + $0x18e0] sm:$0xff]
  %v819 = vld [vmem:[%s1 + $0x18e8] sm:$0xff]
  %v820 = vld [vmem:[%s1 + $0x18f0] sm:$0xff]
  %v821 = vld [vmem:[%s1 + $0x18f8] sm:$0xff]
  %v822 = vld [vmem:[%s2] sm:$0x1f]
  %v825 = vlaneseq
  %v826 = vshrl.u32 %v825, 7
  %v827 = vsub.s32 0, %v826
  %v828 = vrot.slane %v20, %v827
  %v829 = vlaneseq
  %v830 = vshrl.u32 %v829, 7
  %v831 = vsub.s32 1, %v830
  %v832 = vrot.slane %v20, %v831
  %v833 = vlaneseq
  %v834 = vshrl.u32 %v833, 7
  %v835 = vsub.s32 2, %v834
  %v836 = vrot.slane %v20, %v835
  %v837 = vlaneseq
  %v838 = vshrl.u32 %v837, 7
  %v839 = vsub.s32 3, %v838
  %v840 = vrot.slane %v20, %v839
  %v841 = vlaneseq
  %v842 = vshrl.u32 %v841, 7
  %v843 = vsub.s32 4, %v842
  %v844 = vrot.slane %v20, %v843
  %v845 = vlaneseq
  %v846 = vshrl.u32 %v845, 7
  %v847 = vsub.s32 5, %v846
  %v848 = vrot.slane %v20, %v847
  %v849 = vlaneseq
  %v850 = vshrl.u32 %v849, 7
  %v851 = vsub.s32 6, %v850
  %v852 = vrot.slane %v20, %v851
  %v853 = vlaneseq
  %v854 = vshrl.u32 %v853, 7
  %v855 = vsub.s32 7, %v854
  %v856 = vrot.slane %v20, %v855
  %v857 = vlaneseq
  %v858 = vshrl.u32 %v857, 7
  %v859 = vsub.s32 0, %v858
  %v860 = vrot.slane %v21, %v859
  %v861 = vlaneseq
  %v862 = vshrl.u32 %v861, 7
  %v863 = vsub.s32 1, %v862
  %v864 = vrot.slane %v21, %v863
  %v876 = vlaneseq
  %v877 = vshrl.u32 %v876, 7
  %v878 = vsub.s32 0, %v877
  %v879 = vrot.slane %v822, %v878
  %v880 = vlaneseq
  %v881 = vshrl.u32 %v880, 7
  %v882 = vsub.s32 1, %v881
  %v883 = vrot.slane %v822, %v882
  %v884 = vlaneseq
  %v885 = vshrl.u32 %v884, 7
  %v886 = vsub.s32 2, %v885
  %v887 = vrot.slane %v822, %v886
  %v888 = vlaneseq
  %v889 = vshrl.u32 %v888, 7
  %v890 = vsub.s32 3, %v889
  %v891 = vrot.slane %v822, %v890
  %v892 = vlaneseq
  %v893 = vshrl.u32 %v892, 7
  %v894 = vsub.s32 4, %v893
  %v895 = vrot.slane %v822, %v894
  %901 = vmatprep.subr.mxu0 %v98
  %902 = vmatpush1.msra.mxu0 %v97
  %903 = vmatprep.subr.mxu0 %v93
  %904 = vmatpush1.msra.mxu0 %v92
  %905 = vmatprep.subr.mxu0 %v88
  %906 = vmatpush1.msra.mxu0 %v87
  %907 = vmatprep.subr.mxu0 %v83
  %908 = vmatpush1.msra.mxu0 %v82
  %909 = vmatprep.subr.mxu0 %v78
  %910 = vmatpush1.msra.mxu0 %v77
  %911 = vmatprep.subr.mxu0 %v73
  %912 = vmatpush1.msra.mxu0 %v72
  %913 = vmatprep.subr.mxu0 %v68
  %914 = vmatpush1.msra.mxu0 %v67
  %915 = vmatprep.subr.mxu0 %v63
  %916 = vmatpush1.msra.mxu0 %v62
  %917 = vmatprep.subr.mxu0 %v58
  %918 = vmatpush1.msra.mxu0 %v57
  %919 = vmatprep.subr.mxu0 %v53
  %920 = vmatpush1.msra.mxu0 %v52
  %921 = vmatprep.subr.mxu0 %v48
  %922 = vmatpush1.msra.mxu0 %v47
  %923 = vmatprep.subr.mxu0 %v43
  %924 = vmatpush1.msra.mxu0 %v42
  %925 = vmatprep.subr.mxu0 %v38
  %926 = vmatpush1.msra.mxu0 %v37
  %927 = vmatprep.subr.mxu0 %v33
  %928 = vmatpush1.msra.mxu0 %v32
  %929 = vmatprep.subr.mxu0 %v28
  %930 = vmatpush1.msra.mxu0 %v27
  %931 = vmatprep.subr.mxu0 %v23
  %932 = vmatpush1.msra.mxu0 %v22
  %933 = vmatprep.subr.mxu0 %v178
  %934 = vmatpush2.msra.mxu0 %v177
  %935 = vmatprep.subr.mxu0 %v173
  %936 = vmatpush2.msra.mxu0 %v172
  %937 = vmatprep.subr.mxu0 %v168
  %938 = vmatpush2.msra.mxu0 %v167
  %939 = vmatprep.subr.mxu0 %v163
  %940 = vmatpush2.msra.mxu0 %v162
  %941 = vmatprep.subr.mxu0 %v158
  %942 = vmatpush2.msra.mxu0 %v157
  %943 = vmatprep.subr.mxu0 %v153
  %944 = vmatpush2.msra.mxu0 %v152
  %945 = vmatprep.subr.mxu0 %v148
  %946 = vmatpush2.msra.mxu0 %v147
  %947 = vmatprep.subr.mxu0 %v143
  %948 = vmatpush2.msra.mxu0 %v142
  %949 = vmatprep.subr.mxu0 %v138
  %950 = vmatpush2.msra.mxu0 %v137
  %951 = vmatprep.subr.mxu0 %v133
  %952 = vmatpush2.msra.mxu0 %v132
  %953 = vmatprep.subr.mxu0 %v128
  %954 = vmatpush2.msra.mxu0 %v127
  %955 = vmatprep.subr.mxu0 %v123
  %956 = vmatpush2.msra.mxu0 %v122
  %957 = vmatprep.subr.mxu0 %v118
  %958 = vmatpush2.msra.mxu0 %v117
  %959 = vmatprep.subr.mxu0 %v113
  %960 = vmatpush2.msra.mxu0 %v112
  %961 = vmatprep.subr.mxu0 %v108
  %962 = vmatpush2.msra.mxu0 %v107
  %963 = vmatprep.subr.mxu0 %v103
  %964 = vmatpush2.msra.mxu0 %v102
  %965 = vmatprep.mubr.f32.mxu0 %v832
  %966 = vmatmul.mubr.f32.gmra.mxu0 %v828
  %v967 = vpop.f32.mrf.mxu0
  %v968 = vadd.f32 %v879, %v967
  %v969 = vpop.f32.mrf.mxu0
  %v970 = vadd.f32 %v883, %v969
  %971 = vdwg.mxu0
  %972 = vmatprep.subr.mxu0 %v258
  %973 = vmatpush1.msra.mxu0 %v257
  %974 = vmatprep.subr.mxu0 %v253
  %975 = vmatpush1.msra.mxu0 %v252
  %976 = vmatprep.subr.mxu0 %v248
  %977 = vmatpush1.msra.mxu0 %v247
  %978 = vmatprep.subr.mxu0 %v243
  %979 = vmatpush1.msra.mxu0 %v242
  %980 = vmatprep.subr.mxu0 %v238
  %981 = vmatpush1.msra.mxu0 %v237
  %982 = vmatprep.subr.mxu0 %v233
  %983 = vmatpush1.msra.mxu0 %v232
  %984 = vmatprep.subr.mxu0 %v228
  %985 = vmatpush1.msra.mxu0 %v227
  %986 = vmatprep.subr.mxu0 %v223
  %987 = vmatpush1.msra.mxu0 %v222
  %988 = vmatprep.subr.mxu0 %v218
  %989 = vmatpush1.msra.mxu0 %v217
  %990 = vmatprep.subr.mxu0 %v213
  %991 = vmatpush1.msra.mxu0 %v212
  %992 = vmatprep.subr.mxu0 %v208
  %993 = vmatpush1.msra.mxu0 %v207
  %994 = vmatprep.subr.mxu0 %v203
  %995 = vmatpush1.msra.mxu0 %v202
  %996 = vmatprep.subr.mxu0 %v198
  %997 = vmatpush1.msra.mxu0 %v197
  %998 = vmatprep.subr.mxu0 %v193
  %999 = vmatpush1.msra.mxu0 %v192
  %1000 = vmatprep.subr.mxu0 %v188
  %1001 = vmatpush1.msra.mxu0 %v187
  %1002 = vmatprep.subr.mxu0 %v183
  %1003 = vmatpush1.msra.mxu0 %v182
  %1004 = vmatprep.subr.mxu0 %v338
  %1005 = vmatpush2.msra.mxu0 %v337
  %1006 = vmatprep.subr.mxu0 %v333
  %1007 = vmatpush2.msra.mxu0 %v332
  %1008 = vmatprep.subr.mxu0 %v328
  %1009 = vmatpush2.msra.mxu0 %v327
  %1010 = vmatprep.subr.mxu0 %v323
  %1011 = vmatpush2.msra.mxu0 %v322
  %1012 = vmatprep.subr.mxu0 %v318
  %1013 = vmatpush2.msra.mxu0 %v317
  %1014 = vmatprep.subr.mxu0 %v313
  %1015 = vmatpush2.msra.mxu0 %v312
  %1016 = vmatprep.subr.mxu0 %v308
  %1017 = vmatpush2.msra.mxu0 %v307
  %1018 = vmatprep.subr.mxu0 %v303
  %1019 = vmatpush2.msra.mxu0 %v302
  %1020 = vmatprep.subr.mxu0 %v298
  %1021 = vmatpush2.msra.mxu0 %v297
  %1022 = vmatprep.subr.mxu0 %v293
  %1023 = vmatpush2.msra.mxu0 %v292
  %1024 = vmatprep.subr.mxu0 %v288
  %1025 = vmatpush2.msra.mxu0 %v287
  %1026 = vmatprep.subr.mxu0 %v283
  %1027 = vmatpush2.msra.mxu0 %v282
  %1028 = vmatprep.subr.mxu0 %v278
  %1029 = vmatpush2.msra.mxu0 %v277
  %1030 = vmatprep.subr.mxu0 %v273
  %1031 = vmatpush2.msra.mxu0 %v272
  %1032 = vmatprep.subr.mxu0 %v268
  %1033 = vmatpush2.msra.mxu0 %v267
  %1034 = vmatprep.subr.mxu0 %v263
  %1035 = vmatpush2.msra.mxu0 %v262
  %1036 = vmatprep.mubr.f32.mxu0 %v840
  %1037 = vmatmul.mubr.f32.gmra.mxu0 %v836
  %v1038 = vpop.f32.mrf.mxu0
  %v1039 = vadd.f32 %v968, %v1038
  %v1040 = vpop.f32.mrf.mxu0
  %v1041 = vadd.f32 %v970, %v1040
  %1042 = vdwg.mxu0
  %1043 = vmatprep.subr.mxu0 %v418
  %1044 = vmatpush1.msra.mxu0 %v417
  %1045 = vmatprep.subr.mxu0 %v413
  %1046 = vmatpush1.msra.mxu0 %v412
  %1047 = vmatprep.subr.mxu0 %v408
  %1048 = vmatpush1.msra.mxu0 %v407
  %1049 = vmatprep.subr.mxu0 %v403
  %1050 = vmatpush1.msra.mxu0 %v402
  %1051 = vmatprep.subr.mxu0 %v398
  %1052 = vmatpush1.msra.mxu0 %v397
  %1053 = vmatprep.subr.mxu0 %v393
  %1054 = vmatpush1.msra.mxu0 %v392
  %1055 = vmatprep.subr.mxu0 %v388
  %1056 = vmatpush1.msra.mxu0 %v387
  %1057 = vmatprep.subr.mxu0 %v383
  %1058 = vmatpush1.msra.mxu0 %v382
  %1059 = vmatprep.subr.mxu0 %v378
  %1060 = vmatpush1.msra.mxu0 %v377
  %1061 = vmatprep.subr.mxu0 %v373
  %1062 = vmatpush1.msra.mxu0 %v372
  %1063 = vmatprep.subr.mxu0 %v368
  %1064 = vmatpush1.msra.mxu0 %v367
  %1065 = vmatprep.subr.mxu0 %v363
  %1066 = vmatpush1.msra.mxu0 %v362
  %1067 = vmatprep.subr.mxu0 %v358
  %1068 = vmatpush1.msra.mxu0 %v357
  %1069 = vmatprep.subr.mxu0 %v353
  %1070 = vmatpush1.msra.mxu0 %v352
  %1071 = vmatprep.subr.mxu0 %v348
  %1072 = vmatpush1.msra.mxu0 %v347
  %1073 = vmatprep.subr.mxu0 %v343
  %1074 = vmatpush1.msra.mxu0 %v342
  %1075 = vmatprep.subr.mxu0 %v498
  %1076 = vmatpush2.msra.mxu0 %v497
  %1077 = vmatprep.subr.mxu0 %v493
  %1078 = vmatpush2.msra.mxu0 %v492
  %1079 = vmatprep.subr.mxu0 %v488
  %1080 = vmatpush2.msra.mxu0 %v487
  %1081 = vmatprep.subr.mxu0 %v483
  %1082 = vmatpush2.msra.mxu0 %v482
  %1083 = vmatprep.subr.mxu0 %v478
  %1084 = vmatpush2.msra.mxu0 %v477
  %1085 = vmatprep.subr.mxu0 %v473
  %1086 = vmatpush2.msra.mxu0 %v472
  %1087 = vmatprep.subr.mxu0 %v468
  %1088 = vmatpush2.msra.mxu0 %v467
  %1089 = vmatprep.subr.mxu0 %v463
  %1090 = vmatpush2.msra.mxu0 %v462
  %1091 = vmatprep.subr.mxu0 %v458
  %1092 = vmatpush2.msra.mxu0 %v457
  %1093 = vmatprep.subr.mxu0 %v453
  %1094 = vmatpush2.msra.mxu0 %v452
  %1095 = vmatprep.subr.mxu0 %v448
  %1096 = vmatpush2.msra.mxu0 %v447
  %1097 = vmatprep.subr.mxu0 %v443
  %1098 = vmatpush2.msra.mxu0 %v442
  %1099 = vmatprep.subr.mxu0 %v438
  %1100 = vmatpush2.msra.mxu0 %v437
  %1101 = vmatprep.subr.mxu0 %v433
  %1102 = vmatpush2.msra.mxu0 %v432
  %1103 = vmatprep.subr.mxu0 %v428
  %1104 = vmatpush2.msra.mxu0 %v427
  %1105 = vmatprep.subr.mxu0 %v423
  %1106 = vmatpush2.msra.mxu0 %v422
  %1107 = vmatprep.mubr.f32.mxu0 %v848
  %1108 = vmatmul.mubr.f32.gmra.mxu0 %v844
  %v1109 = vpop.f32.mrf.mxu0
  %v1110 = vadd.f32 %v1039, %v1109
  %v1111 = vpop.f32.mrf.mxu0
  %v1112 = vadd.f32 %v1041, %v1111
  %1113 = vdwg.mxu0
  %1114 = vmatprep.subr.mxu0 %v578
  %1115 = vmatpush1.msra.mxu0 %v577
  %1116 = vmatprep.subr.mxu0 %v573
  %1117 = vmatpush1.msra.mxu0 %v572
  %1118 = vmatprep.subr.mxu0 %v568
  %1119 = vmatpush1.msra.mxu0 %v567
  %1120 = vmatprep.subr.mxu0 %v563
  %1121 = vmatpush1.msra.mxu0 %v562
  %1122 = vmatprep.subr.mxu0 %v558
  %1123 = vmatpush1.msra.mxu0 %v557
  %1124 = vmatprep.subr.mxu0 %v553
  %1125 = vmatpush1.msra.mxu0 %v552
  %1126 = vmatprep.subr.mxu0 %v548
  %1127 = vmatpush1.msra.mxu0 %v547
  %1128 = vmatprep.subr.mxu0 %v543
  %1129 = vmatpush1.msra.mxu0 %v542
  %1130 = vmatprep.subr.mxu0 %v538
  %1131 = vmatpush1.msra.mxu0 %v537
  %1132 = vmatprep.subr.mxu0 %v533
  %1133 = vmatpush1.msra.mxu0 %v532
  %1134 = vmatprep.subr.mxu0 %v528
  %1135 = vmatpush1.msra.mxu0 %v527
  %1136 = vmatprep.subr.mxu0 %v523
  %1137 = vmatpush1.msra.mxu0 %v522
  %1138 = vmatprep.subr.mxu0 %v518
  %1139 = vmatpush1.msra.mxu0 %v517
  %1140 = vmatprep.subr.mxu0 %v513
  %1141 = vmatpush1.msra.mxu0 %v512
  %1142 = vmatprep.subr.mxu0 %v508
  %1143 = vmatpush1.msra.mxu0 %v507
  %1144 = vmatprep.subr.mxu0 %v503
  %1145 = vmatpush1.msra.mxu0 %v502
  %1146 = vmatprep.subr.mxu0 %v658
  %1147 = vmatpush2.msra.mxu0 %v657
  %1148 = vmatprep.subr.mxu0 %v653
  %1149 = vmatpush2.msra.mxu0 %v652
  %1150 = vmatprep.subr.mxu0 %v648
  %1151 = vmatpush2.msra.mxu0 %v647
  %1152 = vmatprep.subr.mxu0 %v643
  %1153 = vmatpush2.msra.mxu0 %v642
  %1154 = vmatprep.subr.mxu0 %v638
  %1155 = vmatpush2.msra.mxu0 %v637
  %1156 = vmatprep.subr.mxu0 %v633
  %1157 = vmatpush2.msra.mxu0 %v632
  %1158 = vmatprep.subr.mxu0 %v628
  %1159 = vmatpush2.msra.mxu0 %v627
  %1160 = vmatprep.subr.mxu0 %v623
  %1161 = vmatpush2.msra.mxu0 %v622
  %1162 = vmatprep.subr.mxu0 %v618
  %1163 = vmatpush2.msra.mxu0 %v617
  %1164 = vmatprep.subr.mxu0 %v613
  %1165 = vmatpush2.msra.mxu0 %v612
  %1166 = vmatprep.subr.mxu0 %v608
  %1167 = vmatpush2.msra.mxu0 %v607
  %1168 = vmatprep.subr.mxu0 %v603
  %1169 = vmatpush2.msra.mxu0 %v602
  %1170 = vmatprep.subr.mxu0 %v598
  %1171 = vmatpush2.msra.mxu0 %v597
  %1172 = vmatprep.subr.mxu0 %v593
  %1173 = vmatpush2.msra.mxu0 %v592
  %1174 = vmatprep.subr.mxu0 %v588
  %1175 = vmatpush2.msra.mxu0 %v587
  %1176 = vmatprep.subr.mxu0 %v583
  %1177 = vmatpush2.msra.mxu0 %v582
  %1178 = vmatprep.mubr.f32.mxu0 %v856
  %1179 = vmatmul.mubr.f32.gmra.mxu0 %v852
  %v1180 = vpop.f32.mrf.mxu0
  %v1181 = vadd.f32 %v1110, %v1180
  %v1182 = vpop.f32.mrf.mxu0
  %v1183 = vadd.f32 %v1112, %v1182
  %1184 = vdwg.mxu0
  %1185 = vmatprep.subr.mxu0 %v738
  %1186 = vmatpush1.msra.mxu0 %v737
  %1187 = vmatprep.subr.mxu0 %v733
  %1188 = vmatpush1.msra.mxu0 %v732
  %1189 = vmatprep.subr.mxu0 %v728
  %1190 = vmatpush1.msra.mxu0 %v727
  %1191 = vmatprep.subr.mxu0 %v723
  %1192 = vmatpush1.msra.mxu0 %v722
  %1193 = vmatprep.subr.mxu0 %v718
  %1194 = vmatpush1.msra.mxu0 %v717
  %1195 = vmatprep.subr.mxu0 %v713
  %1196 = vmatpush1.msra.mxu0 %v712
  %1197 = vmatprep.subr.mxu0 %v708
  %1198 = vmatpush1.msra.mxu0 %v707
  %1199 = vmatprep.subr.mxu0 %v703
  %1200 = vmatpush1.msra.mxu0 %v702
  %1201 = vmatprep.subr.mxu0 %v698
  %1202 = vmatpush1.msra.mxu0 %v697
  %1203 = vmatprep.subr.mxu0 %v693
  %1204 = vmatpush1.msra.mxu0 %v692
  %1205 = vmatprep.subr.mxu0 %v688
  %1206 = vmatpush1.msra.mxu0 %v687
  %1207 = vmatprep.subr.mxu0 %v683
  %1208 = vmatpush1.msra.mxu0 %v682
  %1209 = vmatprep.subr.mxu0 %v678
  %1210 = vmatpush1.msra.mxu0 %v677
  %1211 = vmatprep.subr.mxu0 %v673
  %1212 = vmatpush1.msra.mxu0 %v672
  %1213 = vmatprep.subr.mxu0 %v668
  %1214 = vmatpush1.msra.mxu0 %v667
  %1215 = vmatprep.subr.mxu0 %v663
  %1216 = vmatpush1.msra.mxu0 %v662
  %1217 = vmatprep.subr.mxu0 %v818
  %1218 = vmatpush2.msra.mxu0 %v817
  %1219 = vmatprep.subr.mxu0 %v813
  %1220 = vmatpush2.msra.mxu0 %v812
  %1221 = vmatprep.subr.mxu0 %v808
  %1222 = vmatpush2.msra.mxu0 %v807
  %1223 = vmatprep.subr.mxu0 %v803
  %1224 = vmatpush2.msra.mxu0 %v802
  %1225 = vmatprep.subr.mxu0 %v798
  %1226 = vmatpush2.msra.mxu0 %v797
  %1227 = vmatprep.subr.mxu0 %v793
  %1228 = vmatpush2.msra.mxu0 %v792
  %1229 = vmatprep.subr.mxu0 %v788
  %1230 = vmatpush2.msra.mxu0 %v787
  %1231 = vmatprep.subr.mxu0 %v783
  %1232 = vmatpush2.msra.mxu0 %v782
  %1233 = vmatprep.subr.mxu0 %v778
  %1234 = vmatpush2.msra.mxu0 %v777
  %1235 = vmatprep.subr.mxu0 %v773
  %1236 = vmatpush2.msra.mxu0 %v772
  %1237 = vmatprep.subr.mxu0 %v768
  %1238 = vmatpush2.msra.mxu0 %v767
  %1239 = vmatprep.subr.mxu0 %v763
  %1240 = vmatpush2.msra.mxu0 %v762
  %1241 = vmatprep.subr.mxu0 %v758
  %1242 = vmatpush2.msra.mxu0 %v757
  %1243 = vmatprep.subr.mxu0 %v753
  %1244 = vmatpush2.msra.mxu0 %v752
  %1245 = vmatprep.subr.mxu0 %v748
  %1246 = vmatpush2.msra.mxu0 %v747
  %1247 = vmatprep.subr.mxu0 %v743
  %1248 = vmatpush2.msra.mxu0 %v742
  %1249 = vmatprep.mubr.f32.mxu0 %v864
  %1250 = vmatmul.mubr.f32.gmra.mxu0 %v860
  %v1251 = vpop.f32.mrf.mxu0
  %v1252 = vadd.f32 %v1181, %v1251
  %v1253 = vpop.f32.mrf.mxu0
  %v1254 = vadd.f32 %v1183, %v1253
  %1255 = vdwg.mxu0
  %1256 = vmatprep.subr.mxu0 %v100
  %1257 = vmatpush1.msra.mxu0 %v99
  %1258 = vmatprep.subr.mxu0 %v95
  %1259 = vmatpush1.msra.mxu0 %v94
  %1260 = vmatprep.subr.mxu0 %v90
  %1261 = vmatpush1.msra.mxu0 %v89
  %1262 = vmatprep.subr.mxu0 %v85
  %1263 = vmatpush1.msra.mxu0 %v84
  %1264 = vmatprep.subr.mxu0 %v80
  %1265 = vmatpush1.msra.mxu0 %v79
  %1266 = vmatprep.subr.mxu0 %v75
  %1267 = vmatpush1.msra.mxu0 %v74
  %1268 = vmatprep.subr.mxu0 %v70
  %1269 = vmatpush1.msra.mxu0 %v69
  %1270 = vmatprep.subr.mxu0 %v65
  %1271 = vmatpush1.msra.mxu0 %v64
  %1272 = vmatprep.subr.mxu0 %v60
  %1273 = vmatpush1.msra.mxu0 %v59
  %1274 = vmatprep.subr.mxu0 %v55
  %1275 = vmatpush1.msra.mxu0 %v54
  %1276 = vmatprep.subr.mxu0 %v50
  %1277 = vmatpush1.msra.mxu0 %v49
  %1278 = vmatprep.subr.mxu0 %v45
  %1279 = vmatpush1.msra.mxu0 %v44
  %1280 = vmatprep.subr.mxu0 %v40
  %1281 = vmatpush1.msra.mxu0 %v39
  %1282 = vmatprep.subr.mxu0 %v35
  %1283 = vmatpush1.msra.mxu0 %v34
  %1284 = vmatprep.subr.mxu0 %v30
  %1285 = vmatpush1.msra.mxu0 %v29
  %1286 = vmatprep.subr.mxu0 %v25
  %1287 = vmatpush1.msra.mxu0 %v24
  %1288 = vmatprep.subr.mxu0 %v180
  %1289 = vmatpush2.msra.mxu0 %v179
  %1290 = vmatprep.subr.mxu0 %v175
  %1291 = vmatpush2.msra.mxu0 %v174
  %1292 = vmatprep.subr.mxu0 %v170
  %1293 = vmatpush2.msra.mxu0 %v169
  %1294 = vmatprep.subr.mxu0 %v165
  %1295 = vmatpush2.msra.mxu0 %v164
  %1296 = vmatprep.subr.mxu0 %v160
  %1297 = vmatpush2.msra.mxu0 %v159
  %1298 = vmatprep.subr.mxu0 %v155
  %1299 = vmatpush2.msra.mxu0 %v154
  %1300 = vmatprep.subr.mxu0 %v150
  %1301 = vmatpush2.msra.mxu0 %v149
  %1302 = vmatprep.subr.mxu0 %v145
  %1303 = vmatpush2.msra.mxu0 %v144
  %1304 = vmatprep.subr.mxu0 %v140
  %1305 = vmatpush2.msra.mxu0 %v139
  %1306 = vmatprep.subr.mxu0 %v135
  %1307 = vmatpush2.msra.mxu0 %v134
  %1308 = vmatprep.subr.mxu0 %v130
  %1309 = vmatpush2.msra.mxu0 %v129
  %1310 = vmatprep.subr.mxu0 %v125
  %1311 = vmatpush2.msra.mxu0 %v124
  %1312 = vmatprep.subr.mxu0 %v120
  %1313 = vmatpush2.msra.mxu0 %v119
  %1314 = vmatprep.subr.mxu0 %v115
  %1315 = vmatpush2.msra.mxu0 %v114
  %1316 = vmatprep.subr.mxu0 %v110
  %1317 = vmatpush2.msra.mxu0 %v109
  %1318 = vmatprep.subr.mxu0 %v105
  %1319 = vmatpush2.msra.mxu0 %v104
  %1320 = vmatprep.mubr.f32.mxu0 %v832
  %1321 = vmatmul.mubr.f32.gmra.mxu0 %v828
  %v1322 = vpop.f32.mrf.mxu0
  %v1323 = vadd.f32 %v887, %v1322
  %v1324 = vpop.f32.mrf.mxu0
  %v1325 = vadd.f32 %v891, %v1324
  %1326 = vdwg.mxu0
  %1327 = vmatprep.subr.mxu0 %v260
  %1328 = vmatpush1.msra.mxu0 %v259
  %1329 = vmatprep.subr.mxu0 %v255
  %1330 = vmatpush1.msra.mxu0 %v254
  %1331 = vmatprep.subr.mxu0 %v250
  %1332 = vmatpush1.msra.mxu0 %v249
  %1333 = vmatprep.subr.mxu0 %v245
  %1334 = vmatpush1.msra.mxu0 %v244
  %1335 = vmatprep.subr.mxu0 %v240
  %1336 = vmatpush1.msra.mxu0 %v239
  %1337 = vmatprep.subr.mxu0 %v235
  %1338 = vmatpush1.msra.mxu0 %v234
  %1339 = vmatprep.subr.mxu0 %v230
  %1340 = vmatpush1.msra.mxu0 %v229
  %1341 = vmatprep.subr.mxu0 %v225
  %1342 = vmatpush1.msra.mxu0 %v224
  %1343 = vmatprep.subr.mxu0 %v220
  %1344 = vmatpush1.msra.mxu0 %v219
  %1345 = vmatprep.subr.mxu0 %v215
  %1346 = vmatpush1.msra.mxu0 %v214
  %1347 = vmatprep.subr.mxu0 %v210
  %1348 = vmatpush1.msra.mxu0 %v209
  %1349 = vmatprep.subr.mxu0 %v205
  %1350 = vmatpush1.msra.mxu0 %v204
  %1351 = vmatprep.subr.mxu0 %v200
  %1352 = vmatpush1.msra.mxu0 %v199
  %1353 = vmatprep.subr.mxu0 %v195
  %1354 = vmatpush1.msra.mxu0 %v194
  %1355 = vmatprep.subr.mxu0 %v190
  %1356 = vmatpush1.msra.mxu0 %v189
  %1357 = vmatprep.subr.mxu0 %v185
  %1358 = vmatpush1.msra.mxu0 %v184
  %1359 = vmatprep.subr.mxu0 %v340
  %1360 = vmatpush2.msra.mxu0 %v339
  %1361 = vmatprep.subr.mxu0 %v335
  %1362 = vmatpush2.msra.mxu0 %v334
  %1363 = vmatprep.subr.mxu0 %v330
  %1364 = vmatpush2.msra.mxu0 %v329
  %1365 = vmatprep.subr.mxu0 %v325
  %1366 = vmatpush2.msra.mxu0 %v324
  %1367 = vmatprep.subr.mxu0 %v320
  %1368 = vmatpush2.msra.mxu0 %v319
  %1369 = vmatprep.subr.mxu0 %v315
  %1370 = vmatpush2.msra.mxu0 %v314
  %1371 = vmatprep.subr.mxu0 %v310
  %1372 = vmatpush2.msra.mxu0 %v309
  %1373 = vmatprep.subr.mxu0 %v305
  %1374 = vmatpush2.msra.mxu0 %v304
  %1375 = vmatprep.subr.mxu0 %v300
  %1376 = vmatpush2.msra.mxu0 %v299
  %1377 = vmatprep.subr.mxu0 %v295
  %1378 = vmatpush2.msra.mxu0 %v294
  %1379 = vmatprep.subr.mxu0 %v290
  %1380 = vmatpush2.msra.mxu0 %v289
  %1381 = vmatprep.subr.mxu0 %v285
  %1382 = vmatpush2.msra.mxu0 %v284
  %1383 = vmatprep.subr.mxu0 %v280
  %1384 = vmatpush2.msra.mxu0 %v279
  %1385 = vmatprep.subr.mxu0 %v275
  %1386 = vmatpush2.msra.mxu0 %v274
  %1387 = vmatprep.subr.mxu0 %v270
  %1388 = vmatpush2.msra.mxu0 %v269
  %1389 = vmatprep.subr.mxu0 %v265
  %1390 = vmatpush2.msra.mxu0 %v264
  %1391 = vmatprep.mubr.f32.mxu0 %v840
  %1392 = vmatmul.mubr.f32.gmra.mxu0 %v836
  %v1393 = vpop.f32.mrf.mxu0
  %v1394 = vadd.f32 %v1323, %v1393
  %v1395 = vpop.f32.mrf.mxu0
  %v1396 = vadd.f32 %v1325, %v1395
  %1397 = vdwg.mxu0
  %1398 = vmatprep.subr.mxu0 %v420
  %1399 = vmatpush1.msra.mxu0 %v419
  %1400 = vmatprep.subr.mxu0 %v415
  %1401 = vmatpush1.msra.mxu0 %v414
  %1402 = vmatprep.subr.mxu0 %v410
  %1403 = vmatpush1.msra.mxu0 %v409
  %1404 = vmatprep.subr.mxu0 %v405
  %1405 = vmatpush1.msra.mxu0 %v404
  %1406 = vmatprep.subr.mxu0 %v400
  %1407 = vmatpush1.msra.mxu0 %v399
  %1408 = vmatprep.subr.mxu0 %v395
  %1409 = vmatpush1.msra.mxu0 %v394
  %1410 = vmatprep.subr.mxu0 %v390
  %1411 = vmatpush1.msra.mxu0 %v389
  %1412 = vmatprep.subr.mxu0 %v385
  %1413 = vmatpush1.msra.mxu0 %v384
  %1414 = vmatprep.subr.mxu0 %v380
  %1415 = vmatpush1.msra.mxu0 %v379
  %1416 = vmatprep.subr.mxu0 %v375
  %1417 = vmatpush1.msra.mxu0 %v374
  %1418 = vmatprep.subr.mxu0 %v370
  %1419 = vmatpush1.msra.mxu0 %v369
  %1420 = vmatprep.subr.mxu0 %v365
  %1421 = vmatpush1.msra.mxu0 %v364
  %1422 = vmatprep.subr.mxu0 %v360
  %1423 = vmatpush1.msra.mxu0 %v359
  %1424 = vmatprep.subr.mxu0 %v355
  %1425 = vmatpush1.msra.mxu0 %v354
  %1426 = vmatprep.subr.mxu0 %v350
  %1427 = vmatpush1.msra.mxu0 %v349
  %1428 = vmatprep.subr.mxu0 %v345
  %1429 = vmatpush1.msra.mxu0 %v344
  %1430 = vmatprep.subr.mxu0 %v500
  %1431 = vmatpush2.msra.mxu0 %v499
  %1432 = vmatprep.subr.mxu0 %v495
  %1433 = vmatpush2.msra.mxu0 %v494
  %1434 = vmatprep.subr.mxu0 %v490
  %1435 = vmatpush2.msra.mxu0 %v489
  %1436 = vmatprep.subr.mxu0 %v485
  %1437 = vmatpush2.msra.mxu0 %v484
  %1438 = vmatprep.subr.mxu0 %v480
  %1439 = vmatpush2.msra.mxu0 %v479
  %1440 = vmatprep.subr.mxu0 %v475
  %1441 = vmatpush2.msra.mxu0 %v474
  %1442 = vmatprep.subr.mxu0 %v470
  %1443 = vmatpush2.msra.mxu0 %v469
  %1444 = vmatprep.subr.mxu0 %v465
  %1445 = vmatpush2.msra.mxu0 %v464
  %1446 = vmatprep.subr.mxu0 %v460
  %1447 = vmatpush2.msra.mxu0 %v459
  %1448 = vmatprep.subr.mxu0 %v455
  %1449 = vmatpush2.msra.mxu0 %v454
  %1450 = vmatprep.subr.mxu0 %v450
  %1451 = vmatpush2.msra.mxu0 %v449
  %1452 = vmatprep.subr.mxu0 %v445
  %1453 = vmatpush2.msra.mxu0 %v444
  %1454 = vmatprep.subr.mxu0 %v440
  %1455 = vmatpush2.msra.mxu0 %v439
  %1456 = vmatprep.subr.mxu0 %v435
  %1457 = vmatpush2.msra.mxu0 %v434
  %1458 = vmatprep.subr.mxu0 %v430
  %1459 = vmatpush2.msra.mxu0 %v429
  %1460 = vmatprep.subr.mxu0 %v425
  %1461 = vmatpush2.msra.mxu0 %v424
  %1462 = vmatprep.mubr.f32.mxu0 %v848
  %1463 = vmatmul.mubr.f32.gmra.mxu0 %v844
  %v1464 = vpop.f32.mrf.mxu0
  %v1465 = vadd.f32 %v1394, %v1464
  %v1466 = vpop.f32.mrf.mxu0
  %v1467 = vadd.f32 %v1396, %v1466
  %1468 = vdwg.mxu0
  %1469 = vmatprep.subr.mxu0 %v580
  %1470 = vmatpush1.msra.mxu0 %v579
  %1471 = vmatprep.subr.mxu0 %v575
  %1472 = vmatpush1.msra.mxu0 %v574
  %1473 = vmatprep.subr.mxu0 %v570
  %1474 = vmatpush1.msra.mxu0 %v569
  %1475 = vmatprep.subr.mxu0 %v565
  %1476 = vmatpush1.msra.mxu0 %v564
  %1477 = vmatprep.subr.mxu0 %v560
  %1478 = vmatpush1.msra.mxu0 %v559
  %1479 = vmatprep.subr.mxu0 %v555
  %1480 = vmatpush1.msra.mxu0 %v554
  %1481 = vmatprep.subr.mxu0 %v550
  %1482 = vmatpush1.msra.mxu0 %v549
  %1483 = vmatprep.subr.mxu0 %v545
  %1484 = vmatpush1.msra.mxu0 %v544
  %1485 = vmatprep.subr.mxu0 %v540
  %1486 = vmatpush1.msra.mxu0 %v539
  %1487 = vmatprep.subr.mxu0 %v535
  %1488 = vmatpush1.msra.mxu0 %v534
  %1489 = vmatprep.subr.mxu0 %v530
  %1490 = vmatpush1.msra.mxu0 %v529
  %1491 = vmatprep.subr.mxu0 %v525
  %1492 = vmatpush1.msra.mxu0 %v524
  %1493 = vmatprep.subr.mxu0 %v520
  %1494 = vmatpush1.msra.mxu0 %v519
  %1495 = vmatprep.subr.mxu0 %v515
  %1496 = vmatpush1.msra.mxu0 %v514
  %1497 = vmatprep.subr.mxu0 %v510
  %1498 = vmatpush1.msra.mxu0 %v509
  %1499 = vmatprep.subr.mxu0 %v505
  %1500 = vmatpush1.msra.mxu0 %v504
  %1501 = vmatprep.subr.mxu0 %v660
  %1502 = vmatpush2.msra.mxu0 %v659
  %1503 = vmatprep.subr.mxu0 %v655
  %1504 = vmatpush2.msra.mxu0 %v654
  %1505 = vmatprep.subr.mxu0 %v650
  %1506 = vmatpush2.msra.mxu0 %v649
  %1507 = vmatprep.subr.mxu0 %v645
  %1508 = vmatpush2.msra.mxu0 %v644
  %1509 = vmatprep.subr.mxu0 %v640
  %1510 = vmatpush2.msra.mxu0 %v639
  %1511 = vmatprep.subr.mxu0 %v635
  %1512 = vmatpush2.msra.mxu0 %v634
  %1513 = vmatprep.subr.mxu0 %v630
  %1514 = vmatpush2.msra.mxu0 %v629
  %1515 = vmatprep.subr.mxu0 %v625
  %1516 = vmatpush2.msra.mxu0 %v624
  %1517 = vmatprep.subr.mxu0 %v620
  %1518 = vmatpush2.msra.mxu0 %v619
  %1519 = vmatprep.subr.mxu0 %v615
  %1520 = vmatpush2.msra.mxu0 %v614
  %1521 = vmatprep.subr.mxu0 %v610
  %1522 = vmatpush2.msra.mxu0 %v609
  %1523 = vmatprep.subr.mxu0 %v605
  %1524 = vmatpush2.msra.mxu0 %v604
  %1525 = vmatprep.subr.mxu0 %v600
  %1526 = vmatpush2.msra.mxu0 %v599
  %1527 = vmatprep.subr.mxu0 %v595
  %1528 = vmatpush2.msra.mxu0 %v594
  %1529 = vmatprep.subr.mxu0 %v590
  %1530 = vmatpush2.msra.mxu0 %v589
  %1531 = vmatprep.subr.mxu0 %v585
  %1532 = vmatpush2.msra.mxu0 %v584
  %1533 = vmatprep.mubr.f32.mxu0 %v856
  %1534 = vmatmul.mubr.f32.gmra.mxu0 %v852
  %v1535 = vpop.f32.mrf.mxu0
  %v1536 = vadd.f32 %v1465, %v1535
  %v1537 = vpop.f32.mrf.mxu0
  %v1538 = vadd.f32 %v1467, %v1537
  %1539 = vdwg.mxu0
  %1540 = vmatprep.subr.mxu0 %v740
  %1541 = vmatpush1.msra.mxu0 %v739
  %1542 = vmatprep.subr.mxu0 %v735
  %1543 = vmatpush1.msra.mxu0 %v734
  %1544 = vmatprep.subr.mxu0 %v730
  %1545 = vmatpush1.msra.mxu0 %v729
  %1546 = vmatprep.subr.mxu0 %v725
  %1547 = vmatpush1.msra.mxu0 %v724
  %1548 = vmatprep.subr.mxu0 %v720
  %1549 = vmatpush1.msra.mxu0 %v719
  %1550 = vmatprep.subr.mxu0 %v715
  %1551 = vmatpush1.msra.mxu0 %v714
  %1552 = vmatprep.subr.mxu0 %v710
  %1553 = vmatpush1.msra.mxu0 %v709
  %1554 = vmatprep.subr.mxu0 %v705
  %1555 = vmatpush1.msra.mxu0 %v704
  %1556 = vmatprep.subr.mxu0 %v700
  %1557 = vmatpush1.msra.mxu0 %v699
  %1558 = vmatprep.subr.mxu0 %v695
  %1559 = vmatpush1.msra.mxu0 %v694
  %1560 = vmatprep.subr.mxu0 %v690
  %1561 = vmatpush1.msra.mxu0 %v689
  %1562 = vmatprep.subr.mxu0 %v685
  %1563 = vmatpush1.msra.mxu0 %v684
  %1564 = vmatprep.subr.mxu0 %v680
  %1565 = vmatpush1.msra.mxu0 %v679
  %1566 = vmatprep.subr.mxu0 %v675
  %1567 = vmatpush1.msra.mxu0 %v674
  %1568 = vmatprep.subr.mxu0 %v670
  %1569 = vmatpush1.msra.mxu0 %v669
  %1570 = vmatprep.subr.mxu0 %v665
  %1571 = vmatpush1.msra.mxu0 %v664
  %1572 = vmatprep.subr.mxu0 %v820
  %1573 = vmatpush2.msra.mxu0 %v819
  %1574 = vmatprep.subr.mxu0 %v815
  %1575 = vmatpush2.msra.mxu0 %v814
  %1576 = vmatprep.subr.mxu0 %v810
  %1577 = vmatpush2.msra.mxu0 %v809
  %1578 = vmatprep.subr.mxu0 %v805
  %1579 = vmatpush2.msra.mxu0 %v804
  %1580 = vmatprep.subr.mxu0 %v800
  %1581 = vmatpush2.msra.mxu0 %v799
  %1582 = vmatprep.subr.mxu0 %v795
  %1583 = vmatpush2.msra.mxu0 %v794
  %1584 = vmatprep.subr.mxu0 %v790
  %1585 = vmatpush2.msra.mxu0 %v789
  %1586 = vmatprep.subr.mxu0 %v785
  %1587 = vmatpush2.msra.mxu0 %v784
  %1588 = vmatprep.subr.mxu0 %v780
  %1589 = vmatpush2.msra.mxu0 %v779
  %1590 = vmatprep.subr.mxu0 %v775
  %1591 = vmatpush2.msra.mxu0 %v774
  %1592 = vmatprep.subr.mxu0 %v770
  %1593 = vmatpush2.msra.mxu0 %v769
  %1594 = vmatprep.subr.mxu0 %v765
  %1595 = vmatpush2.msra.mxu0 %v764
  %1596 = vmatprep.subr.mxu0 %v760
  %1597 = vmatpush2.msra.mxu0 %v759
  %1598 = vmatprep.subr.mxu0 %v755
  %1599 = vmatpush2.msra.mxu0 %v754
  %1600 = vmatprep.subr.mxu0 %v750
  %1601 = vmatpush2.msra.mxu0 %v749
  %1602 = vmatprep.subr.mxu0 %v745
  %1603 = vmatpush2.msra.mxu0 %v744
  %1604 = vmatprep.mubr.f32.mxu0 %v864
  %1605 = vmatmul.mubr.f32.gmra.mxu0 %v860
  %v1606 = vpop.f32.mrf.mxu0
  %v1607 = vadd.f32 %v1536, %v1606
  %v1608 = vpop.f32.mrf.mxu0
  %v1609 = vadd.f32 %v1538, %v1608
  %1610 = vdwg.mxu0
  %1611 = vmatprep.subr.mxu0 0.0
  %1612 = vmatpush1.msra.mxu0 %v101
  %1613 = vmatprep.subr.mxu0 0.0
  %1614 = vmatpush1.msra.mxu0 %v96
  %1615 = vmatprep.subr.mxu0 0.0
  %1616 = vmatpush1.msra.mxu0 %v91
  %1617 = vmatprep.subr.mxu0 0.0
  %1618 = vmatpush1.msra.mxu0 %v86
  %1619 = vmatprep.subr.mxu0 0.0
  %1620 = vmatpush1.msra.mxu0 %v81
  %1621 = vmatprep.subr.mxu0 0.0
  %1622 = vmatpush1.msra.mxu0 %v76
  %1623 = vmatprep.subr.mxu0 0.0
  %1624 = vmatpush1.msra.mxu0 %v71
  %1625 = vmatprep.subr.mxu0 0.0
  %1626 = vmatpush1.msra.mxu0 %v66
  %1627 = vmatprep.subr.mxu0 0.0
  %1628 = vmatpush1.msra.mxu0 %v61
  %1629 = vmatprep.subr.mxu0 0.0
  %1630 = vmatpush1.msra.mxu0 %v56
  %1631 = vmatprep.subr.mxu0 0.0
  %1632 = vmatpush1.msra.mxu0 %v51
  %1633 = vmatprep.subr.mxu0 0.0
  %1634 = vmatpush1.msra.mxu0 %v46
  %1635 = vmatprep.subr.mxu0 0.0
  %1636 = vmatpush1.msra.mxu0 %v41
  %1637 = vmatprep.subr.mxu0 0.0
  %1638 = vmatpush1.msra.mxu0 %v36
  %1639 = vmatprep.subr.mxu0 0.0
  %1640 = vmatpush1.msra.mxu0 %v31
  %1641 = vmatprep.subr.mxu0 0.0
  %1642 = vmatpush1.msra.mxu0 %v26
  %1643 = vmatprep.subr.mxu0 0.0
  %1644 = vmatpush2.msra.mxu0 %v181
  %1645 = vmatprep.subr.mxu0 0.0
  %1646 = vmatpush2.msra.mxu0 %v176
  %1647 = vmatprep.subr.mxu0 0.0
  %1648 = vmatpush2.msra.mxu0 %v171
  %1649 = vmatprep.subr.mxu0 0.0
  %1650 = vmatpush2.msra.mxu0 %v166
  %1651 = vmatprep.subr.mxu0 0.0
  %1652 = vmatpush2.msra.mxu0 %v161
  %1653 = vmatprep.subr.mxu0 0.0
  %1654 = vmatpush2.msra.mxu0 %v156
  %1655 = vmatprep.subr.mxu0 0.0
  %1656 = vmatpush2.msra.mxu0 %v151
  %1657 = vmatprep.subr.mxu0 0.0
  %1658 = vmatpush2.msra.mxu0 %v146
  %1659 = vmatprep.subr.mxu0 0.0
  %1660 = vmatpush2.msra.mxu0 %v141
  %1661 = vmatprep.subr.mxu0 0.0
  %1662 = vmatpush2.msra.mxu0 %v136
  %1663 = vmatprep.subr.mxu0 0.0
  %1664 = vmatpush2.msra.mxu0 %v131
  %1665 = vmatprep.subr.mxu0 0.0
  %1666 = vmatpush2.msra.mxu0 %v126
  %1667 = vmatprep.subr.mxu0 0.0
  %1668 = vmatpush2.msra.mxu0 %v121
  %1669 = vmatprep.subr.mxu0 0.0
  %1670 = vmatpush2.msra.mxu0 %v116
  %1671 = vmatprep.subr.mxu0 0.0
  %1672 = vmatpush2.msra.mxu0 %v111
  %1673 = vmatprep.subr.mxu0 0.0
  %1674 = vmatpush2.msra.mxu0 %v106
  %1675 = vmatprep.mubr.f32.mxu0 %v832
  %1676 = vmatmul.mubr.f32.gmra.mxu0 %v828
  %v1677 = vpop.f32.mrf.mxu0
  %v1678 = vadd.f32 %v895, %v1677
  %v1679 = vpop.f32.mrf.mxu0
  %1680 = vdwg.mxu0
  %1681 = vmatprep.subr.mxu0 0.0
  %1682 = vmatpush1.msra.mxu0 %v261
  %1683 = vmatprep.subr.mxu0 0.0
  %1684 = vmatpush1.msra.mxu0 %v256
  %1685 = vmatprep.subr.mxu0 0.0
  %1686 = vmatpush1.msra.mxu0 %v251
  %1687 = vmatprep.subr.mxu0 0.0
  %1688 = vmatpush1.msra.mxu0 %v246
  %1689 = vmatprep.subr.mxu0 0.0
  %1690 = vmatpush1.msra.mxu0 %v241
  %1691 = vmatprep.subr.mxu0 0.0
  %1692 = vmatpush1.msra.mxu0 %v236
  %1693 = vmatprep.subr.mxu0 0.0
  %1694 = vmatpush1.msra.mxu0 %v231
  %1695 = vmatprep.subr.mxu0 0.0
  %1696 = vmatpush1.msra.mxu0 %v226
  %1697 = vmatprep.subr.mxu0 0.0
  %1698 = vmatpush1.msra.mxu0 %v221
  %1699 = vmatprep.subr.mxu0 0.0
  %1700 = vmatpush1.msra.mxu0 %v216
  %1701 = vmatprep.subr.mxu0 0.0
  %1702 = vmatpush1.msra.mxu0 %v211
  %1703 = vmatprep.subr.mxu0 0.0
  %1704 = vmatpush1.msra.mxu0 %v206
  %1705 = vmatprep.subr.mxu0 0.0
  %1706 = vmatpush1.msra.mxu0 %v201
  %1707 = vmatprep.subr.mxu0 0.0
  %1708 = vmatpush1.msra.mxu0 %v196
  %1709 = vmatprep.subr.mxu0 0.0
  %1710 = vmatpush1.msra.mxu0 %v191
  %1711 = vmatprep.subr.mxu0 0.0
  %1712 = vmatpush1.msra.mxu0 %v186
  %1713 = vmatprep.subr.mxu0 0.0
  %1714 = vmatpush2.msra.mxu0 %v341
  %1715 = vmatprep.subr.mxu0 0.0
  %1716 = vmatpush2.msra.mxu0 %v336
  %1717 = vmatprep.subr.mxu0 0.0
  %1718 = vmatpush2.msra.mxu0 %v331
  %1719 = vmatprep.subr.mxu0 0.0
  %1720 = vmatpush2.msra.mxu0 %v326
  %1721 = vmatprep.subr.mxu0 0.0
  %1722 = vmatpush2.msra.mxu0 %v321
  %1723 = vmatprep.subr.mxu0 0.0
  %1724 = vmatpush2.msra.mxu0 %v316
  %1725 = vmatprep.subr.mxu0 0.0
  %1726 = vmatpush2.msra.mxu0 %v311
  %1727 = vmatprep.subr.mxu0 0.0
  %1728 = vmatpush2.msra.mxu0 %v306
  %1729 = vmatprep.subr.mxu0 0.0
  %1730 = vmatpush2.msra.mxu0 %v301
  %1731 = vmatprep.subr.mxu0 0.0
  %1732 = vmatpush2.msra.mxu0 %v296
  %1733 = vmatprep.subr.mxu0 0.0
  %1734 = vmatpush2.msra.mxu0 %v291
  %1735 = vmatprep.subr.mxu0 0.0
  %1736 = vmatpush2.msra.mxu0 %v286
  %1737 = vmatprep.subr.mxu0 0.0
  %1738 = vmatpush2.msra.mxu0 %v281
  %1739 = vmatprep.subr.mxu0 0.0
  %1740 = vmatpush2.msra.mxu0 %v276
  %1741 = vmatprep.subr.mxu0 0.0
  %1742 = vmatpush2.msra.mxu0 %v271
  %1743 = vmatprep.subr.mxu0 0.0
  %1744 = vmatpush2.msra.mxu0 %v266
  %1745 = vmatprep.mubr.f32.mxu0 %v840
  %1746 = vmatmul.mubr.f32.gmra.mxu0 %v836
  %v1747 = vpop.f32.mrf.mxu0
  %v1748 = vadd.f32 %v1678, %v1747
  %v1749 = vpop.f32.mrf.mxu0
  %1750 = vdwg.mxu0
  %1751 = vmatprep.subr.mxu0 0.0
  %1752 = vmatpush1.msra.mxu0 %v421
  %1753 = vmatprep.subr.mxu0 0.0
  %1754 = vmatpush1.msra.mxu0 %v416
  %1755 = vmatprep.subr.mxu0 0.0
  %1756 = vmatpush1.msra.mxu0 %v411
  %1757 = vmatprep.subr.mxu0 0.0
  %1758 = vmatpush1.msra.mxu0 %v406
  %1759 = vmatprep.subr.mxu0 0.0
  %1760 = vmatpush1.msra.mxu0 %v401
  %1761 = vmatprep.subr.mxu0 0.0
  %1762 = vmatpush1.msra.mxu0 %v396
  %1763 = vmatprep.subr.mxu0 0.0
  %1764 = vmatpush1.msra.mxu0 %v391
  %1765 = vmatprep.subr.mxu0 0.0
  %1766 = vmatpush1.msra.mxu0 %v386
  %1767 = vmatprep.subr.mxu0 0.0
  %1768 = vmatpush1.msra.mxu0 %v381
  %1769 = vmatprep.subr.mxu0 0.0
  %1770 = vmatpush1.msra.mxu0 %v376
  %1771 = vmatprep.subr.mxu0 0.0
  %1772 = vmatpush1.msra.mxu0 %v371
  %1773 = vmatprep.subr.mxu0 0.0
  %1774 = vmatpush1.msra.mxu0 %v366
  %1775 = vmatprep.subr.mxu0 0.0
  %1776 = vmatpush1.msra.mxu0 %v361
  %1777 = vmatprep.subr.mxu0 0.0
  %1778 = vmatpush1.msra.mxu0 %v356
  %1779 = vmatprep.subr.mxu0 0.0
  %1780 = vmatpush1.msra.mxu0 %v351
  %1781 = vmatprep.subr.mxu0 0.0
  %1782 = vmatpush1.msra.mxu0 %v346
  %1783 = vmatprep.subr.mxu0 0.0
  %1784 = vmatpush2.msra.mxu0 %v501
  %1785 = vmatprep.subr.mxu0 0.0
  %1786 = vmatpush2.msra.mxu0 %v496
  %1787 = vmatprep.subr.mxu0 0.0
  %1788 = vmatpush2.msra.mxu0 %v491
  %1789 = vmatprep.subr.mxu0 0.0
  %1790 = vmatpush2.msra.mxu0 %v486
  %1791 = vmatprep.subr.mxu0 0.0
  %1792 = vmatpush2.msra.mxu0 %v481
  %1793 = vmatprep.subr.mxu0 0.0
  %1794 = vmatpush2.msra.mxu0 %v476
  %1795 = vmatprep.subr.mxu0 0.0
  %1796 = vmatpush2.msra.mxu0 %v471
  %1797 = vmatprep.subr.mxu0 0.0
  %1798 = vmatpush2.msra.mxu0 %v466
  %1799 = vmatprep.subr.mxu0 0.0
  %1800 = vmatpush2.msra.mxu0 %v461
  %1801 = vmatprep.subr.mxu0 0.0
  %1802 = vmatpush2.msra.mxu0 %v456
  %1803 = vmatprep.subr.mxu0 0.0
  %1804 = vmatpush2.msra.mxu0 %v451
  %1805 = vmatprep.subr.mxu0 0.0
  %1806 = vmatpush2.msra.mxu0 %v446
  %1807 = vmatprep.subr.mxu0 0.0
  %1808 = vmatpush2.msra.mxu0 %v441
  %1809 = vmatprep.subr.mxu0 0.0
  %1810 = vmatpush2.msra.mxu0 %v436
  %1811 = vmatprep.subr.mxu0 0.0
  %1812 = vmatpush2.msra.mxu0 %v431
  %1813 = vmatprep.subr.mxu0 0.0
  %1814 = vmatpush2.msra.mxu0 %v426
  %1815 = vmatprep.mubr.f32.mxu0 %v848
  %1816 = vmatmul.mubr.f32.gmra.mxu0 %v844
  %v1817 = vpop.f32.mrf.mxu0
  %v1818 = vadd.f32 %v1748, %v1817
  %v1819 = vpop.f32.mrf.mxu0
  %1820 = vdwg.mxu0
  %1821 = vmatprep.subr.mxu0 0.0
  %1822 = vmatpush1.msra.mxu0 %v581
  %1823 = vmatprep.subr.mxu0 0.0
  %1824 = vmatpush1.msra.mxu0 %v576
  %1825 = vmatprep.subr.mxu0 0.0
  %1826 = vmatpush1.msra.mxu0 %v571
  %1827 = vmatprep.subr.mxu0 0.0
  %1828 = vmatpush1.msra.mxu0 %v566
  %1829 = vmatprep.subr.mxu0 0.0
  %1830 = vmatpush1.msra.mxu0 %v561
  %1831 = vmatprep.subr.mxu0 0.0
  %1832 = vmatpush1.msra.mxu0 %v556
  %1833 = vmatprep.subr.mxu0 0.0
  %1834 = vmatpush1.msra.mxu0 %v551
  %1835 = vmatprep.subr.mxu0 0.0
  %1836 = vmatpush1.msra.mxu0 %v546
  %1837 = vmatprep.subr.mxu0 0.0
  %1838 = vmatpush1.msra.mxu0 %v541
  %1839 = vmatprep.subr.mxu0 0.0
  %1840 = vmatpush1.msra.mxu0 %v536
  %1841 = vmatprep.subr.mxu0 0.0
  %1842 = vmatpush1.msra.mxu0 %v531
  %1843 = vmatprep.subr.mxu0 0.0
  %1844 = vmatpush1.msra.mxu0 %v526
  %1845 = vmatprep.subr.mxu0 0.0
  %1846 = vmatpush1.msra.mxu0 %v521
  %1847 = vmatprep.subr.mxu0 0.0
  %1848 = vmatpush1.msra.mxu0 %v516
  %1849 = vmatprep.subr.mxu0 0.0
  %1850 = vmatpush1.msra.mxu0 %v511
  %1851 = vmatprep.subr.mxu0 0.0
  %1852 = vmatpush1.msra.mxu0 %v506
  %1853 = vmatprep.subr.mxu0 0.0
  %1854 = vmatpush2.msra.mxu0 %v661
  %1855 = vmatprep.subr.mxu0 0.0
  %1856 = vmatpush2.msra.mxu0 %v656
  %1857 = vmatprep.subr.mxu0 0.0
  %1858 = vmatpush2.msra.mxu0 %v651
  %1859 = vmatprep.subr.mxu0 0.0
  %1860 = vmatpush2.msra.mxu0 %v646
  %1861 = vmatprep.subr.mxu0 0.0
  %1862 = vmatpush2.msra.mxu0 %v641
  %1863 = vmatprep.subr.mxu0 0.0
  %1864 = vmatpush2.msra.mxu0 %v636
  %1865 = vmatprep.subr.mxu0 0.0
  %1866 = vmatpush2.msra.mxu0 %v631
  %1867 = vmatprep.subr.mxu0 0.0
  %1868 = vmatpush2.msra.mxu0 %v626
  %1869 = vmatprep.subr.mxu0 0.0
  %1870 = vmatpush2.msra.mxu0 %v621
  %1871 = vmatprep.subr.mxu0 0.0
  %1872 = vmatpush2.msra.mxu0 %v616
  %1873 = vmatprep.subr.mxu0 0.0
  %1874 = vmatpush2.msra.mxu0 %v611
  %1875 = vmatprep.subr.mxu0 0.0
  %1876 = vmatpush2.msra.mxu0 %v606
  %1877 = vmatprep.subr.mxu0 0.0
  %1878 = vmatpush2.msra.mxu0 %v601
  %1879 = vmatprep.subr.mxu0 0.0
  %1880 = vmatpush2.msra.mxu0 %v596
  %1881 = vmatprep.subr.mxu0 0.0
  %1882 = vmatpush2.msra.mxu0 %v591
  %1883 = vmatprep.subr.mxu0 0.0
  %1884 = vmatpush2.msra.mxu0 %v586
  %1885 = vmatprep.mubr.f32.mxu0 %v856
  %1886 = vmatmul.mubr.f32.gmra.mxu0 %v852
  %v1887 = vpop.f32.mrf.mxu0
  %v1888 = vadd.f32 %v1818, %v1887
  %v1889 = vpop.f32.mrf.mxu0
  %1890 = vdwg.mxu0
  %1891 = vmatprep.subr.mxu0 0.0
  %1892 = vmatpush1.msra.mxu0 %v741
  %1893 = vmatprep.subr.mxu0 0.0
  %1894 = vmatpush1.msra.mxu0 %v736
  %1895 = vmatprep.subr.mxu0 0.0
  %1896 = vmatpush1.msra.mxu0 %v731
  %1897 = vmatprep.subr.mxu0 0.0
  %1898 = vmatpush1.msra.mxu0 %v726
  %1899 = vmatprep.subr.mxu0 0.0
  %1900 = vmatpush1.msra.mxu0 %v721
  %1901 = vmatprep.subr.mxu0 0.0
  %1902 = vmatpush1.msra.mxu0 %v716
  %1903 = vmatprep.subr.mxu0 0.0
  %1904 = vmatpush1.msra.mxu0 %v711
  %1905 = vmatprep.subr.mxu0 0.0
  %1906 = vmatpush1.msra.mxu0 %v706
  %1907 = vmatprep.subr.mxu0 0.0
  %1908 = vmatpush1.msra.mxu0 %v701
  %1909 = vmatprep.subr.mxu0 0.0
  %1910 = vmatpush1.msra.mxu0 %v696
  %1911 = vmatprep.subr.mxu0 0.0
  %1912 = vmatpush1.msra.mxu0 %v691
  %1913 = vmatprep.subr.mxu0 0.0
  %1914 = vmatpush1.msra.mxu0 %v686
  %1915 = vmatprep.subr.mxu0 0.0
  %1916 = vmatpush1.msra.mxu0 %v681
  %1917 = vmatprep.subr.mxu0 0.0
  %1918 = vmatpush1.msra.mxu0 %v676
  %1919 = vmatprep.subr.mxu0 0.0
  %1920 = vmatpush1.msra.mxu0 %v671
  %1921 = vmatprep.subr.mxu0 0.0
  %1922 = vmatpush1.msra.mxu0 %v666
  %1923 = vmatprep.subr.mxu0 0.0
  %1924 = vmatpush2.msra.mxu0 %v821
  %1925 = vmatprep.subr.mxu0 0.0
  %1926 = vmatpush2.msra.mxu0 %v816
  %1927 = vmatprep.subr.mxu0 0.0
  %1928 = vmatpush2.msra.mxu0 %v811
  %1929 = vmatprep.subr.mxu0 0.0
  %1930 = vmatpush2.msra.mxu0 %v806
  %1931 = vmatprep.subr.mxu0 0.0
  %1932 = vmatpush2.msra.mxu0 %v801
  %1933 = vmatprep.subr.mxu0 0.0
  %1934 = vmatpush2.msra.mxu0 %v796
  %1935 = vmatprep.subr.mxu0 0.0
  %1936 = vmatpush2.msra.mxu0 %v791
  %1937 = vmatprep.subr.mxu0 0.0
  %1938 = vmatpush2.msra.mxu0 %v786
  %1939 = vmatprep.subr.mxu0 0.0
  %1940 = vmatpush2.msra.mxu0 %v781
  %1941 = vmatprep.subr.mxu0 0.0
  %1942 = vmatpush2.msra.mxu0 %v776
  %1943 = vmatprep.subr.mxu0 0.0
  %1944 = vmatpush2.msra.mxu0 %v771
  %1945 = vmatprep.subr.mxu0 0.0
  %1946 = vmatpush2.msra.mxu0 %v766
  %1947 = vmatprep.subr.mxu0 0.0
  %1948 = vmatpush2.msra.mxu0 %v761
  %1949 = vmatprep.subr.mxu0 0.0
  %1950 = vmatpush2.msra.mxu0 %v756
  %1951 = vmatprep.subr.mxu0 0.0
  %1952 = vmatpush2.msra.mxu0 %v751
  %1953 = vmatprep.subr.mxu0 0.0
  %1954 = vmatpush2.msra.mxu0 %v746
  %1955 = vmatprep.mubr.f32.mxu0 %v864
  %1956 = vmatmul.mubr.f32.gmra.mxu0 %v860
  %v1957 = vpop.f32.mrf.mxu0
  %v1958 = vadd.f32 %v1888, %v1957
  %v1959 = vpop.f32.mrf.mxu0
  %1960 = vdwg.mxu0
  %v1961 = vmax.f32 %v1252, 0.0
  %v1962 = vmax.f32 %v1254, 0.0
  %v1963 = vmax.f32 %v1607, 0.0
  %v1964 = vmax.f32 %v1609, 0.0
  %v1965 = vmax.f32 %v1958, 0.0
  %v1966 = vld [vmem:[%s3] sm:$0xff]
  %v1967 = vld [vmem:[%s3 + $0x8] sm:$0xff]
  %v1968 = vld [vmem:[%s3 + $0x10] sm:$0xff]
  %v1969 = vld [vmem:[%s3 + $0x18] sm:$0xff]
  %v1970 = vld [vmem:[%s3 + $0x20] sm:$0xff]
  %v1971 = vld [vmem:[%s3 + $0x28] sm:$0xff]
  %v1972 = vld [vmem:[%s3 + $0x30] sm:$0xff]
  %v1973 = vld [vmem:[%s3 + $0x38] sm:$0xff]
  %v1974 = vld [vmem:[%s3 + $0x40] sm:$0xff]
  %v1975 = vld [vmem:[%s3 + $0x48] sm:$0xff]
  %v1976 = vld [vmem:[%s3 + $0x50] sm:$0xff]
  %v1977 = vld [vmem:[%s3 + $0x58] sm:$0xff]
  %v1978 = vld [vmem:[%s3 + $0x60] sm:$0xff]
  %v1979 = vld [vmem:[%s3 + $0x68] sm:$0xff]
  %v1980 = vld [vmem:[%s3 + $0x70] sm:$0xff]
  %v1981 = vld [vmem:[%s3 + $0x78] sm:$0xff]
  %v1982 = vld [vmem:[%s3 + $0x80] sm:$0xff]
  %v1983 = vld [vmem:[%s3 + $0x88] sm:$0xff]
  %v1984 = vld [vmem:[%s3 + $0x90] sm:$0xff]
  %v1985 = vld [vmem:[%s3 + $0x98] sm:$0xff]
  %v1986 = vld [vmem:[%s3 + $0xa0] sm:$0xff]
  %v1987 = vld [vmem:[%s3 + $0xa8] sm:$0xff]
  %v1988 = vld [vmem:[%s3 + $0xb0] sm:$0xff]
  %v1989 = vld [vmem:[%s3 + $0xb8] sm:$0xff]
  %v1990 = vld [vmem:[%s3 + $0xc0] sm:$0xff]
  %v1991 = vld [vmem:[%s3 + $0xc8] sm:$0xff]
  %v1992 = vld [vmem:[%s3 + $0xd0] sm:$0xff]
  %v1993 = vld [vmem:[%s3 + $0xd8] sm:$0xff]
  %v1994 = vld [vmem:[%s3 + $0xe0] sm:$0xff]
  %v1995 = vld [vmem:[%s3 + $0xe8] sm:$0xff]
  %v1996 = vld [vmem:[%s3 + $0xf0] sm:$0xff]
  %v1997 = vld [vmem:[%s3 + $0xf8] sm:$0xff]
  %v1998 = vld [vmem:[%s3 + $0x100] sm:$0xff]
  %v1999 = vld [vmem:[%s3 + $0x108] sm:$0xff]
  %v2000 = vld [vmem:[%s3 + $0x110] sm:$0xff]
  %v2001 = vld [vmem:[%s3 + $0x118] sm:$0xff]
  %v2002 = vld [vmem:[%s3 + $0x120] sm:$0xff]
  %v2003 = vld [vmem:[%s3 + $0x128] sm:$0xff]
  %v2004 = vld [vmem:[%s3 + $0x130] sm:$0xff]
  %v2005 = vld [vmem:[%s3 + $0x138] sm:$0xff]
  %v2006 = vld [vmem:[%s3 + $0x140] sm:$0xff]
  %v2007 = vld [vmem:[%s3 + $0x148] sm:$0xff]
  %v2008 = vld [vmem:[%s3 + $0x150] sm:$0xff]
  %v2009 = vld [vmem:[%s3 + $0x158] sm:$0xff]
  %v2010 = vld [vmem:[%s3 + $0x160] sm:$0xff]
  %v2011 = vld [vmem:[%s3 + $0x168] sm:$0xff]
  %v2012 = vld [vmem:[%s3 + $0x170] sm:$0xff]
  %v2013 = vld [vmem:[%s3 + $0x178] sm:$0xff]
  %v2014 = vld [vmem:[%s3 + $0x180] sm:$0xff]
  %v2015 = vld [vmem:[%s3 + $0x188] sm:$0xff]
  %v2016 = vld [vmem:[%s3 + $0x190] sm:$0xff]
  %v2017 = vld [vmem:[%s3 + $0x198] sm:$0xff]
  %v2018 = vld [vmem:[%s3 + $0x1a0] sm:$0xff]
  %v2019 = vld [vmem:[%s3 + $0x1a8] sm:$0xff]
  %v2020 = vld [vmem:[%s3 + $0x1b0] sm:$0xff]
  %v2021 = vld [vmem:[%s3 + $0x1b8] sm:$0xff]
  %v2022 = vld [vmem:[%s3 + $0x1c0] sm:$0xff]
  %v2023 = vld [vmem:[%s3 + $0x1c8] sm:$0xff]
  %v2024 = vld [vmem:[%s3 + $0x1d0] sm:$0xff]
  %v2025 = vld [vmem:[%s3 + $0x1d8] sm:$0xff]
  %v2026 = vld [vmem:[%s3 + $0x1e0] sm:$0xff]
  %v2027 = vld [vmem:[%s3 + $0x1e8] sm:$0xff]
  %v2028 = vld [vmem:[%s3 + $0x1f0] sm:$0xff]
  %v2029 = vld [vmem:[%s3 + $0x1f8] sm:$0xff]
  %v2030 = vld [vmem:[%s3 + $0x200] sm:$0xff]
  %v2031 = vld [vmem:[%s3 + $0x208] sm:$0xff]
  %v2032 = vld [vmem:[%s3 + $0x210] sm:$0xff]
  %v2033 = vld [vmem:[%s3 + $0x218] sm:$0xff]
  %v2034 = vld [vmem:[%s3 + $0x220] sm:$0xff]
  %v2035 = vld [vmem:[%s3 + $0x228] sm:$0xff]
  %v2036 = vld [vmem:[%s3 + $0x230] sm:$0xff]
  %v2037 = vld [vmem:[%s3 + $0x238] sm:$0xff]
  %v2038 = vld [vmem:[%s3 + $0x240] sm:$0xff]
  %v2039 = vld [vmem:[%s3 + $0x248] sm:$0xff]
  %v2040 = vld [vmem:[%s3 + $0x250] sm:$0xff]
  %v2041 = vld [vmem:[%s3 + $0x258] sm:$0xff]
  %v2042 = vld [vmem:[%s3 + $0x260] sm:$0xff]
  %v2043 = vld [vmem:[%s3 + $0x268] sm:$0xff]
  %v2044 = vld [vmem:[%s3 + $0x270] sm:$0xff]
  %v2045 = vld [vmem:[%s3 + $0x278] sm:$0xff]
  %v2046 = vld [vmem:[%s3 + $0x280] sm:$0xff]
  %v2047 = vld [vmem:[%s3 + $0x288] sm:$0xff]
  %v2048 = vld [vmem:[%s3 + $0x290] sm:$0xff]
  %v2049 = vld [vmem:[%s3 + $0x298] sm:$0xff]
  %v2050 = vld [vmem:[%s3 + $0x2a0] sm:$0xff]
  %v2051 = vld [vmem:[%s3 + $0x2a8] sm:$0xff]
  %v2052 = vld [vmem:[%s3 + $0x2b0] sm:$0xff]
  %v2053 = vld [vmem:[%s3 + $0x2b8] sm:$0xff]
  %v2054 = vld [vmem:[%s3 + $0x2c0] sm:$0xff]
  %v2055 = vld [vmem:[%s3 + $0x2c8] sm:$0xff]
  %v2056 = vld [vmem:[%s3 + $0x2d0] sm:$0xff]
  %v2057 = vld [vmem:[%s3 + $0x2d8] sm:$0xff]
  %v2058 = vld [vmem:[%s3 + $0x2e0] sm:$0xff]
  %v2059 = vld [vmem:[%s3 + $0x2e8] sm:$0xff]
  %v2060 = vld [vmem:[%s3 + $0x2f0] sm:$0xff]
  %v2061 = vld [vmem:[%s3 + $0x2f8] sm:$0xff]
  %v2062 = vld [vmem:[%s3 + $0x300] sm:$0xff]
  %v2063 = vld [vmem:[%s3 + $0x308] sm:$0xff]
  %v2064 = vld [vmem:[%s3 + $0x310] sm:$0xff]
  %v2065 = vld [vmem:[%s3 + $0x318] sm:$0xff]
  %v2066 = vld [vmem:[%s3 + $0x320] sm:$0xff]
  %v2067 = vld [vmem:[%s3 + $0x328] sm:$0xff]
  %v2068 = vld [vmem:[%s3 + $0x330] sm:$0xff]
  %v2069 = vld [vmem:[%s3 + $0x338] sm:$0xff]
  %v2070 = vld [vmem:[%s3 + $0x340] sm:$0xff]
  %v2071 = vld [vmem:[%s3 + $0x348] sm:$0xff]
  %v2072 = vld [vmem:[%s3 + $0x350] sm:$0xff]
  %v2073 = vld [vmem:[%s3 + $0x358] sm:$0xff]
  %v2074 = vld [vmem:[%s3 + $0x360] sm:$0xff]
  %v2075 = vld [vmem:[%s3 + $0x368] sm:$0xff]
  %v2076 = vld [vmem:[%s3 + $0x370] sm:$0xff]
  %v2077 = vld [vmem:[%s3 + $0x378] sm:$0xff]
  %v2078 = vld [vmem:[%s3 + $0x380] sm:$0xff]
  %v2079 = vld [vmem:[%s3 + $0x388] sm:$0xff]
  %v2080 = vld [vmem:[%s3 + $0x390] sm:$0xff]
  %v2081 = vld [vmem:[%s3 + $0x398] sm:$0xff]
  %v2082 = vld [vmem:[%s3 + $0x3a0] sm:$0xff]
  %v2083 = vld [vmem:[%s3 + $0x3a8] sm:$0xff]
  %v2084 = vld [vmem:[%s3 + $0x3b0] sm:$0xff]
  %v2085 = vld [vmem:[%s3 + $0x3b8] sm:$0xff]
  %v2086 = vld [vmem:[%s3 + $0x3c0] sm:$0xff]
  %v2087 = vld [vmem:[%s3 + $0x3c8] sm:$0xff]
  %v2088 = vld [vmem:[%s3 + $0x3d0] sm:$0xff]
  %v2089 = vld [vmem:[%s3 + $0x3d8] sm:$0xff]
  %v2090 = vld [vmem:[%s3 + $0x3e0] sm:$0xff]
  %v2091 = vld [vmem:[%s3 + $0x3e8] sm:$0xff]
  %v2092 = vld [vmem:[%s3 + $0x3f0] sm:$0xff]
  %v2093 = vld [vmem:[%s3 + $0x3f8] sm:$0xff]
  %v2094 = vld [vmem:[%s3 + $0x400] sm:$0xff]
  %v2095 = vld [vmem:[%s3 + $0x408] sm:$0xff]
  %v2096 = vld [vmem:[%s3 + $0x410] sm:$0xff]
  %v2097 = vld [vmem:[%s3 + $0x418] sm:$0xff]
  %v2098 = vld [vmem:[%s3 + $0x420] sm:$0xff]
  %v2099 = vld [vmem:[%s3 + $0x428] sm:$0xff]
  %v2100 = vld [vmem:[%s3 + $0x430] sm:$0xff]
  %v2101 = vld [vmem:[%s3 + $0x438] sm:$0xff]
  %v2102 = vld [vmem:[%s3 + $0x440] sm:$0xff]
  %v2103 = vld [vmem:[%s3 + $0x448] sm:$0xff]
  %v2104 = vld [vmem:[%s3 + $0x450] sm:$0xff]
  %v2105 = vld [vmem:[%s3 + $0x458] sm:$0xff]
  %v2106 = vld [vmem:[%s3 + $0x460] sm:$0xff]
  %v2107 = vld [vmem:[%s3 + $0x468] sm:$0xff]
  %v2108 = vld [vmem:[%s3 + $0x470] sm:$0xff]
  %v2109 = vld [vmem:[%s3 + $0x478] sm:$0xff]
  %v2110 = vld [vmem:[%s3 + $0x480] sm:$0xff]
  %v2111 = vld [vmem:[%s3 + $0x488] sm:$0xff]
  %v2112 = vld [vmem:[%s3 + $0x490] sm:$0xff]
  %v2113 = vld [vmem:[%s3 + $0x498] sm:$0xff]
  %v2114 = vld [vmem:[%s3 + $0x4a0] sm:$0xff]
  %v2115 = vld [vmem:[%s3 + $0x4a8] sm:$0xff]
  %v2116 = vld [vmem:[%s3 + $0x4b0] sm:$0xff]
  %v2117 = vld [vmem:[%s3 + $0x4b8] sm:$0xff]
  %v2118 = vld [vmem:[%s3 + $0x4c0] sm:$0xff]
  %v2119 = vld [vmem:[%s3 + $0x4c8] sm:$0xff]
  %v2120 = vld [vmem:[%s3 + $0x4d0] sm:$0xff]
  %v2121 = vld [vmem:[%s3 + $0x4d8] sm:$0xff]
  %v2122 = vld [vmem:[%s3 + $0x4e0] sm:$0xff]
  %v2123 = vld [vmem:[%s3 + $0x4e8] sm:$0xff]
  %v2124 = vld [vmem:[%s3 + $0x4f0] sm:$0xff]
  %v2125 = vld [vmem:[%s3 + $0x4f8] sm:$0xff]
  %v2126 = vld [vmem:[%s3 + $0x500] sm:$0xff]
  %v2127 = vld [vmem:[%s3 + $0x508] sm:$0xff]
  %v2128 = vld [vmem:[%s3 + $0x510] sm:$0xff]
  %v2129 = vld [vmem:[%s3 + $0x518] sm:$0xff]
  %v2130 = vld [vmem:[%s3 + $0x520] sm:$0xff]
  %v2131 = vld [vmem:[%s3 + $0x528] sm:$0xff]
  %v2132 = vld [vmem:[%s3 + $0x530] sm:$0xff]
  %v2133 = vld [vmem:[%s3 + $0x538] sm:$0xff]
  %v2134 = vld [vmem:[%s3 + $0x540] sm:$0xff]
  %v2135 = vld [vmem:[%s3 + $0x548] sm:$0xff]
  %v2136 = vld [vmem:[%s3 + $0x550] sm:$0xff]
  %v2137 = vld [vmem:[%s3 + $0x558] sm:$0xff]
  %v2138 = vld [vmem:[%s3 + $0x560] sm:$0xff]
  %v2139 = vld [vmem:[%s3 + $0x568] sm:$0xff]
  %v2140 = vld [vmem:[%s3 + $0x570] sm:$0xff]
  %v2141 = vld [vmem:[%s3 + $0x578] sm:$0xff]
  %v2142 = vld [vmem:[%s3 + $0x580] sm:$0xff]
  %v2143 = vld [vmem:[%s3 + $0x588] sm:$0xff]
  %v2144 = vld [vmem:[%s3 + $0x590] sm:$0xff]
  %v2145 = vld [vmem:[%s3 + $0x598] sm:$0xff]
  %v2146 = vld [vmem:[%s3 + $0x5a0] sm:$0xff]
  %v2147 = vld [vmem:[%s3 + $0x5a8] sm:$0xff]
  %v2148 = vld [vmem:[%s3 + $0x5b0] sm:$0xff]
  %v2149 = vld [vmem:[%s3 + $0x5b8] sm:$0xff]
  %v2150 = vld [vmem:[%s3 + $0x5c0] sm:$0xff]
  %v2151 = vld [vmem:[%s3 + $0x5c8] sm:$0xff]
  %v2152 = vld [vmem:[%s3 + $0x5d0] sm:$0xff]
  %v2153 = vld [vmem:[%s3 + $0x5d8] sm:$0xff]
  %v2154 = vld [vmem:[%s3 + $0x5e0] sm:$0xff]
  %v2155 = vld [vmem:[%s3 + $0x5e8] sm:$0xff]
  %v2156 = vld [vmem:[%s3 + $0x5f0] sm:$0xff]
  %v2157 = vld [vmem:[%s3 + $0x5f8] sm:$0xff]
  %v2158 = vld [vmem:[%s3 + $0x600] sm:$0xff]
  %v2159 = vld [vmem:[%s3 + $0x608] sm:$0xff]
  %v2160 = vld [vmem:[%s3 + $0x610] sm:$0xff]
  %v2161 = vld [vmem:[%s3 + $0x618] sm:$0xff]
  %v2162 = vld [vmem:[%s3 + $0x620] sm:$0xff]
  %v2163 = vld [vmem:[%s3 + $0x628] sm:$0xff]
  %v2164 = vld [vmem:[%s3 + $0x630] sm:$0xff]
  %v2165 = vld [vmem:[%s3 + $0x638] sm:$0xff]
  %v2166 = vld [vmem:[%s3 + $0x640] sm:$0xff]
  %v2167 = vld [vmem:[%s3 + $0x648] sm:$0xff]
  %v2168 = vld [vmem:[%s3 + $0x650] sm:$0xff]
  %v2169 = vld [vmem:[%s3 + $0x658] sm:$0xff]
  %v2170 = vld [vmem:[%s3 + $0x660] sm:$0xff]
  %v2171 = vld [vmem:[%s3 + $0x668] sm:$0xff]
  %v2172 = vld [vmem:[%s3 + $0x670] sm:$0xff]
  %v2173 = vld [vmem:[%s3 + $0x678] sm:$0xff]
  %v2174 = vld [vmem:[%s3 + $0x680] sm:$0xff]
  %v2175 = vld [vmem:[%s3 + $0x688] sm:$0xff]
  %v2176 = vld [vmem:[%s3 + $0x690] sm:$0xff]
  %v2177 = vld [vmem:[%s3 + $0x698] sm:$0xff]
  %v2178 = vld [vmem:[%s3 + $0x6a0] sm:$0xff]
  %v2179 = vld [vmem:[%s3 + $0x6a8] sm:$0xff]
  %v2180 = vld [vmem:[%s3 + $0x6b0] sm:$0xff]
  %v2181 = vld [vmem:[%s3 + $0x6b8] sm:$0xff]
  %v2182 = vld [vmem:[%s3 + $0x6c0] sm:$0xff]
  %v2183 = vld [vmem:[%s3 + $0x6c8] sm:$0xff]
  %v2184 = vld [vmem:[%s3 + $0x6d0] sm:$0xff]
  %v2185 = vld [vmem:[%s3 + $0x6d8] sm:$0xff]
  %v2186 = vld [vmem:[%s3 + $0x6e0] sm:$0xff]
  %v2187 = vld [vmem:[%s3 + $0x6e8] sm:$0xff]
  %v2188 = vld [vmem:[%s3 + $0x6f0] sm:$0xff]
  %v2189 = vld [vmem:[%s3 + $0x6f8] sm:$0xff]
  %v2190 = vld [vmem:[%s3 + $0x700] sm:$0xff]
  %v2191 = vld [vmem:[%s3 + $0x708] sm:$0xff]
  %v2192 = vld [vmem:[%s3 + $0x710] sm:$0xff]
  %v2193 = vld [vmem:[%s3 + $0x718] sm:$0xff]
  %v2194 = vld [vmem:[%s3 + $0x720] sm:$0xff]
  %v2195 = vld [vmem:[%s3 + $0x728] sm:$0xff]
  %v2196 = vld [vmem:[%s3 + $0x730] sm:$0xff]
  %v2197 = vld [vmem:[%s3 + $0x738] sm:$0xff]
  %v2198 = vld [vmem:[%s3 + $0x740] sm:$0xff]
  %v2199 = vld [vmem:[%s3 + $0x748] sm:$0xff]
  %v2200 = vld [vmem:[%s3 + $0x750] sm:$0xff]
  %v2201 = vld [vmem:[%s3 + $0x758] sm:$0xff]
  %v2202 = vld [vmem:[%s3 + $0x760] sm:$0xff]
  %v2203 = vld [vmem:[%s3 + $0x768] sm:$0xff]
  %v2204 = vld [vmem:[%s3 + $0x770] sm:$0xff]
  %v2205 = vld [vmem:[%s3 + $0x778] sm:$0xff]
  %v2206 = vld [vmem:[%s3 + $0x780] sm:$0xff]
  %v2207 = vld [vmem:[%s3 + $0x788] sm:$0xff]
  %v2208 = vld [vmem:[%s3 + $0x790] sm:$0xff]
  %v2209 = vld [vmem:[%s3 + $0x798] sm:$0xff]
  %v2210 = vld [vmem:[%s3 + $0x7a0] sm:$0xff]
  %v2211 = vld [vmem:[%s3 + $0x7a8] sm:$0xff]
  %v2212 = vld [vmem:[%s3 + $0x7b0] sm:$0xff]
  %v2213 = vld [vmem:[%s3 + $0x7b8] sm:$0xff]
  %v2214 = vld [vmem:[%s3 + $0x7c0] sm:$0xff]
  %v2215 = vld [vmem:[%s3 + $0x7c8] sm:$0xff]
  %v2216 = vld [vmem:[%s3 + $0x7d0] sm:$0xff]
  %v2217 = vld [vmem:[%s3 + $0x7d8] sm:$0xff]
  %v2218 = vld [vmem:[%s3 + $0x7e0] sm:$0xff]
  %v2219 = vld [vmem:[%s3 + $0x7e8] sm:$0xff]
  %v2220 = vld [vmem:[%s3 + $0x7f0] sm:$0xff]
  %v2221 = vld [vmem:[%s3 + $0x7f8] sm:$0xff]
  %v2222 = vld [vmem:[%s3 + $0x800] sm:$0xff]
  %v2223 = vld [vmem:[%s3 + $0x808] sm:$0xff]
  %v2224 = vld [vmem:[%s3 + $0x810] sm:$0xff]
  %v2225 = vld [vmem:[%s3 + $0x818] sm:$0xff]
  %v2226 = vld [vmem:[%s3 + $0x820] sm:$0xff]
  %v2227 = vld [vmem:[%s3 + $0x828] sm:$0xff]
  %v2228 = vld [vmem:[%s3 + $0x830] sm:$0xff]
  %v2229 = vld [vmem:[%s3 + $0x838] sm:$0xff]
  %v2230 = vld [vmem:[%s3 + $0x840] sm:$0xff]
  %v2231 = vld [vmem:[%s3 + $0x848] sm:$0xff]
  %v2232 = vld [vmem:[%s3 + $0x850] sm:$0xff]
  %v2233 = vld [vmem:[%s3 + $0x858] sm:$0xff]
  %v2234 = vld [vmem:[%s3 + $0x860] sm:$0xff]
  %v2235 = vld [vmem:[%s3 + $0x868] sm:$0xff]
  %v2236 = vld [vmem:[%s3 + $0x870] sm:$0xff]
  %v2237 = vld [vmem:[%s3 + $0x878] sm:$0xff]
  %v2238 = vld [vmem:[%s3 + $0x880] sm:$0xff]
  %v2239 = vld [vmem:[%s3 + $0x888] sm:$0xff]
  %v2240 = vld [vmem:[%s3 + $0x890] sm:$0xff]
  %v2241 = vld [vmem:[%s3 + $0x898] sm:$0xff]
  %v2242 = vld [vmem:[%s3 + $0x8a0] sm:$0xff]
  %v2243 = vld [vmem:[%s3 + $0x8a8] sm:$0xff]
  %v2244 = vld [vmem:[%s3 + $0x8b0] sm:$0xff]
  %v2245 = vld [vmem:[%s3 + $0x8b8] sm:$0xff]
  %v2246 = vld [vmem:[%s3 + $0x8c0] sm:$0xff]
  %v2247 = vld [vmem:[%s3 + $0x8c8] sm:$0xff]
  %v2248 = vld [vmem:[%s3 + $0x8d0] sm:$0xff]
  %v2249 = vld [vmem:[%s3 + $0x8d8] sm:$0xff]
  %v2250 = vld [vmem:[%s3 + $0x8e0] sm:$0xff]
  %v2251 = vld [vmem:[%s3 + $0x8e8] sm:$0xff]
  %v2252 = vld [vmem:[%s3 + $0x8f0] sm:$0xff]
  %v2253 = vld [vmem:[%s3 + $0x8f8] sm:$0xff]
  %v2254 = vld [vmem:[%s3 + $0x900] sm:$0xff]
  %v2255 = vld [vmem:[%s3 + $0x908] sm:$0xff]
  %v2256 = vld [vmem:[%s3 + $0x910] sm:$0xff]
  %v2257 = vld [vmem:[%s3 + $0x918] sm:$0xff]
  %v2258 = vld [vmem:[%s3 + $0x920] sm:$0xff]
  %v2259 = vld [vmem:[%s3 + $0x928] sm:$0xff]
  %v2260 = vld [vmem:[%s3 + $0x930] sm:$0xff]
  %v2261 = vld [vmem:[%s3 + $0x938] sm:$0xff]
  %v2262 = vld [vmem:[%s3 + $0x940] sm:$0xff]
  %v2263 = vld [vmem:[%s3 + $0x948] sm:$0xff]
  %v2264 = vld [vmem:[%s3 + $0x950] sm:$0xff]
  %v2265 = vld [vmem:[%s3 + $0x958] sm:$0xff]
  %v2266 = vld [vmem:[%s3 + $0x960] sm:$0xff]
  %v2267 = vld [vmem:[%s3 + $0x968] sm:$0xff]
  %v2268 = vld [vmem:[%s3 + $0x970] sm:$0xff]
  %v2269 = vld [vmem:[%s3 + $0x978] sm:$0xff]
  %v2270 = vld [vmem:[%s3 + $0x980] sm:$0xff]
  %v2271 = vld [vmem:[%s3 + $0x988] sm:$0xff]
  %v2272 = vld [vmem:[%s3 + $0x990] sm:$0xff]
  %v2273 = vld [vmem:[%s3 + $0x998] sm:$0xff]
  %v2274 = vld [vmem:[%s3 + $0x9a0] sm:$0xff]
  %v2275 = vld [vmem:[%s3 + $0x9a8] sm:$0xff]
  %v2276 = vld [vmem:[%s3 + $0x9b0] sm:$0xff]
  %v2277 = vld [vmem:[%s3 + $0x9b8] sm:$0xff]
  %v2278 = vld [vmem:[%s3 + $0x9c0] sm:$0xff]
  %v2279 = vld [vmem:[%s3 + $0x9c8] sm:$0xff]
  %v2280 = vld [vmem:[%s3 + $0x9d0] sm:$0xff]
  %v2281 = vld [vmem:[%s3 + $0x9d8] sm:$0xff]
  %v2282 = vld [vmem:[%s3 + $0x9e0] sm:$0xff]
  %v2283 = vld [vmem:[%s3 + $0x9e8] sm:$0xff]
  %v2284 = vld [vmem:[%s3 + $0x9f0] sm:$0xff]
  %v2285 = vld [vmem:[%s3 + $0x9f8] sm:$0xff]
  %v2286 = vld [vmem:[%s3 + $0xa00] sm:$0xff]
  %v2287 = vld [vmem:[%s3 + $0xa08] sm:$0xff]
  %v2288 = vld [vmem:[%s3 + $0xa10] sm:$0xff]
  %v2289 = vld [vmem:[%s3 + $0xa18] sm:$0xff]
  %v2290 = vld [vmem:[%s3 + $0xa20] sm:$0xff]
  %v2291 = vld [vmem:[%s3 + $0xa28] sm:$0xff]
  %v2292 = vld [vmem:[%s3 + $0xa30] sm:$0xff]
  %v2293 = vld [vmem:[%s3 + $0xa38] sm:$0xff]
  %v2294 = vld [vmem:[%s3 + $0xa40] sm:$0xff]
  %v2295 = vld [vmem:[%s3 + $0xa48] sm:$0xff]
  %v2296 = vld [vmem:[%s3 + $0xa50] sm:$0xff]
  %v2297 = vld [vmem:[%s3 + $0xa58] sm:$0xff]
  %v2298 = vld [vmem:[%s3 + $0xa60] sm:$0xff]
  %v2299 = vld [vmem:[%s3 + $0xa68] sm:$0xff]
  %v2300 = vld [vmem:[%s3 + $0xa70] sm:$0xff]
  %v2301 = vld [vmem:[%s3 + $0xa78] sm:$0xff]
  %v2302 = vld [vmem:[%s3 + $0xa80] sm:$0xff]
  %v2303 = vld [vmem:[%s3 + $0xa88] sm:$0xff]
  %v2304 = vld [vmem:[%s3 + $0xa90] sm:$0xff]
  %v2305 = vld [vmem:[%s3 + $0xa98] sm:$0xff]
  %v2306 = vld [vmem:[%s3 + $0xaa0] sm:$0xff]
  %v2307 = vld [vmem:[%s3 + $0xaa8] sm:$0xff]
  %v2308 = vld [vmem:[%s3 + $0xab0] sm:$0xff]
  %v2309 = vld [vmem:[%s3 + $0xab8] sm:$0xff]
  %v2310 = vld [vmem:[%s3 + $0xac0] sm:$0xff]
  %v2311 = vld [vmem:[%s3 + $0xac8] sm:$0xff]
  %v2312 = vld [vmem:[%s3 + $0xad0] sm:$0xff]
  %v2313 = vld [vmem:[%s3 + $0xad8] sm:$0xff]
  %v2314 = vld [vmem:[%s3 + $0xae0] sm:$0xff]
  %v2315 = vld [vmem:[%s3 + $0xae8] sm:$0xff]
  %v2316 = vld [vmem:[%s3 + $0xaf0] sm:$0xff]
  %v2317 = vld [vmem:[%s3 + $0xaf8] sm:$0xff]
  %v2318 = vld [vmem:[%s3 + $0xb00] sm:$0xff]
  %v2319 = vld [vmem:[%s3 + $0xb08] sm:$0xff]
  %v2320 = vld [vmem:[%s3 + $0xb10] sm:$0xff]
  %v2321 = vld [vmem:[%s3 + $0xb18] sm:$0xff]
  %v2322 = vld [vmem:[%s3 + $0xb20] sm:$0xff]
  %v2323 = vld [vmem:[%s3 + $0xb28] sm:$0xff]
  %v2324 = vld [vmem:[%s3 + $0xb30] sm:$0xff]
  %v2325 = vld [vmem:[%s3 + $0xb38] sm:$0xff]
  %v2326 = vld [vmem:[%s3 + $0xb40] sm:$0xff]
  %v2327 = vld [vmem:[%s3 + $0xb48] sm:$0xff]
  %v2328 = vld [vmem:[%s3 + $0xb50] sm:$0xff]
  %v2329 = vld [vmem:[%s3 + $0xb58] sm:$0xff]
  %v2330 = vld [vmem:[%s3 + $0xb60] sm:$0xff]
  %v2331 = vld [vmem:[%s3 + $0xb68] sm:$0xff]
  %v2332 = vld [vmem:[%s3 + $0xb70] sm:$0xff]
  %v2333 = vld [vmem:[%s3 + $0xb78] sm:$0xff]
  %v2334 = vld [vmem:[%s3 + $0xb80] sm:$0xff]
  %v2335 = vld [vmem:[%s3 + $0xb88] sm:$0xff]
  %v2336 = vld [vmem:[%s3 + $0xb90] sm:$0xff]
  %v2337 = vld [vmem:[%s3 + $0xb98] sm:$0xff]
  %v2338 = vld [vmem:[%s3 + $0xba0] sm:$0xff]
  %v2339 = vld [vmem:[%s3 + $0xba8] sm:$0xff]
  %v2340 = vld [vmem:[%s3 + $0xbb0] sm:$0xff]
  %v2341 = vld [vmem:[%s3 + $0xbb8] sm:$0xff]
  %v2342 = vld [vmem:[%s3 + $0xbc0] sm:$0xff]
  %v2343 = vld [vmem:[%s3 + $0xbc8] sm:$0xff]
  %v2344 = vld [vmem:[%s3 + $0xbd0] sm:$0xff]
  %v2345 = vld [vmem:[%s3 + $0xbd8] sm:$0xff]
  %v2346 = vld [vmem:[%s3 + $0xbe0] sm:$0xff]
  %v2347 = vld [vmem:[%s3 + $0xbe8] sm:$0xff]
  %v2348 = vld [vmem:[%s3 + $0xbf0] sm:$0xff]
  %v2349 = vld [vmem:[%s3 + $0xbf8] sm:$0xff]
  %v2350 = vld [vmem:[%s3 + $0xc00] sm:$0xff]
  %v2351 = vld [vmem:[%s3 + $0xc08] sm:$0xff]
  %v2352 = vld [vmem:[%s3 + $0xc10] sm:$0xff]
  %v2353 = vld [vmem:[%s3 + $0xc18] sm:$0xff]
  %v2354 = vld [vmem:[%s3 + $0xc20] sm:$0xff]
  %v2355 = vld [vmem:[%s3 + $0xc28] sm:$0xff]
  %v2356 = vld [vmem:[%s3 + $0xc30] sm:$0xff]
  %v2357 = vld [vmem:[%s3 + $0xc38] sm:$0xff]
  %v2358 = vld [vmem:[%s3 + $0xc40] sm:$0xff]
  %v2359 = vld [vmem:[%s3 + $0xc48] sm:$0xff]
  %v2360 = vld [vmem:[%s3 + $0xc50] sm:$0xff]
  %v2361 = vld [vmem:[%s3 + $0xc58] sm:$0xff]
  %v2362 = vld [vmem:[%s3 + $0xc60] sm:$0xff]
  %v2363 = vld [vmem:[%s3 + $0xc68] sm:$0xff]
  %v2364 = vld [vmem:[%s3 + $0xc70] sm:$0xff]
  %v2365 = vld [vmem:[%s3 + $0xc78] sm:$0xff]
  %v2366 = vld [vmem:[%s3 + $0xc80] sm:$0xff]
  %v2367 = vld [vmem:[%s3 + $0xc88] sm:$0xff]
  %v2368 = vld [vmem:[%s3 + $0xc90] sm:$0xff]
  %v2369 = vld [vmem:[%s3 + $0xc98] sm:$0xff]
  %v2370 = vld [vmem:[%s3 + $0xca0] sm:$0xff]
  %v2371 = vld [vmem:[%s3 + $0xca8] sm:$0xff]
  %v2372 = vld [vmem:[%s3 + $0xcb0] sm:$0xff]
  %v2373 = vld [vmem:[%s3 + $0xcb8] sm:$0xff]
  %v2374 = vld [vmem:[%s3 + $0xcc0] sm:$0xff]
  %v2375 = vld [vmem:[%s3 + $0xcc8] sm:$0xff]
  %v2376 = vld [vmem:[%s3 + $0xcd0] sm:$0xff]
  %v2377 = vld [vmem:[%s3 + $0xcd8] sm:$0xff]
  %v2378 = vld [vmem:[%s3 + $0xce0] sm:$0xff]
  %v2379 = vld [vmem:[%s3 + $0xce8] sm:$0xff]
  %v2380 = vld [vmem:[%s3 + $0xcf0] sm:$0xff]
  %v2381 = vld [vmem:[%s3 + $0xcf8] sm:$0xff]
  %v2382 = vld [vmem:[%s3 + $0xd00] sm:$0xff]
  %v2383 = vld [vmem:[%s3 + $0xd08] sm:$0xff]
  %v2384 = vld [vmem:[%s3 + $0xd10] sm:$0xff]
  %v2385 = vld [vmem:[%s3 + $0xd18] sm:$0xff]
  %v2386 = vld [vmem:[%s3 + $0xd20] sm:$0xff]
  %v2387 = vld [vmem:[%s3 + $0xd28] sm:$0xff]
  %v2388 = vld [vmem:[%s3 + $0xd30] sm:$0xff]
  %v2389 = vld [vmem:[%s3 + $0xd38] sm:$0xff]
  %v2390 = vld [vmem:[%s3 + $0xd40] sm:$0xff]
  %v2391 = vld [vmem:[%s3 + $0xd48] sm:$0xff]
  %v2392 = vld [vmem:[%s3 + $0xd50] sm:$0xff]
  %v2393 = vld [vmem:[%s3 + $0xd58] sm:$0xff]
  %v2394 = vld [vmem:[%s3 + $0xd60] sm:$0xff]
  %v2395 = vld [vmem:[%s3 + $0xd68] sm:$0xff]
  %v2396 = vld [vmem:[%s3 + $0xd70] sm:$0xff]
  %v2397 = vld [vmem:[%s3 + $0xd78] sm:$0xff]
  %v2398 = vld [vmem:[%s3 + $0xd80] sm:$0xff]
  %v2399 = vld [vmem:[%s3 + $0xd88] sm:$0xff]
  %v2400 = vld [vmem:[%s3 + $0xd90] sm:$0xff]
  %v2401 = vld [vmem:[%s3 + $0xd98] sm:$0xff]
  %v2402 = vld [vmem:[%s3 + $0xda0] sm:$0xff]
  %v2403 = vld [vmem:[%s3 + $0xda8] sm:$0xff]
  %v2404 = vld [vmem:[%s3 + $0xdb0] sm:$0xff]
  %v2405 = vld [vmem:[%s3 + $0xdb8] sm:$0xff]
  %v2406 = vld [vmem:[%s3 + $0xdc0] sm:$0xff]
  %v2407 = vld [vmem:[%s3 + $0xdc8] sm:$0xff]
  %v2408 = vld [vmem:[%s3 + $0xdd0] sm:$0xff]
  %v2409 = vld [vmem:[%s3 + $0xdd8] sm:$0xff]
  %v2410 = vld [vmem:[%s3 + $0xde0] sm:$0xff]
  %v2411 = vld [vmem:[%s3 + $0xde8] sm:$0xff]
  %v2412 = vld [vmem:[%s3 + $0xdf0] sm:$0xff]
  %v2413 = vld [vmem:[%s3 + $0xdf8] sm:$0xff]
  %v2414 = vld [vmem:[%s3 + $0xe00] sm:$0xff]
  %v2415 = vld [vmem:[%s3 + $0xe08] sm:$0xff]
  %v2416 = vld [vmem:[%s3 + $0xe10] sm:$0xff]
  %v2417 = vld [vmem:[%s3 + $0xe18] sm:$0xff]
  %v2418 = vld [vmem:[%s3 + $0xe20] sm:$0xff]
  %v2419 = vld [vmem:[%s3 + $0xe28] sm:$0xff]
  %v2420 = vld [vmem:[%s3 + $0xe30] sm:$0xff]
  %v2421 = vld [vmem:[%s3 + $0xe38] sm:$0xff]
  %v2422 = vld [vmem:[%s3 + $0xe40] sm:$0xff]
  %v2423 = vld [vmem:[%s3 + $0xe48] sm:$0xff]
  %v2424 = vld [vmem:[%s3 + $0xe50] sm:$0xff]
  %v2425 = vld [vmem:[%s3 + $0xe58] sm:$0xff]
  %v2426 = vld [vmem:[%s3 + $0xe60] sm:$0xff]
  %v2427 = vld [vmem:[%s3 + $0xe68] sm:$0xff]
  %v2428 = vld [vmem:[%s3 + $0xe70] sm:$0xff]
  %v2429 = vld [vmem:[%s3 + $0xe78] sm:$0xff]
  %v2430 = vld [vmem:[%s3 + $0xe80] sm:$0xff]
  %v2431 = vld [vmem:[%s3 + $0xe88] sm:$0xff]
  %v2432 = vld [vmem:[%s3 + $0xe90] sm:$0xff]
  %v2433 = vld [vmem:[%s3 + $0xe98] sm:$0xff]
  %v2434 = vld [vmem:[%s3 + $0xea0] sm:$0xff]
  %v2435 = vld [vmem:[%s3 + $0xea8] sm:$0xff]
  %v2436 = vld [vmem:[%s3 + $0xeb0] sm:$0xff]
  %v2437 = vld [vmem:[%s3 + $0xeb8] sm:$0xff]
  %v2438 = vld [vmem:[%s3 + $0xec0] sm:$0xff]
  %v2439 = vld [vmem:[%s3 + $0xec8] sm:$0xff]
  %v2440 = vld [vmem:[%s3 + $0xed0] sm:$0xff]
  %v2441 = vld [vmem:[%s3 + $0xed8] sm:$0xff]
  %v2442 = vld [vmem:[%s3 + $0xee0] sm:$0xff]
  %v2443 = vld [vmem:[%s3 + $0xee8] sm:$0xff]
  %v2444 = vld [vmem:[%s3 + $0xef0] sm:$0xff]
  %v2445 = vld [vmem:[%s3 + $0xef8] sm:$0xff]
  %v2446 = vld [vmem:[%s3 + $0xf00] sm:$0xff]
  %v2447 = vld [vmem:[%s3 + $0xf08] sm:$0xff]
  %v2448 = vld [vmem:[%s3 + $0xf10] sm:$0xff]
  %v2449 = vld [vmem:[%s3 + $0xf18] sm:$0xff]
  %v2450 = vld [vmem:[%s3 + $0xf20] sm:$0xff]
  %v2451 = vld [vmem:[%s3 + $0xf28] sm:$0xff]
  %v2452 = vld [vmem:[%s3 + $0xf30] sm:$0xff]
  %v2453 = vld [vmem:[%s3 + $0xf38] sm:$0xff]
  %v2454 = vld [vmem:[%s3 + $0xf40] sm:$0xff]
  %v2455 = vld [vmem:[%s3 + $0xf48] sm:$0xff]
  %v2456 = vld [vmem:[%s3 + $0xf50] sm:$0xff]
  %v2457 = vld [vmem:[%s3 + $0xf58] sm:$0xff]
  %v2458 = vld [vmem:[%s3 + $0xf60] sm:$0xff]
  %v2459 = vld [vmem:[%s3 + $0xf68] sm:$0xff]
  %v2460 = vld [vmem:[%s3 + $0xf70] sm:$0xff]
  %v2461 = vld [vmem:[%s3 + $0xf78] sm:$0xff]
  %v2462 = vld [vmem:[%s3 + $0xf80] sm:$0xff]
  %v2463 = vld [vmem:[%s3 + $0xf88] sm:$0xff]
  %v2464 = vld [vmem:[%s3 + $0xf90] sm:$0xff]
  %v2465 = vld [vmem:[%s3 + $0xf98] sm:$0xff]
  %v2466 = vld [vmem:[%s3 + $0xfa0] sm:$0xff]
  %v2467 = vld [vmem:[%s3 + $0xfa8] sm:$0xff]
  %v2468 = vld [vmem:[%s3 + $0xfb0] sm:$0xff]
  %v2469 = vld [vmem:[%s3 + $0xfb8] sm:$0xff]
  %v2470 = vld [vmem:[%s3 + $0xfc0] sm:$0xff]
  %v2471 = vld [vmem:[%s3 + $0xfc8] sm:$0xff]
  %v2472 = vld [vmem:[%s3 + $0xfd0] sm:$0xff]
  %v2473 = vld [vmem:[%s3 + $0xfd8] sm:$0xff]
  %v2474 = vld [vmem:[%s3 + $0xfe0] sm:$0xff]
  %v2475 = vld [vmem:[%s3 + $0xfe8] sm:$0xff]
  %v2476 = vld [vmem:[%s3 + $0xff0] sm:$0xff]
  %v2477 = vld [vmem:[%s3 + $0xff8] sm:$0xff]
  %v2478 = vld [vmem:[%s3 + $0x1000] sm:$0xff]
  %v2479 = vld [vmem:[%s3 + $0x1008] sm:$0xff]
  %v2480 = vld [vmem:[%s3 + $0x1010] sm:$0xff]
  %v2481 = vld [vmem:[%s3 + $0x1018] sm:$0xff]
  %v2482 = vld [vmem:[%s3 + $0x1020] sm:$0xff]
  %v2483 = vld [vmem:[%s3 + $0x1028] sm:$0xff]
  %v2484 = vld [vmem:[%s3 + $0x1030] sm:$0xff]
  %v2485 = vld [vmem:[%s3 + $0x1038] sm:$0xff]
  %v2486 = vld [vmem:[%s3 + $0x1040] sm:$0xff]
  %v2487 = vld [vmem:[%s3 + $0x1048] sm:$0xff]
  %v2488 = vld [vmem:[%s3 + $0x1050] sm:$0xff]
  %v2489 = vld [vmem:[%s3 + $0x1058] sm:$0xff]
  %v2490 = vld [vmem:[%s3 + $0x1060] sm:$0xff]
  %v2491 = vld [vmem:[%s3 + $0x1068] sm:$0xff]
  %v2492 = vld [vmem:[%s3 + $0x1070] sm:$0xff]
  %v2493 = vld [vmem:[%s3 + $0x1078] sm:$0xff]
  %v2494 = vld [vmem:[%s3 + $0x1080] sm:$0xff]
  %v2495 = vld [vmem:[%s3 + $0x1088] sm:$0xff]
  %v2496 = vld [vmem:[%s3 + $0x1090] sm:$0xff]
  %v2497 = vld [vmem:[%s3 + $0x1098] sm:$0xff]
  %v2498 = vld [vmem:[%s3 + $0x10a0] sm:$0xff]
  %v2499 = vld [vmem:[%s3 + $0x10a8] sm:$0xff]
  %v2500 = vld [vmem:[%s3 + $0x10b0] sm:$0xff]
  %v2501 = vld [vmem:[%s3 + $0x10b8] sm:$0xff]
  %v2502 = vld [vmem:[%s3 + $0x10c0] sm:$0xff]
  %v2503 = vld [vmem:[%s3 + $0x10c8] sm:$0xff]
  %v2504 = vld [vmem:[%s3 + $0x10d0] sm:$0xff]
  %v2505 = vld [vmem:[%s3 + $0x10d8] sm:$0xff]
  %v2506 = vld [vmem:[%s3 + $0x10e0] sm:$0xff]
  %v2507 = vld [vmem:[%s3 + $0x10e8] sm:$0xff]
  %v2508 = vld [vmem:[%s3 + $0x10f0] sm:$0xff]
  %v2509 = vld [vmem:[%s3 + $0x10f8] sm:$0xff]
  %v2510 = vld [vmem:[%s3 + $0x1100] sm:$0xff]
  %v2511 = vld [vmem:[%s3 + $0x1108] sm:$0xff]
  %v2512 = vld [vmem:[%s3 + $0x1110] sm:$0xff]
  %v2513 = vld [vmem:[%s3 + $0x1118] sm:$0xff]
  %v2514 = vld [vmem:[%s3 + $0x1120] sm:$0xff]
  %v2515 = vld [vmem:[%s3 + $0x1128] sm:$0xff]
  %v2516 = vld [vmem:[%s3 + $0x1130] sm:$0xff]
  %v2517 = vld [vmem:[%s3 + $0x1138] sm:$0xff]
  %v2518 = vld [vmem:[%s3 + $0x1140] sm:$0xff]
  %v2519 = vld [vmem:[%s3 + $0x1148] sm:$0xff]
  %v2520 = vld [vmem:[%s3 + $0x1150] sm:$0xff]
  %v2521 = vld [vmem:[%s3 + $0x1158] sm:$0xff]
  %v2522 = vld [vmem:[%s3 + $0x1160] sm:$0xff]
  %v2523 = vld [vmem:[%s3 + $0x1168] sm:$0xff]
  %v2524 = vld [vmem:[%s3 + $0x1170] sm:$0xff]
  %v2525 = vld [vmem:[%s3 + $0x1178] sm:$0xff]
  %v2526 = vld [vmem:[%s3 + $0x1180] sm:$0xff]
  %v2527 = vld [vmem:[%s3 + $0x1188] sm:$0xff]
  %v2528 = vld [vmem:[%s3 + $0x1190] sm:$0xff]
  %v2529 = vld [vmem:[%s3 + $0x1198] sm:$0xff]
  %v2530 = vld [vmem:[%s3 + $0x11a0] sm:$0xff]
  %v2531 = vld [vmem:[%s3 + $0x11a8] sm:$0xff]
  %v2532 = vld [vmem:[%s3 + $0x11b0] sm:$0xff]
  %v2533 = vld [vmem:[%s3 + $0x11b8] sm:$0xff]
  %v2534 = vld [vmem:[%s3 + $0x11c0] sm:$0xff]
  %v2535 = vld [vmem:[%s3 + $0x11c8] sm:$0xff]
  %v2536 = vld [vmem:[%s3 + $0x11d0] sm:$0xff]
  %v2537 = vld [vmem:[%s3 + $0x11d8] sm:$0xff]
  %v2538 = vld [vmem:[%s3 + $0x11e0] sm:$0xff]
  %v2539 = vld [vmem:[%s3 + $0x11e8] sm:$0xff]
  %v2540 = vld [vmem:[%s3 + $0x11f0] sm:$0xff]
  %v2541 = vld [vmem:[%s3 + $0x11f8] sm:$0xff]
  %v2542 = vld [vmem:[%s3 + $0x1200] sm:$0xff]
  %v2543 = vld [vmem:[%s3 + $0x1208] sm:$0xff]
  %v2544 = vld [vmem:[%s3 + $0x1210] sm:$0xff]
  %v2545 = vld [vmem:[%s3 + $0x1218] sm:$0xff]
  %v2546 = vld [vmem:[%s3 + $0x1220] sm:$0xff]
  %v2547 = vld [vmem:[%s3 + $0x1228] sm:$0xff]
  %v2548 = vld [vmem:[%s3 + $0x1230] sm:$0xff]
  %v2549 = vld [vmem:[%s3 + $0x1238] sm:$0xff]
  %v2550 = vld [vmem:[%s3 + $0x1240] sm:$0xff]
  %v2551 = vld [vmem:[%s3 + $0x1248] sm:$0xff]
  %v2552 = vld [vmem:[%s3 + $0x1250] sm:$0xff]
  %v2553 = vld [vmem:[%s3 + $0x1258] sm:$0xff]
  %v2554 = vld [vmem:[%s3 + $0x1260] sm:$0xff]
  %v2555 = vld [vmem:[%s3 + $0x1268] sm:$0xff]
  %v2556 = vld [vmem:[%s3 + $0x1270] sm:$0xff]
  %v2557 = vld [vmem:[%s3 + $0x1278] sm:$0xff]
  %v2558 = vld [vmem:[%s3 + $0x1280] sm:$0xff]
  %v2559 = vld [vmem:[%s3 + $0x1288] sm:$0xff]
  %v2560 = vld [vmem:[%s3 + $0x1290] sm:$0xff]
  %v2561 = vld [vmem:[%s3 + $0x1298] sm:$0xff]
  %v2562 = vld [vmem:[%s3 + $0x12a0] sm:$0xff]
  %v2563 = vld [vmem:[%s3 + $0x12a8] sm:$0xff]
  %v2564 = vld [vmem:[%s3 + $0x12b0] sm:$0xff]
  %v2565 = vld [vmem:[%s3 + $0x12b8] sm:$0xff]
  %v2566 = vld [vmem:[%s3 + $0x12c0] sm:$0xff]
  %v2567 = vld [vmem:[%s3 + $0x12c8] sm:$0xff]
  %v2568 = vld [vmem:[%s3 + $0x12d0] sm:$0xff]
  %v2569 = vld [vmem:[%s3 + $0x12d8] sm:$0xff]
  %v2570 = vld [vmem:[%s3 + $0x12e0] sm:$0xff]
  %v2571 = vld [vmem:[%s3 + $0x12e8] sm:$0xff]
  %v2572 = vld [vmem:[%s3 + $0x12f0] sm:$0xff]
  %v2573 = vld [vmem:[%s3 + $0x12f8] sm:$0xff]
  %v2574 = vld [vmem:[%s3 + $0x1300] sm:$0xff]
  %v2575 = vld [vmem:[%s3 + $0x1308] sm:$0xff]
  %v2576 = vld [vmem:[%s3 + $0x1310] sm:$0xff]
  %v2577 = vld [vmem:[%s3 + $0x1318] sm:$0xff]
  %v2578 = vld [vmem:[%s3 + $0x1320] sm:$0xff]
  %v2579 = vld [vmem:[%s3 + $0x1328] sm:$0xff]
  %v2580 = vld [vmem:[%s3 + $0x1330] sm:$0xff]
  %v2581 = vld [vmem:[%s3 + $0x1338] sm:$0xff]
  %v2582 = vld [vmem:[%s3 + $0x1340] sm:$0xff]
  %v2583 = vld [vmem:[%s3 + $0x1348] sm:$0xff]
  %v2584 = vld [vmem:[%s3 + $0x1350] sm:$0xff]
  %v2585 = vld [vmem:[%s3 + $0x1358] sm:$0xff]
  %v2586 = vld [vmem:[%s3 + $0x1360] sm:$0xff]
  %v2587 = vld [vmem:[%s3 + $0x1368] sm:$0xff]
  %v2588 = vld [vmem:[%s3 + $0x1370] sm:$0xff]
  %v2589 = vld [vmem:[%s3 + $0x1378] sm:$0xff]
  %v2590 = vld [vmem:[%s3 + $0x1380] sm:$0xff]
  %v2591 = vld [vmem:[%s3 + $0x1388] sm:$0xff]
  %v2592 = vld [vmem:[%s3 + $0x1390] sm:$0xff]
  %v2593 = vld [vmem:[%s3 + $0x1398] sm:$0xff]
  %v2594 = vld [vmem:[%s3 + $0x13a0] sm:$0xff]
  %v2595 = vld [vmem:[%s3 + $0x13a8] sm:$0xff]
  %v2596 = vld [vmem:[%s3 + $0x13b0] sm:$0xff]
  %v2597 = vld [vmem:[%s3 + $0x13b8] sm:$0xff]
  %v2598 = vld [vmem:[%s3 + $0x13c0] sm:$0xff]
  %v2599 = vld [vmem:[%s3 + $0x13c8] sm:$0xff]
  %v2600 = vld [vmem:[%s3 + $0x13d0] sm:$0xff]
  %v2601 = vld [vmem:[%s3 + $0x13d8] sm:$0xff]
  %v2602 = vld [vmem:[%s3 + $0x13e0] sm:$0xff]
  %v2603 = vld [vmem:[%s3 + $0x13e8] sm:$0xff]
  %v2604 = vld [vmem:[%s3 + $0x13f0] sm:$0xff]
  %v2605 = vld [vmem:[%s3 + $0x13f8] sm:$0xff]
  %v2606 = vld [vmem:[%s3 + $0x1400] sm:$0xff]
  %v2607 = vld [vmem:[%s3 + $0x1408] sm:$0xff]
  %v2608 = vld [vmem:[%s3 + $0x1410] sm:$0xff]
  %v2609 = vld [vmem:[%s3 + $0x1418] sm:$0xff]
  %v2610 = vld [vmem:[%s3 + $0x1420] sm:$0xff]
  %v2611 = vld [vmem:[%s3 + $0x1428] sm:$0xff]
  %v2612 = vld [vmem:[%s3 + $0x1430] sm:$0xff]
  %v2613 = vld [vmem:[%s3 + $0x1438] sm:$0xff]
  %v2614 = vld [vmem:[%s3 + $0x1440] sm:$0xff]
  %v2615 = vld [vmem:[%s3 + $0x1448] sm:$0xff]
  %v2616 = vld [vmem:[%s3 + $0x1450] sm:$0xff]
  %v2617 = vld [vmem:[%s3 + $0x1458] sm:$0xff]
  %v2618 = vld [vmem:[%s3 + $0x1460] sm:$0xff]
  %v2619 = vld [vmem:[%s3 + $0x1468] sm:$0xff]
  %v2620 = vld [vmem:[%s3 + $0x1470] sm:$0xff]
  %v2621 = vld [vmem:[%s3 + $0x1478] sm:$0xff]
  %v2622 = vld [vmem:[%s3 + $0x1480] sm:$0xff]
  %v2623 = vld [vmem:[%s3 + $0x1488] sm:$0xff]
  %v2624 = vld [vmem:[%s3 + $0x1490] sm:$0xff]
  %v2625 = vld [vmem:[%s3 + $0x1498] sm:$0xff]
  %v2626 = vld [vmem:[%s3 + $0x14a0] sm:$0xff]
  %v2627 = vld [vmem:[%s3 + $0x14a8] sm:$0xff]
  %v2628 = vld [vmem:[%s3 + $0x14b0] sm:$0xff]
  %v2629 = vld [vmem:[%s3 + $0x14b8] sm:$0xff]
  %v2630 = vld [vmem:[%s3 + $0x14c0] sm:$0xff]
  %v2631 = vld [vmem:[%s3 + $0x14c8] sm:$0xff]
  %v2632 = vld [vmem:[%s3 + $0x14d0] sm:$0xff]
  %v2633 = vld [vmem:[%s3 + $0x14d8] sm:$0xff]
  %v2634 = vld [vmem:[%s3 + $0x14e0] sm:$0xff]
  %v2635 = vld [vmem:[%s3 + $0x14e8] sm:$0xff]
  %v2636 = vld [vmem:[%s3 + $0x14f0] sm:$0xff]
  %v2637 = vld [vmem:[%s3 + $0x14f8] sm:$0xff]
  %v2638 = vld [vmem:[%s3 + $0x1500] sm:$0xff]
  %v2639 = vld [vmem:[%s3 + $0x1508] sm:$0xff]
  %v2640 = vld [vmem:[%s3 + $0x1510] sm:$0xff]
  %v2641 = vld [vmem:[%s3 + $0x1518] sm:$0xff]
  %v2642 = vld [vmem:[%s3 + $0x1520] sm:$0xff]
  %v2643 = vld [vmem:[%s3 + $0x1528] sm:$0xff]
  %v2644 = vld [vmem:[%s3 + $0x1530] sm:$0xff]
  %v2645 = vld [vmem:[%s3 + $0x1538] sm:$0xff]
  %v2646 = vld [vmem:[%s3 + $0x1540] sm:$0xff]
  %v2647 = vld [vmem:[%s3 + $0x1548] sm:$0xff]
  %v2648 = vld [vmem:[%s3 + $0x1550] sm:$0xff]
  %v2649 = vld [vmem:[%s3 + $0x1558] sm:$0xff]
  %v2650 = vld [vmem:[%s3 + $0x1560] sm:$0xff]
  %v2651 = vld [vmem:[%s3 + $0x1568] sm:$0xff]
  %v2652 = vld [vmem:[%s3 + $0x1570] sm:$0xff]
  %v2653 = vld [vmem:[%s3 + $0x1578] sm:$0xff]
  %v2654 = vld [vmem:[%s3 + $0x1580] sm:$0xff]
  %v2655 = vld [vmem:[%s3 + $0x1588] sm:$0xff]
  %v2656 = vld [vmem:[%s3 + $0x1590] sm:$0xff]
  %v2657 = vld [vmem:[%s3 + $0x1598] sm:$0xff]
  %v2658 = vld [vmem:[%s3 + $0x15a0] sm:$0xff]
  %v2659 = vld [vmem:[%s3 + $0x15a8] sm:$0xff]
  %v2660 = vld [vmem:[%s3 + $0x15b0] sm:$0xff]
  %v2661 = vld [vmem:[%s3 + $0x15b8] sm:$0xff]
  %v2662 = vld [vmem:[%s3 + $0x15c0] sm:$0xff]
  %v2663 = vld [vmem:[%s3 + $0x15c8] sm:$0xff]
  %v2664 = vld [vmem:[%s3 + $0x15d0] sm:$0xff]
  %v2665 = vld [vmem:[%s3 + $0x15d8] sm:$0xff]
  %v2666 = vld [vmem:[%s3 + $0x15e0] sm:$0xff]
  %v2667 = vld [vmem:[%s3 + $0x15e8] sm:$0xff]
  %v2668 = vld [vmem:[%s3 + $0x15f0] sm:$0xff]
  %v2669 = vld [vmem:[%s3 + $0x15f8] sm:$0xff]
  %v2670 = vld [vmem:[%s3 + $0x1600] sm:$0xff]
  %v2671 = vld [vmem:[%s3 + $0x1608] sm:$0xff]
  %v2672 = vld [vmem:[%s3 + $0x1610] sm:$0xff]
  %v2673 = vld [vmem:[%s3 + $0x1618] sm:$0xff]
  %v2674 = vld [vmem:[%s3 + $0x1620] sm:$0xff]
  %v2675 = vld [vmem:[%s3 + $0x1628] sm:$0xff]
  %v2676 = vld [vmem:[%s3 + $0x1630] sm:$0xff]
  %v2677 = vld [vmem:[%s3 + $0x1638] sm:$0xff]
  %v2678 = vld [vmem:[%s3 + $0x1640] sm:$0xff]
  %v2679 = vld [vmem:[%s3 + $0x1648] sm:$0xff]
  %v2680 = vld [vmem:[%s3 + $0x1650] sm:$0xff]
  %v2681 = vld [vmem:[%s3 + $0x1658] sm:$0xff]
  %v2682 = vld [vmem:[%s3 + $0x1660] sm:$0xff]
  %v2683 = vld [vmem:[%s3 + $0x1668] sm:$0xff]
  %v2684 = vld [vmem:[%s3 + $0x1670] sm:$0xff]
  %v2685 = vld [vmem:[%s3 + $0x1678] sm:$0xff]
  %v2686 = vld [vmem:[%s3 + $0x1680] sm:$0xff]
  %v2687 = vld [vmem:[%s3 + $0x1688] sm:$0xff]
  %v2688 = vld [vmem:[%s3 + $0x1690] sm:$0xff]
  %v2689 = vld [vmem:[%s3 + $0x1698] sm:$0xff]
  %v2690 = vld [vmem:[%s3 + $0x16a0] sm:$0xff]
  %v2691 = vld [vmem:[%s3 + $0x16a8] sm:$0xff]
  %v2692 = vld [vmem:[%s3 + $0x16b0] sm:$0xff]
  %v2693 = vld [vmem:[%s3 + $0x16b8] sm:$0xff]
  %v2694 = vld [vmem:[%s3 + $0x16c0] sm:$0xff]
  %v2695 = vld [vmem:[%s3 + $0x16c8] sm:$0xff]
  %v2696 = vld [vmem:[%s3 + $0x16d0] sm:$0xff]
  %v2697 = vld [vmem:[%s3 + $0x16d8] sm:$0xff]
  %v2698 = vld [vmem:[%s3 + $0x16e0] sm:$0xff]
  %v2699 = vld [vmem:[%s3 + $0x16e8] sm:$0xff]
  %v2700 = vld [vmem:[%s3 + $0x16f0] sm:$0xff]
  %v2701 = vld [vmem:[%s3 + $0x16f8] sm:$0xff]
  %v2702 = vld [vmem:[%s3 + $0x1700] sm:$0xff]
  %v2703 = vld [vmem:[%s3 + $0x1708] sm:$0xff]
  %v2704 = vld [vmem:[%s3 + $0x1710] sm:$0xff]
  %v2705 = vld [vmem:[%s3 + $0x1718] sm:$0xff]
  %v2706 = vld [vmem:[%s3 + $0x1720] sm:$0xff]
  %v2707 = vld [vmem:[%s3 + $0x1728] sm:$0xff]
  %v2708 = vld [vmem:[%s3 + $0x1730] sm:$0xff]
  %v2709 = vld [vmem:[%s3 + $0x1738] sm:$0xff]
  %v2710 = vld [vmem:[%s3 + $0x1740] sm:$0xff]
  %v2711 = vld [vmem:[%s3 + $0x1748] sm:$0xff]
  %v2712 = vld [vmem:[%s3 + $0x1750] sm:$0xff]
  %v2713 = vld [vmem:[%s3 + $0x1758] sm:$0xff]
  %v2714 = vld [vmem:[%s3 + $0x1760] sm:$0xff]
  %v2715 = vld [vmem:[%s3 + $0x1768] sm:$0xff]
  %v2716 = vld [vmem:[%s3 + $0x1770] sm:$0xff]
  %v2717 = vld [vmem:[%s3 + $0x1778] sm:$0xff]
  %v2718 = vld [vmem:[%s3 + $0x1780] sm:$0xff]
  %v2719 = vld [vmem:[%s3 + $0x1788] sm:$0xff]
  %v2720 = vld [vmem:[%s3 + $0x1790] sm:$0xff]
  %v2721 = vld [vmem:[%s3 + $0x1798] sm:$0xff]
  %v2722 = vld [vmem:[%s3 + $0x17a0] sm:$0xff]
  %v2723 = vld [vmem:[%s3 + $0x17a8] sm:$0xff]
  %v2724 = vld [vmem:[%s3 + $0x17b0] sm:$0xff]
  %v2725 = vld [vmem:[%s3 + $0x17b8] sm:$0xff]
  %v2726 = vld [vmem:[%s3 + $0x17c0] sm:$0xff]
  %v2727 = vld [vmem:[%s3 + $0x17c8] sm:$0xff]
  %v2728 = vld [vmem:[%s3 + $0x17d0] sm:$0xff]
  %v2729 = vld [vmem:[%s3 + $0x17d8] sm:$0xff]
  %v2730 = vld [vmem:[%s3 + $0x17e0] sm:$0xff]
  %v2731 = vld [vmem:[%s3 + $0x17e8] sm:$0xff]
  %v2732 = vld [vmem:[%s3 + $0x17f0] sm:$0xff]
  %v2733 = vld [vmem:[%s3 + $0x17f8] sm:$0xff]
  %v2734 = vld [vmem:[%s3 + $0x1800] sm:$0xff]
  %v2735 = vld [vmem:[%s3 + $0x1808] sm:$0xff]
  %v2736 = vld [vmem:[%s3 + $0x1810] sm:$0xff]
  %v2737 = vld [vmem:[%s3 + $0x1818] sm:$0xff]
  %v2738 = vld [vmem:[%s3 + $0x1820] sm:$0xff]
  %v2739 = vld [vmem:[%s3 + $0x1828] sm:$0xff]
  %v2740 = vld [vmem:[%s3 + $0x1830] sm:$0xff]
  %v2741 = vld [vmem:[%s3 + $0x1838] sm:$0xff]
  %v2742 = vld [vmem:[%s3 + $0x1840] sm:$0xff]
  %v2743 = vld [vmem:[%s3 + $0x1848] sm:$0xff]
  %v2744 = vld [vmem:[%s3 + $0x1850] sm:$0xff]
  %v2745 = vld [vmem:[%s3 + $0x1858] sm:$0xff]
  %v2746 = vld [vmem:[%s3 + $0x1860] sm:$0xff]
  %v2747 = vld [vmem:[%s3 + $0x1868] sm:$0xff]
  %v2748 = vld [vmem:[%s3 + $0x1870] sm:$0xff]
  %v2749 = vld [vmem:[%s3 + $0x1878] sm:$0xff]
  %v2750 = vld [vmem:[%s3 + $0x1880] sm:$0xff]
  %v2751 = vld [vmem:[%s3 + $0x1888] sm:$0xff]
  %v2752 = vld [vmem:[%s3 + $0x1890] sm:$0xff]
  %v2753 = vld [vmem:[%s3 + $0x1898] sm:$0xff]
  %v2754 = vld [vmem:[%s3 + $0x18a0] sm:$0xff]
  %v2755 = vld [vmem:[%s3 + $0x18a8] sm:$0xff]
  %v2756 = vld [vmem:[%s3 + $0x18b0] sm:$0xff]
  %v2757 = vld [vmem:[%s3 + $0x18b8] sm:$0xff]
  %v2758 = vld [vmem:[%s3 + $0x18c0] sm:$0xff]
  %v2759 = vld [vmem:[%s3 + $0x18c8] sm:$0xff]
  %v2760 = vld [vmem:[%s3 + $0x18d0] sm:$0xff]
  %v2761 = vld [vmem:[%s3 + $0x18d8] sm:$0xff]
  %v2762 = vld [vmem:[%s3 + $0x18e0] sm:$0xff]
  %v2763 = vld [vmem:[%s3 + $0x18e8] sm:$0xff]
  %v2764 = vld [vmem:[%s3 + $0x18f0] sm:$0xff]
  %v2765 = vld [vmem:[%s3 + $0x18f8] sm:$0xff]
  %v2766 = vld [vmem:[%s4] sm:$0xff]
  %v2767 = vld [vmem:[%s4 + $0x8] sm:$0x3]
  %v2770 = vlaneseq
  %v2771 = vshrl.u32 %v2770, 7
  %v2772 = vsub.s32 0, %v2771
  %v2773 = vrot.slane %v2766, %v2772
  %v2774 = vlaneseq
  %v2775 = vshrl.u32 %v2774, 7
  %v2776 = vsub.s32 1, %v2775
  %v2777 = vrot.slane %v2766, %v2776
  %v2778 = vlaneseq
  %v2779 = vshrl.u32 %v2778, 7
  %v2780 = vsub.s32 2, %v2779
  %v2781 = vrot.slane %v2766, %v2780
  %v2782 = vlaneseq
  %v2783 = vshrl.u32 %v2782, 7
  %v2784 = vsub.s32 3, %v2783
  %v2785 = vrot.slane %v2766, %v2784
  %v2786 = vlaneseq
  %v2787 = vshrl.u32 %v2786, 7
  %v2788 = vsub.s32 4, %v2787
  %v2789 = vrot.slane %v2766, %v2788
  %v2790 = vlaneseq
  %v2791 = vshrl.u32 %v2790, 7
  %v2792 = vsub.s32 5, %v2791
  %v2793 = vrot.slane %v2766, %v2792
  %v2794 = vlaneseq
  %v2795 = vshrl.u32 %v2794, 7
  %v2796 = vsub.s32 6, %v2795
  %v2797 = vrot.slane %v2766, %v2796
  %v2798 = vlaneseq
  %v2799 = vshrl.u32 %v2798, 7
  %v2800 = vsub.s32 7, %v2799
  %v2801 = vrot.slane %v2766, %v2800
  %v2802 = vlaneseq
  %v2803 = vshrl.u32 %v2802, 7
  %v2804 = vsub.s32 0, %v2803
  %v2805 = vrot.slane %v2767, %v2804
  %v2806 = vlaneseq
  %v2807 = vshrl.u32 %v2806, 7
  %v2808 = vsub.s32 1, %v2807
  %v2809 = vrot.slane %v2767, %v2808
  %2820 = vmatprep.subr.mxu0 %v2117
  %2821 = vmatpush1.msra.mxu0 %v2116
  %2822 = vmatprep.subr.mxu0 %v2107
  %2823 = vmatpush1.msra.mxu0 %v2106
  %2824 = vmatprep.subr.mxu0 %v2097
  %2825 = vmatpush1.msra.mxu0 %v2096
  %2826 = vmatprep.subr.mxu0 %v2087
  %2827 = vmatpush1.msra.mxu0 %v2086
  %2828 = vmatprep.subr.mxu0 %v2077
  %2829 = vmatpush1.msra.mxu0 %v2076
  %2830 = vmatprep.subr.mxu0 %v2067
  %2831 = vmatpush1.msra.mxu0 %v2066
  %2832 = vmatprep.subr.mxu0 %v2057
  %2833 = vmatpush1.msra.mxu0 %v2056
  %2834 = vmatprep.subr.mxu0 %v2047
  %2835 = vmatpush1.msra.mxu0 %v2046
  %2836 = vmatprep.subr.mxu0 %v2037
  %2837 = vmatpush1.msra.mxu0 %v2036
  %2838 = vmatprep.subr.mxu0 %v2027
  %2839 = vmatpush1.msra.mxu0 %v2026
  %2840 = vmatprep.subr.mxu0 %v2017
  %2841 = vmatpush1.msra.mxu0 %v2016
  %2842 = vmatprep.subr.mxu0 %v2007
  %2843 = vmatpush1.msra.mxu0 %v2006
  %2844 = vmatprep.subr.mxu0 %v1997
  %2845 = vmatpush1.msra.mxu0 %v1996
  %2846 = vmatprep.subr.mxu0 %v1987
  %2847 = vmatpush1.msra.mxu0 %v1986
  %2848 = vmatprep.subr.mxu0 %v1977
  %2849 = vmatpush1.msra.mxu0 %v1976
  %2850 = vmatprep.subr.mxu0 %v1967
  %2851 = vmatpush1.msra.mxu0 %v1966
  %2852 = vmatprep.subr.mxu0 %v2277
  %2853 = vmatpush2.msra.mxu0 %v2276
  %2854 = vmatprep.subr.mxu0 %v2267
  %2855 = vmatpush2.msra.mxu0 %v2266
  %2856 = vmatprep.subr.mxu0 %v2257
  %2857 = vmatpush2.msra.mxu0 %v2256
  %2858 = vmatprep.subr.mxu0 %v2247
  %2859 = vmatpush2.msra.mxu0 %v2246
  %2860 = vmatprep.subr.mxu0 %v2237
  %2861 = vmatpush2.msra.mxu0 %v2236
  %2862 = vmatprep.subr.mxu0 %v2227
  %2863 = vmatpush2.msra.mxu0 %v2226
  %2864 = vmatprep.subr.mxu0 %v2217
  %2865 = vmatpush2.msra.mxu0 %v2216
  %2866 = vmatprep.subr.mxu0 %v2207
  %2867 = vmatpush2.msra.mxu0 %v2206
  %2868 = vmatprep.subr.mxu0 %v2197
  %2869 = vmatpush2.msra.mxu0 %v2196
  %2870 = vmatprep.subr.mxu0 %v2187
  %2871 = vmatpush2.msra.mxu0 %v2186
  %2872 = vmatprep.subr.mxu0 %v2177
  %2873 = vmatpush2.msra.mxu0 %v2176
  %2874 = vmatprep.subr.mxu0 %v2167
  %2875 = vmatpush2.msra.mxu0 %v2166
  %2876 = vmatprep.subr.mxu0 %v2157
  %2877 = vmatpush2.msra.mxu0 %v2156
  %2878 = vmatprep.subr.mxu0 %v2147
  %2879 = vmatpush2.msra.mxu0 %v2146
  %2880 = vmatprep.subr.mxu0 %v2137
  %2881 = vmatpush2.msra.mxu0 %v2136
  %2882 = vmatprep.subr.mxu0 %v2127
  %2883 = vmatpush2.msra.mxu0 %v2126
  %2884 = vmatprep.mubr.f32.mxu0 %v1962
  %2885 = vmatmul.mubr.f32.gmra.mxu0 %v1961
  %v2886 = vpop.f32.mrf.mxu0
  %v2887 = vadd.f32 %v2773, %v2886
  %v2888 = vpop.f32.mrf.mxu0
  %v2889 = vadd.f32 %v2777, %v2888
  %2890 = vdwg.mxu0
  %2891 = vmatprep.subr.mxu0 %v2437
  %2892 = vmatpush1.msra.mxu0 %v2436
  %2893 = vmatprep.subr.mxu0 %v2427
  %2894 = vmatpush1.msra.mxu0 %v2426
  %2895 = vmatprep.subr.mxu0 %v2417
  %2896 = vmatpush1.msra.mxu0 %v2416
  %2897 = vmatprep.subr.mxu0 %v2407
  %2898 = vmatpush1.msra.mxu0 %v2406
  %2899 = vmatprep.subr.mxu0 %v2397
  %2900 = vmatpush1.msra.mxu0 %v2396
  %2901 = vmatprep.subr.mxu0 %v2387
  %2902 = vmatpush1.msra.mxu0 %v2386
  %2903 = vmatprep.subr.mxu0 %v2377
  %2904 = vmatpush1.msra.mxu0 %v2376
  %2905 = vmatprep.subr.mxu0 %v2367
  %2906 = vmatpush1.msra.mxu0 %v2366
  %2907 = vmatprep.subr.mxu0 %v2357
  %2908 = vmatpush1.msra.mxu0 %v2356
  %2909 = vmatprep.subr.mxu0 %v2347
  %2910 = vmatpush1.msra.mxu0 %v2346
  %2911 = vmatprep.subr.mxu0 %v2337
  %2912 = vmatpush1.msra.mxu0 %v2336
  %2913 = vmatprep.subr.mxu0 %v2327
  %2914 = vmatpush1.msra.mxu0 %v2326
  %2915 = vmatprep.subr.mxu0 %v2317
  %2916 = vmatpush1.msra.mxu0 %v2316
  %2917 = vmatprep.subr.mxu0 %v2307
  %2918 = vmatpush1.msra.mxu0 %v2306
  %2919 = vmatprep.subr.mxu0 %v2297
  %2920 = vmatpush1.msra.mxu0 %v2296
  %2921 = vmatprep.subr.mxu0 %v2287
  %2922 = vmatpush1.msra.mxu0 %v2286
  %2923 = vmatprep.subr.mxu0 %v2597
  %2924 = vmatpush2.msra.mxu0 %v2596
  %2925 = vmatprep.subr.mxu0 %v2587
  %2926 = vmatpush2.msra.mxu0 %v2586
  %2927 = vmatprep.subr.mxu0 %v2577
  %2928 = vmatpush2.msra.mxu0 %v2576
  %2929 = vmatprep.subr.mxu0 %v2567
  %2930 = vmatpush2.msra.mxu0 %v2566
  %2931 = vmatprep.subr.mxu0 %v2557
  %2932 = vmatpush2.msra.mxu0 %v2556
  %2933 = vmatprep.subr.mxu0 %v2547
  %2934 = vmatpush2.msra.mxu0 %v2546
  %2935 = vmatprep.subr.mxu0 %v2537
  %2936 = vmatpush2.msra.mxu0 %v2536
  %2937 = vmatprep.subr.mxu0 %v2527
  %2938 = vmatpush2.msra.mxu0 %v2526
  %2939 = vmatprep.subr.mxu0 %v2517
  %2940 = vmatpush2.msra.mxu0 %v2516
  %2941 = vmatprep.subr.mxu0 %v2507
  %2942 = vmatpush2.msra.mxu0 %v2506
  %2943 = vmatprep.subr.mxu0 %v2497
  %2944 = vmatpush2.msra.mxu0 %v2496
  %2945 = vmatprep.subr.mxu0 %v2487
  %2946 = vmatpush2.msra.mxu0 %v2486
  %2947 = vmatprep.subr.mxu0 %v2477
  %2948 = vmatpush2.msra.mxu0 %v2476
  %2949 = vmatprep.subr.mxu0 %v2467
  %2950 = vmatpush2.msra.mxu0 %v2466
  %2951 = vmatprep.subr.mxu0 %v2457
  %2952 = vmatpush2.msra.mxu0 %v2456
  %2953 = vmatprep.subr.mxu0 %v2447
  %2954 = vmatpush2.msra.mxu0 %v2446
  %2955 = vmatprep.mubr.f32.mxu0 %v1964
  %2956 = vmatmul.mubr.f32.gmra.mxu0 %v1963
  %v2957 = vpop.f32.mrf.mxu0
  %v2958 = vadd.f32 %v2887, %v2957
  %v2959 = vpop.f32.mrf.mxu0
  %v2960 = vadd.f32 %v2889, %v2959
  %2961 = vdwg.mxu0
  %2962 = vmatprep.subr.mxu0 %v2757
  %2963 = vmatpush1.msra.mxu0 %v2756
  %2964 = vmatprep.subr.mxu0 %v2747
  %2965 = vmatpush1.msra.mxu0 %v2746
  %2966 = vmatprep.subr.mxu0 %v2737
  %2967 = vmatpush1.msra.mxu0 %v2736
  %2968 = vmatprep.subr.mxu0 %v2727
  %2969 = vmatpush1.msra.mxu0 %v2726
  %2970 = vmatprep.subr.mxu0 %v2717
  %2971 = vmatpush1.msra.mxu0 %v2716
  %2972 = vmatprep.subr.mxu0 %v2707
  %2973 = vmatpush1.msra.mxu0 %v2706
  %2974 = vmatprep.subr.mxu0 %v2697
  %2975 = vmatpush1.msra.mxu0 %v2696
  %2976 = vmatprep.subr.mxu0 %v2687
  %2977 = vmatpush1.msra.mxu0 %v2686
  %2978 = vmatprep.subr.mxu0 %v2677
  %2979 = vmatpush1.msra.mxu0 %v2676
  %2980 = vmatprep.subr.mxu0 %v2667
  %2981 = vmatpush1.msra.mxu0 %v2666
  %2982 = vmatprep.subr.mxu0 %v2657
  %2983 = vmatpush1.msra.mxu0 %v2656
  %2984 = vmatprep.subr.mxu0 %v2647
  %2985 = vmatpush1.msra.mxu0 %v2646
  %2986 = vmatprep.subr.mxu0 %v2637
  %2987 = vmatpush1.msra.mxu0 %v2636
  %2988 = vmatprep.subr.mxu0 %v2627
  %2989 = vmatpush1.msra.mxu0 %v2626
  %2990 = vmatprep.subr.mxu0 %v2617
  %2991 = vmatpush1.msra.mxu0 %v2616
  %2992 = vmatprep.subr.mxu0 %v2607
  %2993 = vmatpush1.msra.mxu0 %v2606
  %2994 = vmatprep.subr.mxu0 0.0
  %2995 = vmatpush2.msra.mxu0 0.0
  %2996 = vmatprep.subr.mxu0 0.0
  %2997 = vmatpush2.msra.mxu0 0.0
  %2998 = vmatprep.subr.mxu0 0.0
  %2999 = vmatpush2.msra.mxu0 0.0
  %3000 = vmatprep.subr.mxu0 0.0
  %3001 = vmatpush2.msra.mxu0 0.0
  %3002 = vmatprep.subr.mxu0 0.0
  %3003 = vmatpush2.msra.mxu0 0.0
  %3004 = vmatprep.subr.mxu0 0.0
  %3005 = vmatpush2.msra.mxu0 0.0
  %3006 = vmatprep.subr.mxu0 0.0
  %3007 = vmatpush2.msra.mxu0 0.0
  %3008 = vmatprep.subr.mxu0 0.0
  %3009 = vmatpush2.msra.mxu0 0.0
  %3010 = vmatprep.subr.mxu0 0.0
  %3011 = vmatpush2.msra.mxu0 0.0
  %3012 = vmatprep.subr.mxu0 0.0
  %3013 = vmatpush2.msra.mxu0 0.0
  %3014 = vmatprep.subr.mxu0 0.0
  %3015 = vmatpush2.msra.mxu0 0.0
  %3016 = vmatprep.subr.mxu0 0.0
  %3017 = vmatpush2.msra.mxu0 0.0
  %3018 = vmatprep.subr.mxu0 0.0
  %3019 = vmatpush2.msra.mxu0 0.0
  %3020 = vmatprep.subr.mxu0 0.0
  %3021 = vmatpush2.msra.mxu0 0.0
  %3022 = vmatprep.subr.mxu0 0.0
  %3023 = vmatpush2.msra.mxu0 0.0
  %3024 = vmatprep.subr.mxu0 0.0
  %3025 = vmatpush2.msra.mxu0 0.0
  %3026 = vmatprep.mubr.f32.mxu0 0.0
  %3027 = vmatmul.mubr.f32.gmra.mxu0 %v1965
  %v3028 = vpop.f32.mrf.mxu0
  %v3029 = vadd.f32 %v2958, %v3028
  %v3030 = vpop.f32.mrf.mxu0
  %v3031 = vadd.f32 %v2960, %v3030
  %3032 = vdwg.mxu0
  %3033 = vmatprep.subr.mxu0 %v2119
  %3034 = vmatpush1.msra.mxu0 %v2118
  %3035 = vmatprep.subr.mxu0 %v2109
  %3036 = vmatpush1.msra.mxu0 %v2108
  %3037 = vmatprep.subr.mxu0 %v2099
  %3038 = vmatpush1.msra.mxu0 %v2098
  %3039 = vmatprep.subr.mxu0 %v2089
  %3040 = vmatpush1.msra.mxu0 %v2088
  %3041 = vmatprep.subr.mxu0 %v2079
  %3042 = vmatpush1.msra.mxu0 %v2078
  %3043 = vmatprep.subr.mxu0 %v2069
  %3044 = vmatpush1.msra.mxu0 %v2068
  %3045 = vmatprep.subr.mxu0 %v2059
  %3046 = vmatpush1.msra.mxu0 %v2058
  %3047 = vmatprep.subr.mxu0 %v2049
  %3048 = vmatpush1.msra.mxu0 %v2048
  %3049 = vmatprep.subr.mxu0 %v2039
  %3050 = vmatpush1.msra.mxu0 %v2038
  %3051 = vmatprep.subr.mxu0 %v2029
  %3052 = vmatpush1.msra.mxu0 %v2028
  %3053 = vmatprep.subr.mxu0 %v2019
  %3054 = vmatpush1.msra.mxu0 %v2018
  %3055 = vmatprep.subr.mxu0 %v2009
  %3056 = vmatpush1.msra.mxu0 %v2008
  %3057 = vmatprep.subr.mxu0 %v1999
  %3058 = vmatpush1.msra.mxu0 %v1998
  %3059 = vmatprep.subr.mxu0 %v1989
  %3060 = vmatpush1.msra.mxu0 %v1988
  %3061 = vmatprep.subr.mxu0 %v1979
  %3062 = vmatpush1.msra.mxu0 %v1978
  %3063 = vmatprep.subr.mxu0 %v1969
  %3064 = vmatpush1.msra.mxu0 %v1968
  %3065 = vmatprep.subr.mxu0 %v2279
  %3066 = vmatpush2.msra.mxu0 %v2278
  %3067 = vmatprep.subr.mxu0 %v2269
  %3068 = vmatpush2.msra.mxu0 %v2268
  %3069 = vmatprep.subr.mxu0 %v2259
  %3070 = vmatpush2.msra.mxu0 %v2258
  %3071 = vmatprep.subr.mxu0 %v2249
  %3072 = vmatpush2.msra.mxu0 %v2248
  %3073 = vmatprep.subr.mxu0 %v2239
  %3074 = vmatpush2.msra.mxu0 %v2238
  %3075 = vmatprep.subr.mxu0 %v2229
  %3076 = vmatpush2.msra.mxu0 %v2228
  %3077 = vmatprep.subr.mxu0 %v2219
  %3078 = vmatpush2.msra.mxu0 %v2218
  %3079 = vmatprep.subr.mxu0 %v2209
  %3080 = vmatpush2.msra.mxu0 %v2208
  %3081 = vmatprep.subr.mxu0 %v2199
  %3082 = vmatpush2.msra.mxu0 %v2198
  %3083 = vmatprep.subr.mxu0 %v2189
  %3084 = vmatpush2.msra.mxu0 %v2188
  %3085 = vmatprep.subr.mxu0 %v2179
  %3086 = vmatpush2.msra.mxu0 %v2178
  %3087 = vmatprep.subr.mxu0 %v2169
  %3088 = vmatpush2.msra.mxu0 %v2168
  %3089 = vmatprep.subr.mxu0 %v2159
  %3090 = vmatpush2.msra.mxu0 %v2158
  %3091 = vmatprep.subr.mxu0 %v2149
  %3092 = vmatpush2.msra.mxu0 %v2148
  %3093 = vmatprep.subr.mxu0 %v2139
  %3094 = vmatpush2.msra.mxu0 %v2138
  %3095 = vmatprep.subr.mxu0 %v2129
  %3096 = vmatpush2.msra.mxu0 %v2128
  %3097 = vmatprep.mubr.f32.mxu0 %v1962
  %3098 = vmatmul.mubr.f32.gmra.mxu0 %v1961
  %v3099 = vpop.f32.mrf.mxu0
  %v3100 = vadd.f32 %v2781, %v3099
  %v3101 = vpop.f32.mrf.mxu0
  %v3102 = vadd.f32 %v2785, %v3101
  %3103 = vdwg.mxu0
  %3104 = vmatprep.subr.mxu0 %v2439
  %3105 = vmatpush1.msra.mxu0 %v2438
  %3106 = vmatprep.subr.mxu0 %v2429
  %3107 = vmatpush1.msra.mxu0 %v2428
  %3108 = vmatprep.subr.mxu0 %v2419
  %3109 = vmatpush1.msra.mxu0 %v2418
  %3110 = vmatprep.subr.mxu0 %v2409
  %3111 = vmatpush1.msra.mxu0 %v2408
  %3112 = vmatprep.subr.mxu0 %v2399
  %3113 = vmatpush1.msra.mxu0 %v2398
  %3114 = vmatprep.subr.mxu0 %v2389
  %3115 = vmatpush1.msra.mxu0 %v2388
  %3116 = vmatprep.subr.mxu0 %v2379
  %3117 = vmatpush1.msra.mxu0 %v2378
  %3118 = vmatprep.subr.mxu0 %v2369
  %3119 = vmatpush1.msra.mxu0 %v2368
  %3120 = vmatprep.subr.mxu0 %v2359
  %3121 = vmatpush1.msra.mxu0 %v2358
  %3122 = vmatprep.subr.mxu0 %v2349
  %3123 = vmatpush1.msra.mxu0 %v2348
  %3124 = vmatprep.subr.mxu0 %v2339
  %3125 = vmatpush1.msra.mxu0 %v2338
  %3126 = vmatprep.subr.mxu0 %v2329
  %3127 = vmatpush1.msra.mxu0 %v2328
  %3128 = vmatprep.subr.mxu0 %v2319
  %3129 = vmatpush1.msra.mxu0 %v2318
  %3130 = vmatprep.subr.mxu0 %v2309
  %3131 = vmatpush1.msra.mxu0 %v2308
  %3132 = vmatprep.subr.mxu0 %v2299
  %3133 = vmatpush1.msra.mxu0 %v2298
  %3134 = vmatprep.subr.mxu0 %v2289
  %3135 = vmatpush1.msra.mxu0 %v2288
  %3136 = vmatprep.subr.mxu0 %v2599
  %3137 = vmatpush2.msra.mxu0 %v2598
  %3138 = vmatprep.subr.mxu0 %v2589
  %3139 = vmatpush2.msra.mxu0 %v2588
  %3140 = vmatprep.subr.mxu0 %v2579
  %3141 = vmatpush2.msra.mxu0 %v2578
  %3142 = vmatprep.subr.mxu0 %v2569
  %3143 = vmatpush2.msra.mxu0 %v2568
  %3144 = vmatprep.subr.mxu0 %v2559
  %3145 = vmatpush2.msra.mxu0 %v2558
  %3146 = vmatprep.subr.mxu0 %v2549
  %3147 = vmatpush2.msra.mxu0 %v2548
  %3148 = vmatprep.subr.mxu0 %v2539
  %3149 = vmatpush2.msra.mxu0 %v2538
  %3150 = vmatprep.subr.mxu0 %v2529
  %3151 = vmatpush2.msra.mxu0 %v2528
  %3152 = vmatprep.subr.mxu0 %v2519
  %3153 = vmatpush2.msra.mxu0 %v2518
  %3154 = vmatprep.subr.mxu0 %v2509
  %3155 = vmatpush2.msra.mxu0 %v2508
  %3156 = vmatprep.subr.mxu0 %v2499
  %3157 = vmatpush2.msra.mxu0 %v2498
  %3158 = vmatprep.subr.mxu0 %v2489
  %3159 = vmatpush2.msra.mxu0 %v2488
  %3160 = vmatprep.subr.mxu0 %v2479
  %3161 = vmatpush2.msra.mxu0 %v2478
  %3162 = vmatprep.subr.mxu0 %v2469
  %3163 = vmatpush2.msra.mxu0 %v2468
  %3164 = vmatprep.subr.mxu0 %v2459
  %3165 = vmatpush2.msra.mxu0 %v2458
  %3166 = vmatprep.subr.mxu0 %v2449
  %3167 = vmatpush2.msra.mxu0 %v2448
  %3168 = vmatprep.mubr.f32.mxu0 %v1964
  %3169 = vmatmul.mubr.f32.gmra.mxu0 %v1963
  %v3170 = vpop.f32.mrf.mxu0
  %v3171 = vadd.f32 %v3100, %v3170
  %v3172 = vpop.f32.mrf.mxu0
  %v3173 = vadd.f32 %v3102, %v3172
  %3174 = vdwg.mxu0
  %3175 = vmatprep.subr.mxu0 %v2759
  %3176 = vmatpush1.msra.mxu0 %v2758
  %3177 = vmatprep.subr.mxu0 %v2749
  %3178 = vmatpush1.msra.mxu0 %v2748
  %3179 = vmatprep.subr.mxu0 %v2739
  %3180 = vmatpush1.msra.mxu0 %v2738
  %3181 = vmatprep.subr.mxu0 %v2729
  %3182 = vmatpush1.msra.mxu0 %v2728
  %3183 = vmatprep.subr.mxu0 %v2719
  %3184 = vmatpush1.msra.mxu0 %v2718
  %3185 = vmatprep.subr.mxu0 %v2709
  %3186 = vmatpush1.msra.mxu0 %v2708
  %3187 = vmatprep.subr.mxu0 %v2699
  %3188 = vmatpush1.msra.mxu0 %v2698
  %3189 = vmatprep.subr.mxu0 %v2689
  %3190 = vmatpush1.msra.mxu0 %v2688
  %3191 = vmatprep.subr.mxu0 %v2679
  %3192 = vmatpush1.msra.mxu0 %v2678
  %3193 = vmatprep.subr.mxu0 %v2669
  %3194 = vmatpush1.msra.mxu0 %v2668
  %3195 = vmatprep.subr.mxu0 %v2659
  %3196 = vmatpush1.msra.mxu0 %v2658
  %3197 = vmatprep.subr.mxu0 %v2649
  %3198 = vmatpush1.msra.mxu0 %v2648
  %3199 = vmatprep.subr.mxu0 %v2639
  %3200 = vmatpush1.msra.mxu0 %v2638
  %3201 = vmatprep.subr.mxu0 %v2629
  %3202 = vmatpush1.msra.mxu0 %v2628
  %3203 = vmatprep.subr.mxu0 %v2619
  %3204 = vmatpush1.msra.mxu0 %v2618
  %3205 = vmatprep.subr.mxu0 %v2609
  %3206 = vmatpush1.msra.mxu0 %v2608
  %3207 = vmatprep.subr.mxu0 0.0
  %3208 = vmatpush2.msra.mxu0 0.0
  %3209 = vmatprep.subr.mxu0 0.0
  %3210 = vmatpush2.msra.mxu0 0.0
  %3211 = vmatprep.subr.mxu0 0.0
  %3212 = vmatpush2.msra.mxu0 0.0
  %3213 = vmatprep.subr.mxu0 0.0
  %3214 = vmatpush2.msra.mxu0 0.0
  %3215 = vmatprep.subr.mxu0 0.0
  %3216 = vmatpush2.msra.mxu0 0.0
  %3217 = vmatprep.subr.mxu0 0.0
  %3218 = vmatpush2.msra.mxu0 0.0
  %3219 = vmatprep.subr.mxu0 0.0
  %3220 = vmatpush2.msra.mxu0 0.0
  %3221 = vmatprep.subr.mxu0 0.0
  %3222 = vmatpush2.msra.mxu0 0.0
  %3223 = vmatprep.subr.mxu0 0.0
  %3224 = vmatpush2.msra.mxu0 0.0
  %3225 = vmatprep.subr.mxu0 0.0
  %3226 = vmatpush2.msra.mxu0 0.0
  %3227 = vmatprep.subr.mxu0 0.0
  %3228 = vmatpush2.msra.mxu0 0.0
  %3229 = vmatprep.subr.mxu0 0.0
  %3230 = vmatpush2.msra.mxu0 0.0
  %3231 = vmatprep.subr.mxu0 0.0
  %3232 = vmatpush2.msra.mxu0 0.0
  %3233 = vmatprep.subr.mxu0 0.0
  %3234 = vmatpush2.msra.mxu0 0.0
  %3235 = vmatprep.subr.mxu0 0.0
  %3236 = vmatpush2.msra.mxu0 0.0
  %3237 = vmatprep.subr.mxu0 0.0
  %3238 = vmatpush2.msra.mxu0 0.0
  %3239 = vmatprep.mubr.f32.mxu0 0.0
  %3240 = vmatmul.mubr.f32.gmra.mxu0 %v1965
  %v3241 = vpop.f32.mrf.mxu0
  %v3242 = vadd.f32 %v3171, %v3241
  %v3243 = vpop.f32.mrf.mxu0
  %v3244 = vadd.f32 %v3173, %v3243
  %3245 = vdwg.mxu0
  %3246 = vmatprep.subr.mxu0 %v2121
  %3247 = vmatpush1.msra.mxu0 %v2120
  %3248 = vmatprep.subr.mxu0 %v2111
  %3249 = vmatpush1.msra.mxu0 %v2110
  %3250 = vmatprep.subr.mxu0 %v2101
  %3251 = vmatpush1.msra.mxu0 %v2100
  %3252 = vmatprep.subr.mxu0 %v2091
  %3253 = vmatpush1.msra.mxu0 %v2090
  %3254 = vmatprep.subr.mxu0 %v2081
  %3255 = vmatpush1.msra.mxu0 %v2080
  %3256 = vmatprep.subr.mxu0 %v2071
  %3257 = vmatpush1.msra.mxu0 %v2070
  %3258 = vmatprep.subr.mxu0 %v2061
  %3259 = vmatpush1.msra.mxu0 %v2060
  %3260 = vmatprep.subr.mxu0 %v2051
  %3261 = vmatpush1.msra.mxu0 %v2050
  %3262 = vmatprep.subr.mxu0 %v2041
  %3263 = vmatpush1.msra.mxu0 %v2040
  %3264 = vmatprep.subr.mxu0 %v2031
  %3265 = vmatpush1.msra.mxu0 %v2030
  %3266 = vmatprep.subr.mxu0 %v2021
  %3267 = vmatpush1.msra.mxu0 %v2020
  %3268 = vmatprep.subr.mxu0 %v2011
  %3269 = vmatpush1.msra.mxu0 %v2010
  %3270 = vmatprep.subr.mxu0 %v2001
  %3271 = vmatpush1.msra.mxu0 %v2000
  %3272 = vmatprep.subr.mxu0 %v1991
  %3273 = vmatpush1.msra.mxu0 %v1990
  %3274 = vmatprep.subr.mxu0 %v1981
  %3275 = vmatpush1.msra.mxu0 %v1980
  %3276 = vmatprep.subr.mxu0 %v1971
  %3277 = vmatpush1.msra.mxu0 %v1970
  %3278 = vmatprep.subr.mxu0 %v2281
  %3279 = vmatpush2.msra.mxu0 %v2280
  %3280 = vmatprep.subr.mxu0 %v2271
  %3281 = vmatpush2.msra.mxu0 %v2270
  %3282 = vmatprep.subr.mxu0 %v2261
  %3283 = vmatpush2.msra.mxu0 %v2260
  %3284 = vmatprep.subr.mxu0 %v2251
  %3285 = vmatpush2.msra.mxu0 %v2250
  %3286 = vmatprep.subr.mxu0 %v2241
  %3287 = vmatpush2.msra.mxu0 %v2240
  %3288 = vmatprep.subr.mxu0 %v2231
  %3289 = vmatpush2.msra.mxu0 %v2230
  %3290 = vmatprep.subr.mxu0 %v2221
  %3291 = vmatpush2.msra.mxu0 %v2220
  %3292 = vmatprep.subr.mxu0 %v2211
  %3293 = vmatpush2.msra.mxu0 %v2210
  %3294 = vmatprep.subr.mxu0 %v2201
  %3295 = vmatpush2.msra.mxu0 %v2200
  %3296 = vmatprep.subr.mxu0 %v2191
  %3297 = vmatpush2.msra.mxu0 %v2190
  %3298 = vmatprep.subr.mxu0 %v2181
  %3299 = vmatpush2.msra.mxu0 %v2180
  %3300 = vmatprep.subr.mxu0 %v2171
  %3301 = vmatpush2.msra.mxu0 %v2170
  %3302 = vmatprep.subr.mxu0 %v2161
  %3303 = vmatpush2.msra.mxu0 %v2160
  %3304 = vmatprep.subr.mxu0 %v2151
  %3305 = vmatpush2.msra.mxu0 %v2150
  %3306 = vmatprep.subr.mxu0 %v2141
  %3307 = vmatpush2.msra.mxu0 %v2140
  %3308 = vmatprep.subr.mxu0 %v2131
  %3309 = vmatpush2.msra.mxu0 %v2130
  %3310 = vmatprep.mubr.f32.mxu0 %v1962
  %3311 = vmatmul.mubr.f32.gmra.mxu0 %v1961
  %v3312 = vpop.f32.mrf.mxu0
  %v3313 = vadd.f32 %v2789, %v3312
  %v3314 = vpop.f32.mrf.mxu0
  %v3315 = vadd.f32 %v2793, %v3314
  %3316 = vdwg.mxu0
  %3317 = vmatprep.subr.mxu0 %v2441
  %3318 = vmatpush1.msra.mxu0 %v2440
  %3319 = vmatprep.subr.mxu0 %v2431
  %3320 = vmatpush1.msra.mxu0 %v2430
  %3321 = vmatprep.subr.mxu0 %v2421
  %3322 = vmatpush1.msra.mxu0 %v2420
  %3323 = vmatprep.subr.mxu0 %v2411
  %3324 = vmatpush1.msra.mxu0 %v2410
  %3325 = vmatprep.subr.mxu0 %v2401
  %3326 = vmatpush1.msra.mxu0 %v2400
  %3327 = vmatprep.subr.mxu0 %v2391
  %3328 = vmatpush1.msra.mxu0 %v2390
  %3329 = vmatprep.subr.mxu0 %v2381
  %3330 = vmatpush1.msra.mxu0 %v2380
  %3331 = vmatprep.subr.mxu0 %v2371
  %3332 = vmatpush1.msra.mxu0 %v2370
  %3333 = vmatprep.subr.mxu0 %v2361
  %3334 = vmatpush1.msra.mxu0 %v2360
  %3335 = vmatprep.subr.mxu0 %v2351
  %3336 = vmatpush1.msra.mxu0 %v2350
  %3337 = vmatprep.subr.mxu0 %v2341
  %3338 = vmatpush1.msra.mxu0 %v2340
  %3339 = vmatprep.subr.mxu0 %v2331
  %3340 = vmatpush1.msra.mxu0 %v2330
  %3341 = vmatprep.subr.mxu0 %v2321
  %3342 = vmatpush1.msra.mxu0 %v2320
  %3343 = vmatprep.subr.mxu0 %v2311
  %3344 = vmatpush1.msra.mxu0 %v2310
  %3345 = vmatprep.subr.mxu0 %v2301
  %3346 = vmatpush1.msra.mxu0 %v2300
  %3347 = vmatprep.subr.mxu0 %v2291
  %3348 = vmatpush1.msra.mxu0 %v2290
  %3349 = vmatprep.subr.mxu0 %v2601
  %3350 = vmatpush2.msra.mxu0 %v2600
  %3351 = vmatprep.subr.mxu0 %v2591
  %3352 = vmatpush2.msra.mxu0 %v2590
  %3353 = vmatprep.subr.mxu0 %v2581
  %3354 = vmatpush2.msra.mxu0 %v2580
  %3355 = vmatprep.subr.mxu0 %v2571
  %3356 = vmatpush2.msra.mxu0 %v2570
  %3357 = vmatprep.subr.mxu0 %v2561
  %3358 = vmatpush2.msra.mxu0 %v2560
  %3359 = vmatprep.subr.mxu0 %v2551
  %3360 = vmatpush2.msra.mxu0 %v2550
  %3361 = vmatprep.subr.mxu0 %v2541
  %3362 = vmatpush2.msra.mxu0 %v2540
  %3363 = vmatprep.subr.mxu0 %v2531
  %3364 = vmatpush2.msra.mxu0 %v2530
  %3365 = vmatprep.subr.mxu0 %v2521
  %3366 = vmatpush2.msra.mxu0 %v2520
  %3367 = vmatprep.subr.mxu0 %v2511
  %3368 = vmatpush2.msra.mxu0 %v2510
  %3369 = vmatprep.subr.mxu0 %v2501
  %3370 = vmatpush2.msra.mxu0 %v2500
  %3371 = vmatprep.subr.mxu0 %v2491
  %3372 = vmatpush2.msra.mxu0 %v2490
  %3373 = vmatprep.subr.mxu0 %v2481
  %3374 = vmatpush2.msra.mxu0 %v2480
  %3375 = vmatprep.subr.mxu0 %v2471
  %3376 = vmatpush2.msra.mxu0 %v2470
  %3377 = vmatprep.subr.mxu0 %v2461
  %3378 = vmatpush2.msra.mxu0 %v2460
  %3379 = vmatprep.subr.mxu0 %v2451
  %3380 = vmatpush2.msra.mxu0 %v2450
  %3381 = vmatprep.mubr.f32.mxu0 %v1964
  %3382 = vmatmul.mubr.f32.gmra.mxu0 %v1963
  %v3383 = vpop.f32.mrf.mxu0
  %v3384 = vadd.f32 %v3313, %v3383
  %v3385 = vpop.f32.mrf.mxu0
  %v3386 = vadd.f32 %v3315, %v3385
  %3387 = vdwg.mxu0
  %3388 = vmatprep.subr.mxu0 %v2761
  %3389 = vmatpush1.msra.mxu0 %v2760
  %3390 = vmatprep.subr.mxu0 %v2751
  %3391 = vmatpush1.msra.mxu0 %v2750
  %3392 = vmatprep.subr.mxu0 %v2741
  %3393 = vmatpush1.msra.mxu0 %v2740
  %3394 = vmatprep.subr.mxu0 %v2731
  %3395 = vmatpush1.msra.mxu0 %v2730
  %3396 = vmatprep.subr.mxu0 %v2721
  %3397 = vmatpush1.msra.mxu0 %v2720
  %3398 = vmatprep.subr.mxu0 %v2711
  %3399 = vmatpush1.msra.mxu0 %v2710
  %3400 = vmatprep.subr.mxu0 %v2701
  %3401 = vmatpush1.msra.mxu0 %v2700
  %3402 = vmatprep.subr.mxu0 %v2691
  %3403 = vmatpush1.msra.mxu0 %v2690
  %3404 = vmatprep.subr.mxu0 %v2681
  %3405 = vmatpush1.msra.mxu0 %v2680
  %3406 = vmatprep.subr.mxu0 %v2671
  %3407 = vmatpush1.msra.mxu0 %v2670
  %3408 = vmatprep.subr.mxu0 %v2661
  %3409 = vmatpush1.msra.mxu0 %v2660
  %3410 = vmatprep.subr.mxu0 %v2651
  %3411 = vmatpush1.msra.mxu0 %v2650
  %3412 = vmatprep.subr.mxu0 %v2641
  %3413 = vmatpush1.msra.mxu0 %v2640
  %3414 = vmatprep.subr.mxu0 %v2631
  %3415 = vmatpush1.msra.mxu0 %v2630
  %3416 = vmatprep.subr.mxu0 %v2621
  %3417 = vmatpush1.msra.mxu0 %v2620
  %3418 = vmatprep.subr.mxu0 %v2611
  %3419 = vmatpush1.msra.mxu0 %v2610
  %3420 = vmatprep.subr.mxu0 0.0
  %3421 = vmatpush2.msra.mxu0 0.0
  %3422 = vmatprep.subr.mxu0 0.0
  %3423 = vmatpush2.msra.mxu0 0.0
  %3424 = vmatprep.subr.mxu0 0.0
  %3425 = vmatpush2.msra.mxu0 0.0
  %3426 = vmatprep.subr.mxu0 0.0
  %3427 = vmatpush2.msra.mxu0 0.0
  %3428 = vmatprep.subr.mxu0 0.0
  %3429 = vmatpush2.msra.mxu0 0.0
  %3430 = vmatprep.subr.mxu0 0.0
  %3431 = vmatpush2.msra.mxu0 0.0
  %3432 = vmatprep.subr.mxu0 0.0
  %3433 = vmatpush2.msra.mxu0 0.0
  %3434 = vmatprep.subr.mxu0 0.0
  %3435 = vmatpush2.msra.mxu0 0.0
  %3436 = vmatprep.subr.mxu0 0.0
  %3437 = vmatpush2.msra.mxu0 0.0
  %3438 = vmatprep.subr.mxu0 0.0
  %3439 = vmatpush2.msra.mxu0 0.0
  %3440 = vmatprep.subr.mxu0 0.0
  %3441 = vmatpush2.msra.mxu0 0.0
  %3442 = vmatprep.subr.mxu0 0.0
  %3443 = vmatpush2.msra.mxu0 0.0
  %3444 = vmatprep.subr.mxu0 0.0
  %3445 = vmatpush2.msra.mxu0 0.0
  %3446 = vmatprep.subr.mxu0 0.0
  %3447 = vmatpush2.msra.mxu0 0.0
  %3448 = vmatprep.subr.mxu0 0.0
  %3449 = vmatpush2.msra.mxu0 0.0
  %3450 = vmatprep.subr.mxu0 0.0
  %3451 = vmatpush2.msra.mxu0 0.0
  %3452 = vmatprep.mubr.f32.mxu0 0.0
  %3453 = vmatmul.mubr.f32.gmra.mxu0 %v1965
  %v3454 = vpop.f32.mrf.mxu0
  %v3455 = vadd.f32 %v3384, %v3454
  %v3456 = vpop.f32.mrf.mxu0
  %v3457 = vadd.f32 %v3386, %v3456
  %3458 = vdwg.mxu0
  %3459 = vmatprep.subr.mxu0 %v2123
  %3460 = vmatpush1.msra.mxu0 %v2122
  %3461 = vmatprep.subr.mxu0 %v2113
  %3462 = vmatpush1.msra.mxu0 %v2112
  %3463 = vmatprep.subr.mxu0 %v2103
  %3464 = vmatpush1.msra.mxu0 %v2102
  %3465 = vmatprep.subr.mxu0 %v2093
  %3466 = vmatpush1.msra.mxu0 %v2092
  %3467 = vmatprep.subr.mxu0 %v2083
  %3468 = vmatpush1.msra.mxu0 %v2082
  %3469 = vmatprep.subr.mxu0 %v2073
  %3470 = vmatpush1.msra.mxu0 %v2072
  %3471 = vmatprep.subr.mxu0 %v2063
  %3472 = vmatpush1.msra.mxu0 %v2062
  %3473 = vmatprep.subr.mxu0 %v2053
  %3474 = vmatpush1.msra.mxu0 %v2052
  %3475 = vmatprep.subr.mxu0 %v2043
  %3476 = vmatpush1.msra.mxu0 %v2042
  %3477 = vmatprep.subr.mxu0 %v2033
  %3478 = vmatpush1.msra.mxu0 %v2032
  %3479 = vmatprep.subr.mxu0 %v2023
  %3480 = vmatpush1.msra.mxu0 %v2022
  %3481 = vmatprep.subr.mxu0 %v2013
  %3482 = vmatpush1.msra.mxu0 %v2012
  %3483 = vmatprep.subr.mxu0 %v2003
  %3484 = vmatpush1.msra.mxu0 %v2002
  %3485 = vmatprep.subr.mxu0 %v1993
  %3486 = vmatpush1.msra.mxu0 %v1992
  %3487 = vmatprep.subr.mxu0 %v1983
  %3488 = vmatpush1.msra.mxu0 %v1982
  %3489 = vmatprep.subr.mxu0 %v1973
  %3490 = vmatpush1.msra.mxu0 %v1972
  %3491 = vmatprep.subr.mxu0 %v2283
  %3492 = vmatpush2.msra.mxu0 %v2282
  %3493 = vmatprep.subr.mxu0 %v2273
  %3494 = vmatpush2.msra.mxu0 %v2272
  %3495 = vmatprep.subr.mxu0 %v2263
  %3496 = vmatpush2.msra.mxu0 %v2262
  %3497 = vmatprep.subr.mxu0 %v2253
  %3498 = vmatpush2.msra.mxu0 %v2252
  %3499 = vmatprep.subr.mxu0 %v2243
  %3500 = vmatpush2.msra.mxu0 %v2242
  %3501 = vmatprep.subr.mxu0 %v2233
  %3502 = vmatpush2.msra.mxu0 %v2232
  %3503 = vmatprep.subr.mxu0 %v2223
  %3504 = vmatpush2.msra.mxu0 %v2222
  %3505 = vmatprep.subr.mxu0 %v2213
  %3506 = vmatpush2.msra.mxu0 %v2212
  %3507 = vmatprep.subr.mxu0 %v2203
  %3508 = vmatpush2.msra.mxu0 %v2202
  %3509 = vmatprep.subr.mxu0 %v2193
  %3510 = vmatpush2.msra.mxu0 %v2192
  %3511 = vmatprep.subr.mxu0 %v2183
  %3512 = vmatpush2.msra.mxu0 %v2182
  %3513 = vmatprep.subr.mxu0 %v2173
  %3514 = vmatpush2.msra.mxu0 %v2172
  %3515 = vmatprep.subr.mxu0 %v2163
  %3516 = vmatpush2.msra.mxu0 %v2162
  %3517 = vmatprep.subr.mxu0 %v2153
  %3518 = vmatpush2.msra.mxu0 %v2152
  %3519 = vmatprep.subr.mxu0 %v2143
  %3520 = vmatpush2.msra.mxu0 %v2142
  %3521 = vmatprep.subr.mxu0 %v2133
  %3522 = vmatpush2.msra.mxu0 %v2132
  %3523 = vmatprep.mubr.f32.mxu0 %v1962
  %3524 = vmatmul.mubr.f32.gmra.mxu0 %v1961
  %v3525 = vpop.f32.mrf.mxu0
  %v3526 = vadd.f32 %v2797, %v3525
  %v3527 = vpop.f32.mrf.mxu0
  %v3528 = vadd.f32 %v2801, %v3527
  %3529 = vdwg.mxu0
  %3530 = vmatprep.subr.mxu0 %v2443
  %3531 = vmatpush1.msra.mxu0 %v2442
  %3532 = vmatprep.subr.mxu0 %v2433
  %3533 = vmatpush1.msra.mxu0 %v2432
  %3534 = vmatprep.subr.mxu0 %v2423
  %3535 = vmatpush1.msra.mxu0 %v2422
  %3536 = vmatprep.subr.mxu0 %v2413
  %3537 = vmatpush1.msra.mxu0 %v2412
  %3538 = vmatprep.subr.mxu0 %v2403
  %3539 = vmatpush1.msra.mxu0 %v2402
  %3540 = vmatprep.subr.mxu0 %v2393
  %3541 = vmatpush1.msra.mxu0 %v2392
  %3542 = vmatprep.subr.mxu0 %v2383
  %3543 = vmatpush1.msra.mxu0 %v2382
  %3544 = vmatprep.subr.mxu0 %v2373
  %3545 = vmatpush1.msra.mxu0 %v2372
  %3546 = vmatprep.subr.mxu0 %v2363
  %3547 = vmatpush1.msra.mxu0 %v2362
  %3548 = vmatprep.subr.mxu0 %v2353
  %3549 = vmatpush1.msra.mxu0 %v2352
  %3550 = vmatprep.subr.mxu0 %v2343
  %3551 = vmatpush1.msra.mxu0 %v2342
  %3552 = vmatprep.subr.mxu0 %v2333
  %3553 = vmatpush1.msra.mxu0 %v2332
  %3554 = vmatprep.subr.mxu0 %v2323
  %3555 = vmatpush1.msra.mxu0 %v2322
  %3556 = vmatprep.subr.mxu0 %v2313
  %3557 = vmatpush1.msra.mxu0 %v2312
  %3558 = vmatprep.subr.mxu0 %v2303
  %3559 = vmatpush1.msra.mxu0 %v2302
  %3560 = vmatprep.subr.mxu0 %v2293
  %3561 = vmatpush1.msra.mxu0 %v2292
  %3562 = vmatprep.subr.mxu0 %v2603
  %3563 = vmatpush2.msra.mxu0 %v2602
  %3564 = vmatprep.subr.mxu0 %v2593
  %3565 = vmatpush2.msra.mxu0 %v2592
  %3566 = vmatprep.subr.mxu0 %v2583
  %3567 = vmatpush2.msra.mxu0 %v2582
  %3568 = vmatprep.subr.mxu0 %v2573
  %3569 = vmatpush2.msra.mxu0 %v2572
  %3570 = vmatprep.subr.mxu0 %v2563
  %3571 = vmatpush2.msra.mxu0 %v2562
  %3572 = vmatprep.subr.mxu0 %v2553
  %3573 = vmatpush2.msra.mxu0 %v2552
  %3574 = vmatprep.subr.mxu0 %v2543
  %3575 = vmatpush2.msra.mxu0 %v2542
  %3576 = vmatprep.subr.mxu0 %v2533
  %3577 = vmatpush2.msra.mxu0 %v2532
  %3578 = vmatprep.subr.mxu0 %v2523
  %3579 = vmatpush2.msra.mxu0 %v2522
  %3580 = vmatprep.subr.mxu0 %v2513
  %3581 = vmatpush2.msra.mxu0 %v2512
  %3582 = vmatprep.subr.mxu0 %v2503
  %3583 = vmatpush2.msra.mxu0 %v2502
  %3584 = vmatprep.subr.mxu0 %v2493
  %3585 = vmatpush2.msra.mxu0 %v2492
  %3586 = vmatprep.subr.mxu0 %v2483
  %3587 = vmatpush2.msra.mxu0 %v2482
  %3588 = vmatprep.subr.mxu0 %v2473
  %3589 = vmatpush2.msra.mxu0 %v2472
  %3590 = vmatprep.subr.mxu0 %v2463
  %3591 = vmatpush2.msra.mxu0 %v2462
  %3592 = vmatprep.subr.mxu0 %v2453
  %3593 = vmatpush2.msra.mxu0 %v2452
  %3594 = vmatprep.mubr.f32.mxu0 %v1964
  %3595 = vmatmul.mubr.f32.gmra.mxu0 %v1963
  %v3596 = vpop.f32.mrf.mxu0
  %v3597 = vadd.f32 %v3526, %v3596
  %v3598 = vpop.f32.mrf.mxu0
  %v3599 = vadd.f32 %v3528, %v3598
  %3600 = vdwg.mxu0
  %3601 = vmatprep.subr.mxu0 %v2763
  %3602 = vmatpush1.msra.mxu0 %v2762
  %3603 = vmatprep.subr.mxu0 %v2753
  %3604 = vmatpush1.msra.mxu0 %v2752
  %3605 = vmatprep.subr.mxu0 %v2743
  %3606 = vmatpush1.msra.mxu0 %v2742
  %3607 = vmatprep.subr.mxu0 %v2733
  %3608 = vmatpush1.msra.mxu0 %v2732
  %3609 = vmatprep.subr.mxu0 %v2723
  %3610 = vmatpush1.msra.mxu0 %v2722
  %3611 = vmatprep.subr.mxu0 %v2713
  %3612 = vmatpush1.msra.mxu0 %v2712
  %3613 = vmatprep.subr.mxu0 %v2703
  %3614 = vmatpush1.msra.mxu0 %v2702
  %3615 = vmatprep.subr.mxu0 %v2693
  %3616 = vmatpush1.msra.mxu0 %v2692
  %3617 = vmatprep.subr.mxu0 %v2683
  %3618 = vmatpush1.msra.mxu0 %v2682
  %3619 = vmatprep.subr.mxu0 %v2673
  %3620 = vmatpush1.msra.mxu0 %v2672
  %3621 = vmatprep.subr.mxu0 %v2663
  %3622 = vmatpush1.msra.mxu0 %v2662
  %3623 = vmatprep.subr.mxu0 %v2653
  %3624 = vmatpush1.msra.mxu0 %v2652
  %3625 = vmatprep.subr.mxu0 %v2643
  %3626 = vmatpush1.msra.mxu0 %v2642
  %3627 = vmatprep.subr.mxu0 %v2633
  %3628 = vmatpush1.msra.mxu0 %v2632
  %3629 = vmatprep.subr.mxu0 %v2623
  %3630 = vmatpush1.msra.mxu0 %v2622
  %3631 = vmatprep.subr.mxu0 %v2613
  %3632 = vmatpush1.msra.mxu0 %v2612
  %3633 = vmatprep.subr.mxu0 0.0
  %3634 = vmatpush2.msra.mxu0 0.0
  %3635 = vmatprep.subr.mxu0 0.0
  %3636 = vmatpush2.msra.mxu0 0.0
  %3637 = vmatprep.subr.mxu0 0.0
  %3638 = vmatpush2.msra.mxu0 0.0
  %3639 = vmatprep.subr.mxu0 0.0
  %3640 = vmatpush2.msra.mxu0 0.0
  %3641 = vmatprep.subr.mxu0 0.0
  %3642 = vmatpush2.msra.mxu0 0.0
  %3643 = vmatprep.subr.mxu0 0.0
  %3644 = vmatpush2.msra.mxu0 0.0
  %3645 = vmatprep.subr.mxu0 0.0
  %3646 = vmatpush2.msra.mxu0 0.0
  %3647 = vmatprep.subr.mxu0 0.0
  %3648 = vmatpush2.msra.mxu0 0.0
  %3649 = vmatprep.subr.mxu0 0.0
  %3650 = vmatpush2.msra.mxu0 0.0
  %3651 = vmatprep.subr.mxu0 0.0
  %3652 = vmatpush2.msra.mxu0 0.0
  %3653 = vmatprep.subr.mxu0 0.0
  %3654 = vmatpush2.msra.mxu0 0.0
  %3655 = vmatprep.subr.mxu0 0.0
  %3656 = vmatpush2.msra.mxu0 0.0
  %3657 = vmatprep.subr.mxu0 0.0
  %3658 = vmatpush2.msra.mxu0 0.0
  %3659 = vmatprep.subr.mxu0 0.0
  %3660 = vmatpush2.msra.mxu0 0.0
  %3661 = vmatprep.subr.mxu0 0.0
  %3662 = vmatpush2.msra.mxu0 0.0
  %3663 = vmatprep.subr.mxu0 0.0
  %3664 = vmatpush2.msra.mxu0 0.0
  %3665 = vmatprep.mubr.f32.mxu0 0.0
  %3666 = vmatmul.mubr.f32.gmra.mxu0 %v1965
  %v3667 = vpop.f32.mrf.mxu0
  %v3668 = vadd.f32 %v3597, %v3667
  %v3669 = vpop.f32.mrf.mxu0
  %v3670 = vadd.f32 %v3599, %v3669
  %3671 = vdwg.mxu0
  %3672 = vmatprep.subr.mxu0 %v2125
  %3673 = vmatpush1.msra.mxu0 %v2124
  %3674 = vmatprep.subr.mxu0 %v2115
  %3675 = vmatpush1.msra.mxu0 %v2114
  %3676 = vmatprep.subr.mxu0 %v2105
  %3677 = vmatpush1.msra.mxu0 %v2104
  %3678 = vmatprep.subr.mxu0 %v2095
  %3679 = vmatpush1.msra.mxu0 %v2094
  %3680 = vmatprep.subr.mxu0 %v2085
  %3681 = vmatpush1.msra.mxu0 %v2084
  %3682 = vmatprep.subr.mxu0 %v2075
  %3683 = vmatpush1.msra.mxu0 %v2074
  %3684 = vmatprep.subr.mxu0 %v2065
  %3685 = vmatpush1.msra.mxu0 %v2064
  %3686 = vmatprep.subr.mxu0 %v2055
  %3687 = vmatpush1.msra.mxu0 %v2054
  %3688 = vmatprep.subr.mxu0 %v2045
  %3689 = vmatpush1.msra.mxu0 %v2044
  %3690 = vmatprep.subr.mxu0 %v2035
  %3691 = vmatpush1.msra.mxu0 %v2034
  %3692 = vmatprep.subr.mxu0 %v2025
  %3693 = vmatpush1.msra.mxu0 %v2024
  %3694 = vmatprep.subr.mxu0 %v2015
  %3695 = vmatpush1.msra.mxu0 %v2014
  %3696 = vmatprep.subr.mxu0 %v2005
  %3697 = vmatpush1.msra.mxu0 %v2004
  %3698 = vmatprep.subr.mxu0 %v1995
  %3699 = vmatpush1.msra.mxu0 %v1994
  %3700 = vmatprep.subr.mxu0 %v1985
  %3701 = vmatpush1.msra.mxu0 %v1984
  %3702 = vmatprep.subr.mxu0 %v1975
  %3703 = vmatpush1.msra.mxu0 %v1974
  %3704 = vmatprep.subr.mxu0 %v2285
  %3705 = vmatpush2.msra.mxu0 %v2284
  %3706 = vmatprep.subr.mxu0 %v2275
  %3707 = vmatpush2.msra.mxu0 %v2274
  %3708 = vmatprep.subr.mxu0 %v2265
  %3709 = vmatpush2.msra.mxu0 %v2264
  %3710 = vmatprep.subr.mxu0 %v2255
  %3711 = vmatpush2.msra.mxu0 %v2254
  %3712 = vmatprep.subr.mxu0 %v2245
  %3713 = vmatpush2.msra.mxu0 %v2244
  %3714 = vmatprep.subr.mxu0 %v2235
  %3715 = vmatpush2.msra.mxu0 %v2234
  %3716 = vmatprep.subr.mxu0 %v2225
  %3717 = vmatpush2.msra.mxu0 %v2224
  %3718 = vmatprep.subr.mxu0 %v2215
  %3719 = vmatpush2.msra.mxu0 %v2214
  %3720 = vmatprep.subr.mxu0 %v2205
  %3721 = vmatpush2.msra.mxu0 %v2204
  %3722 = vmatprep.subr.mxu0 %v2195
  %3723 = vmatpush2.msra.mxu0 %v2194
  %3724 = vmatprep.subr.mxu0 %v2185
  %3725 = vmatpush2.msra.mxu0 %v2184
  %3726 = vmatprep.subr.mxu0 %v2175
  %3727 = vmatpush2.msra.mxu0 %v2174
  %3728 = vmatprep.subr.mxu0 %v2165
  %3729 = vmatpush2.msra.mxu0 %v2164
  %3730 = vmatprep.subr.mxu0 %v2155
  %3731 = vmatpush2.msra.mxu0 %v2154
  %3732 = vmatprep.subr.mxu0 %v2145
  %3733 = vmatpush2.msra.mxu0 %v2144
  %3734 = vmatprep.subr.mxu0 %v2135
  %3735 = vmatpush2.msra.mxu0 %v2134
  %3736 = vmatprep.mubr.f32.mxu0 %v1962
  %3737 = vmatmul.mubr.f32.gmra.mxu0 %v1961
  %v3738 = vpop.f32.mrf.mxu0
  %v3739 = vadd.f32 %v2805, %v3738
  %v3740 = vpop.f32.mrf.mxu0
  %v3741 = vadd.f32 %v2809, %v3740
  %3742 = vdwg.mxu0
  %3743 = vmatprep.subr.mxu0 %v2445
  %3744 = vmatpush1.msra.mxu0 %v2444
  %3745 = vmatprep.subr.mxu0 %v2435
  %3746 = vmatpush1.msra.mxu0 %v2434
  %3747 = vmatprep.subr.mxu0 %v2425
  %3748 = vmatpush1.msra.mxu0 %v2424
  %3749 = vmatprep.subr.mxu0 %v2415
  %3750 = vmatpush1.msra.mxu0 %v2414
  %3751 = vmatprep.subr.mxu0 %v2405
  %3752 = vmatpush1.msra.mxu0 %v2404
  %3753 = vmatprep.subr.mxu0 %v2395
  %3754 = vmatpush1.msra.mxu0 %v2394
  %3755 = vmatprep.subr.mxu0 %v2385
  %3756 = vmatpush1.msra.mxu0 %v2384
  %3757 = vmatprep.subr.mxu0 %v2375
  %3758 = vmatpush1.msra.mxu0 %v2374
  %3759 = vmatprep.subr.mxu0 %v2365
  %3760 = vmatpush1.msra.mxu0 %v2364
  %3761 = vmatprep.subr.mxu0 %v2355
  %3762 = vmatpush1.msra.mxu0 %v2354
  %3763 = vmatprep.subr.mxu0 %v2345
  %3764 = vmatpush1.msra.mxu0 %v2344
  %3765 = vmatprep.subr.mxu0 %v2335
  %3766 = vmatpush1.msra.mxu0 %v2334
  %3767 = vmatprep.subr.mxu0 %v2325
  %3768 = vmatpush1.msra.mxu0 %v2324
  %3769 = vmatprep.subr.mxu0 %v2315
  %3770 = vmatpush1.msra.mxu0 %v2314
  %3771 = vmatprep.subr.mxu0 %v2305
  %3772 = vmatpush1.msra.mxu0 %v2304
  %3773 = vmatprep.subr.mxu0 %v2295
  %3774 = vmatpush1.msra.mxu0 %v2294
  %3775 = vmatprep.subr.mxu0 %v2605
  %3776 = vmatpush2.msra.mxu0 %v2604
  %3777 = vmatprep.subr.mxu0 %v2595
  %3778 = vmatpush2.msra.mxu0 %v2594
  %3779 = vmatprep.subr.mxu0 %v2585
  %3780 = vmatpush2.msra.mxu0 %v2584
  %3781 = vmatprep.subr.mxu0 %v2575
  %3782 = vmatpush2.msra.mxu0 %v2574
  %3783 = vmatprep.subr.mxu0 %v2565
  %3784 = vmatpush2.msra.mxu0 %v2564
  %3785 = vmatprep.subr.mxu0 %v2555
  %3786 = vmatpush2.msra.mxu0 %v2554
  %3787 = vmatprep.subr.mxu0 %v2545
  %3788 = vmatpush2.msra.mxu0 %v2544
  %3789 = vmatprep.subr.mxu0 %v2535
  %3790 = vmatpush2.msra.mxu0 %v2534
  %3791 = vmatprep.subr.mxu0 %v2525
  %3792 = vmatpush2.msra.mxu0 %v2524
  %3793 = vmatprep.subr.mxu0 %v2515
  %3794 = vmatpush2.msra.mxu0 %v2514
  %3795 = vmatprep.subr.mxu0 %v2505
  %3796 = vmatpush2.msra.mxu0 %v2504
  %3797 = vmatprep.subr.mxu0 %v2495
  %3798 = vmatpush2.msra.mxu0 %v2494
  %3799 = vmatprep.subr.mxu0 %v2485
  %3800 = vmatpush2.msra.mxu0 %v2484
  %3801 = vmatprep.subr.mxu0 %v2475
  %3802 = vmatpush2.msra.mxu0 %v2474
  %3803 = vmatprep.subr.mxu0 %v2465
  %3804 = vmatpush2.msra.mxu0 %v2464
  %3805 = vmatprep.subr.mxu0 %v2455
  %3806 = vmatpush2.msra.mxu0 %v2454
  %3807 = vmatprep.mubr.f32.mxu0 %v1964
  %3808 = vmatmul.mubr.f32.gmra.mxu0 %v1963
  %v3809 = vpop.f32.mrf.mxu0
  %v3810 = vadd.f32 %v3739, %v3809
  %v3811 = vpop.f32.mrf.mxu0
  %v3812 = vadd.f32 %v3741, %v3811
  %3813 = vdwg.mxu0
  %3814 = vmatprep.subr.mxu0 %v2765
  %3815 = vmatpush1.msra.mxu0 %v2764
  %3816 = vmatprep.subr.mxu0 %v2755
  %3817 = vmatpush1.msra.mxu0 %v2754
  %3818 = vmatprep.subr.mxu0 %v2745
  %3819 = vmatpush1.msra.mxu0 %v2744
  %3820 = vmatprep.subr.mxu0 %v2735
  %3821 = vmatpush1.msra.mxu0 %v2734
  %3822 = vmatprep.subr.mxu0 %v2725
  %3823 = vmatpush1.msra.mxu0 %v2724
  %3824 = vmatprep.subr.mxu0 %v2715
  %3825 = vmatpush1.msra.mxu0 %v2714
  %3826 = vmatprep.subr.mxu0 %v2705
  %3827 = vmatpush1.msra.mxu0 %v2704
  %3828 = vmatprep.subr.mxu0 %v2695
  %3829 = vmatpush1.msra.mxu0 %v2694
  %3830 = vmatprep.subr.mxu0 %v2685
  %3831 = vmatpush1.msra.mxu0 %v2684
  %3832 = vmatprep.subr.mxu0 %v2675
  %3833 = vmatpush1.msra.mxu0 %v2674
  %3834 = vmatprep.subr.mxu0 %v2665
  %3835 = vmatpush1.msra.mxu0 %v2664
  %3836 = vmatprep.subr.mxu0 %v2655
  %3837 = vmatpush1.msra.mxu0 %v2654
  %3838 = vmatprep.subr.mxu0 %v2645
  %3839 = vmatpush1.msra.mxu0 %v2644
  %3840 = vmatprep.subr.mxu0 %v2635
  %3841 = vmatpush1.msra.mxu0 %v2634
  %3842 = vmatprep.subr.mxu0 %v2625
  %3843 = vmatpush1.msra.mxu0 %v2624
  %3844 = vmatprep.subr.mxu0 %v2615
  %3845 = vmatpush1.msra.mxu0 %v2614
  %3846 = vmatprep.subr.mxu0 0.0
  %3847 = vmatpush2.msra.mxu0 0.0
  %3848 = vmatprep.subr.mxu0 0.0
  %3849 = vmatpush2.msra.mxu0 0.0
  %3850 = vmatprep.subr.mxu0 0.0
  %3851 = vmatpush2.msra.mxu0 0.0
  %3852 = vmatprep.subr.mxu0 0.0
  %3853 = vmatpush2.msra.mxu0 0.0
  %3854 = vmatprep.subr.mxu0 0.0
  %3855 = vmatpush2.msra.mxu0 0.0
  %3856 = vmatprep.subr.mxu0 0.0
  %3857 = vmatpush2.msra.mxu0 0.0
  %3858 = vmatprep.subr.mxu0 0.0
  %3859 = vmatpush2.msra.mxu0 0.0
  %3860 = vmatprep.subr.mxu0 0.0
  %3861 = vmatpush2.msra.mxu0 0.0
  %3862 = vmatprep.subr.mxu0 0.0
  %3863 = vmatpush2.msra.mxu0 0.0
  %3864 = vmatprep.subr.mxu0 0.0
  %3865 = vmatpush2.msra.mxu0 0.0
  %3866 = vmatprep.subr.mxu0 0.0
  %3867 = vmatpush2.msra.mxu0 0.0
  %3868 = vmatprep.subr.mxu0 0.0
  %3869 = vmatpush2.msra.mxu0 0.0
  %3870 = vmatprep.subr.mxu0 0.0
  %3871 = vmatpush2.msra.mxu0 0.0
  %3872 = vmatprep.subr.mxu0 0.0
  %3873 = vmatpush2.msra.mxu0 0.0
  %3874 = vmatprep.subr.mxu0 0.0
  %3875 = vmatpush2.msra.mxu0 0.0
  %3876 = vmatprep.subr.mxu0 0.0
  %3877 = vmatpush2.msra.mxu0 0.0
  %3878 = vmatprep.mubr.f32.mxu0 0.0
  %3879 = vmatmul.mubr.f32.gmra.mxu0 %v1965
  %v3880 = vpop.f32.mrf.mxu0
  %v3881 = vadd.f32 %v3810, %v3880
  %v3882 = vpop.f32.mrf.mxu0
  %v3883 = vadd.f32 %v3812, %v3882
  %3884 = vdwg.mxu0
  %v3895 = vcombine.low %v3029, %v3031
  %v3896 = vcombine.low %v3242, %v3244
  %v3897 = vcombine.low %v3455, %v3457
  %v3898 = vcombine.low %v3668, %v3670
  %v3900 = vunpack.c.l.s4 1966171168
  %v3901 = vunpack.c.0.s8 %v3900
  %v3902 = vlaneseq
  %v3903 = vshrl.u32 %v3902, 7
  %v3904 = vsub.s32 %v3901, %v3903
  %v3905 = vrot.slane %v3895, %v3904
  %v3907 = vunpack.c.l.s4 1966171168
  %v3908 = vunpack.c.0.s8 %v3907
  %v3909 = vlaneseq
  %v3910 = vshrl.u32 %v3909, 7
  %v3911 = vsub.s32 %v3908, %v3910
  %v3912 = vrot.slane %v3896, %v3911
  %v3914 = vunpack.c.l.s4 1966171168
  %v3915 = vunpack.c.0.s8 %v3914
  %v3916 = vlaneseq
  %v3917 = vshrl.u32 %v3916, 7
  %v3918 = vsub.s32 %v3915, %v3917
  %v3919 = vrot.slane %v3897, %v3918
  %v3921 = vunpack.c.l.s4 1966171168
  %v3922 = vunpack.c.0.s8 %v3921
  %v3923 = vlaneseq
  %v3924 = vshrl.u32 %v3923, 7
  %v3925 = vsub.s32 %v3922, %v3924
  %v3926 = vrot.slane %v3898, %v3925
  %v3927 = vcombine.low %v3905, %v3912
  %v3928 = vcombine.low %v3919, %v3926
  %v3930 = vunpack.c.l.s4 1966171168
  %v3931 = vunpack.c.0.s8 %v3930
  %v3932 = vlaneseq
  %v3933 = vshrl.u32 %v3932, 7
  %v3934 = vsub.s32 %v3931, %v3933
  %v3935 = vrot.slane %v3927, %v3934
  %v3937 = vunpack.c.l.s4 1966171168
  %v3938 = vunpack.c.0.s8 %v3937
  %v3939 = vlaneseq
  %v3940 = vshrl.u32 %v3939, 7
  %v3941 = vsub.s32 %v3938, %v3940
  %v3942 = vrot.slane %v3928, %v3941
  %v3943 = vcombine.low %v3935, %v3942
  %v3944 = vcombine.low %v3881, %v3883
  %v3946 = vunpack.c.l.s4 1966171168
  %v3947 = vunpack.c.0.s8 %v3946
  %v3948 = vlaneseq
  %v3949 = vshrl.u32 %v3948, 7
  %v3950 = vsub.s32 %v3947, %v3949
  %v3951 = vrot.slane %v3944, %v3950
  %v3953 = vunpack.c.l.s4 1966171168
  %v3954 = vunpack.c.0.s8 %v3953
  %v3955 = vlaneseq
  %v3956 = vshrl.u32 %v3955, 7
  %v3957 = vsub.s32 %v3954, %v3956
  %v3958 = vrot.slane %v3951, %v3957
  %3961 = vst [vmem:[%s5] sm:$0xff] %v3943
  %v3962 = vlaneseq
  %vm3963 = vcmp.ge.s32.totalorder %v3962, 0
  %vm3964 = vcmp.lt.s32.totalorder %v3962, 256
  %vm3965 = vmand %vm3963, %vm3964
  %3966 = vst.msk [vmem:[%s5 + $0x8] sm:$0x3] %vm3965, %v3958
  // Predicated region
  $region22: #{student_model_forward.1} parent=0 // pred_check
    _
  $region23: #{student_model_forward.1} parent=0 // pred_check_branch
    %3968 = sbr.rel (0) target = $region25
  $region24: #{student_model_forward.1} parent=0 // pred_region
    _
  $region25: #{student_model_forward.1} parent=0 // pred_fallthru
    _
  // Predicated region
  $region26: #{student_model_forward.1} parent=0 // pred_check
    _
  $region27: #{student_model_forward.1} parent=0 // pred_check_branch
    %3970 = sbr.rel (0) target = $region29
  $region28: #{student_model_forward.1} parent=0 // pred_region
    _
  $region29: #{student_model_forward.1} parent=0 // pred_fallthru
    _

</llo_original>
